<compile_context>
chip_gen: v7x
topology: tpu7x:2x2x1
jax: 0.10.0
libtpu: 0.0.40
codegen_flags: <defaults>
</compile_context>

<pallas_src>
import functools

import jax
import jax.numpy as jnp
from jax.experimental import pallas as pl
from jax.experimental.pallas import tpu as pltpu


# --------------------------------------------------------------------------- #
# Small helpers
# --------------------------------------------------------------------------- #
def _round_up(x, m):
    return (x + m - 1) // m * m


def _choose_chunk(hw, target):
    """Contraction chunk TK dividing H*W (chunks never straddle a batch).

    Prefers a multiple-of-128 divisor (keeps dynamic lane slices tile aligned);
    falls back to the whole per-batch slab.
    """
    if hw <= target:
        return hw
    tk = (target // 128) * 128
    while tk >= 128:
        if hw % tk == 0:
            return tk
        tk -= 128
    return hw


def _vmem_cap_bytes():
    try:
        info = pltpu.get_tpu_info()
        cap = getattr(info, "vmem_capacity_bytes", None)
        if cap:
            return int(cap)
    except Exception:
        pass
    return 64 * 1024 * 1024  # conservative (v7x per-core physical VMEM)


def _flat_indices(pixel, batch_index, stride, H, W, size):
    """Flat [0, B*H*W) gather indices; mirrors the torch arithmetic.

    round/shift/clip are done in f32 exactly like the module; the flat-index
    math itself is int32 (f32 loses integer precision for large H*W).
    """
    half = (size - 1) // 2
    shift = jnp.array(
        [[x, y] for x in range(-half, half + 1) for y in range(-half, half + 1)],
        dtype=jnp.float32,
    )                                                       # (S*S, 2)
    px = jnp.round(pixel / float(stride))                   # (N, 2)
    p = px[:, None, :] + shift[None]                        # (N, S*S, 2)
    p = jnp.clip(p, 0.0, jnp.array([H - 1, W - 1], dtype=jnp.float32))
    pi = p.astype(jnp.int32)
    return batch_index[:, None] * (H * W) + pi[..., 0] * W + pi[..., 1]  # int32


# --------------------------------------------------------------------------- #
# Kernel
# --------------------------------------------------------------------------- #
def _crop_kernel(*refs, num_scales, metas, prec):
    """One grid step = one block of A agents, all scales.

    Ref layout (in in_specs / out_specs / scratch order):
      hits[s]  : SMEM (G*n_steps_s,) int32   per-(block, chunk) hit flags
      idxs[s]  : VMEM (1, 1, lanes)  int32   flat B*H*W row index per column
      feats[s] : ANY  (B, C_s, HW_s)         feature map, stays in HBM
      outs[s]  : VMEM (1, C_s, lanes)        gathered crop (lane-dense)
      tabs[s]  : VMEM (B, C_s, HW_s)         resident table (loaded once)
      accs[s]  : VMEM (C_s, lanes) f32       accumulator
    """
    hits = refs[0:num_scales]
    idxs = refs[num_scales:2 * num_scales]
    feats = refs[2 * num_scales:3 * num_scales]
    outs = refs[3 * num_scales:4 * num_scales]
    tabs = refs[4 * num_scales:5 * num_scales]
    accs = refs[5 * num_scales:]

    g = pl.program_id(0)

    # One-time HBM -> VMEM load of the grid-invariant tables (no double buffer).
    @pl.when(g == 0)
    def _load_tables():
        for s in range(num_scales):
            pltpu.sync_copy(feats[s], tabs[s])

    for s in range(num_scales):
        HW, TK, cpb, n_steps = metas[s]
        idx = idxs[s][0]                       # (1, lanes) int32
        lanes = idx.shape[-1]
        tab = tabs[s]
        acc = accs[s]
        hit = hits[s]

        acc[...] = jnp.zeros(acc.shape, jnp.float32)

        def chunk_body(t, b, off, *, idx=idx, tab=tab, acc=acc, hit=hit,
                       HW=HW, TK=TK, n_steps=n_steps, lanes=lanes):
            # Skip chunks that no agent in this block touches.
            @pl.when(hit[g * n_steps + t] > 0)
            def _():
                rows = b * HW + off + jax.lax.broadcasted_iota(
                    jnp.int32, (TK, lanes), 0)
                onehot = (rows == idx).astype(tab.dtype)     # (TK, lanes)
                chunk = tab[b, :, pl.ds(off, TK)]            # (C, TK)
                acc[...] += jnp.dot(chunk, onehot,
                                    preferred_element_type=jnp.float32,
                                    precision=prec)

        if n_steps <= 16:
            # Short fixed trip count: static unroll, fully static slices.
            for t in range(n_steps):
                chunk_body(t, t // cpb, (t % cpb) * TK)
        else:
            @pl.loop(0, n_steps)
            def _chunks(t):
                b = t // cpb
                off = pl.multiple_of((t % cpb) * TK, TK)
                chunk_body(t, b, off)

        outs[s][0] = acc[...].astype(outs[s].dtype)


# --------------------------------------------------------------------------- #
# Wrapper (Cropper.forward, heading_norm=False path)
# --------------------------------------------------------------------------- #
def cropper_forward(feature_maps, pixel, batch_index, angle, *, strides, size,
                    heading_norm=False, block_agents=32, chunk_target=512,
                    exact_f32_gather=True):
    del angle  # unused when heading_norm=False
    assert not heading_norm, "heading_norm=True not implemented"
    # The module's shift grid only has size*size entries when size is odd.
    assert size % 2 == 1, "Cropper requires an odd crop size"

    N = int(pixel.shape[0])
    S, SS = size, size * size
    num_scales = len(feature_maps)
    channels = [int(f.shape[1]) for f in feature_maps]
    dtype = feature_maps[0].dtype
    esize = jnp.dtype(dtype).itemsize

    A = max(1, min(block_agents, N))             # agents per grid step
    G = int(pl.cdiv(N, A))
    N_pad = G * A
    lanes = _round_up(A * SS, 128)               # lane-dense stores / full N-tiles

    if dtype in (jnp.bfloat16, jnp.float16):
        prec = None                              # single MXU pass, exact for 16-bit
    elif exact_f32_gather:
        prec = jax.lax.Precision.HIGHEST         # bit-exact f32 gather
    else:
        prec = None                              # fastest; bf16-rounds features

    pixel = pixel.astype(jnp.float32)
    batch_index = batch_index.astype(jnp.int32)

    hits_arrays, idx_arrays, feat_arrays = [], [], []
    hits_specs, idx_specs, feat_specs = [], [], []
    out_shapes, out_specs = [], []
    table_scratch, acc_scratch = [], []
    metas = []
    vmem_needed = 0

    for f, stride in zip(feature_maps, strides):
        B, C, H, W = (int(d) for d in f.shape)
        HW = H * W
        TK = _choose_chunk(HW, chunk_target)
        cpb = HW // TK                           # chunks per batch slab
        n_steps = B * cpb
        metas.append((HW, TK, cpb, n_steps))

        idx = _flat_indices(pixel, batch_index, stride, H, W, size)     # (N, SS)
        idx = jnp.pad(idx, ((0, N_pad - N), (0, 0)), constant_values=-1)
        idx = idx.reshape(G, A * SS)
        idx = jnp.pad(idx, ((0, 0), (0, lanes - A * SS)), constant_values=-1)

        # Per-(agent block, chunk) hit flags -> kernel skips untouched chunks.
        chunk_id = jnp.where(idx >= 0,
                             (idx // HW) * cpb + (idx % HW) // TK, -1)  # (G, lanes)
        hits = (chunk_id[:, :, None]
                == jnp.arange(n_steps, dtype=jnp.int32)[None, None, :]).any(axis=1)
        hits_arrays.append(hits.astype(jnp.int32).reshape(G * n_steps))
        hits_specs.append(pl.BlockSpec(memory_space=pltpu.MemorySpace.SMEM))

        idx_arrays.append(idx.reshape(G, 1, lanes))
        idx_specs.append(pl.BlockSpec((1, 1, lanes), lambda g: (g, 0, 0)))

        # Free reshape (no HBM transpose copy); stays in HBM, loaded once.
        feat_arrays.append(f.reshape(B, C, HW))
        feat_specs.append(pl.BlockSpec(memory_space=pl.ANY))

        out_shapes.append(jax.ShapeDtypeStruct((G, C, lanes), dtype))
        out_specs.append(pl.BlockSpec((1, C, lanes), lambda g: (g, 0, 0)))

        table_scratch.append(pltpu.VMEM((B, C, HW), dtype))
        acc_scratch.append(pltpu.VMEM((C, lanes), jnp.float32))

        c_pad = _round_up(C, 8)
        vmem_needed += B * c_pad * _round_up(HW, 128) * esize       # resident table
        vmem_needed += c_pad * lanes * 4                            # accumulator
        vmem_needed += 2 * (8 * lanes * 4 + c_pad * lanes * esize)  # idx/out dbl-buf
        vmem_needed += 2 * _round_up(TK, 8) * lanes * 4             # one-hot chunk

    vmem_limit = int(min(_vmem_cap_bytes(),
                         max(2 * vmem_needed + (8 << 20), 32 << 20)))

    kernel = functools.partial(_crop_kernel, num_scales=num_scales,
                               metas=tuple(metas), prec=prec)

    outs = pl.pallas_call(
        kernel,
        out_shape=tuple(out_shapes),
        grid=(G,),
        in_specs=hits_specs + idx_specs + feat_specs,
        out_specs=tuple(out_specs),
        scratch_shapes=table_scratch + acc_scratch,
        compiler_params=pltpu.CompilerParams(
            # "arbitrary": the table load at g==0 is reused by later grid steps.
            dimension_semantics=("arbitrary",),
            vmem_limit_bytes=vmem_limit,
        ),
    )(*hits_arrays, *idx_arrays, *feat_arrays)

    # (G, C_s, lanes) -> (N, C_s, S, S); drop lane padding and padded agents.
    crops = []
    for o, C in zip(outs, channels):
        o = o[:, :, :A * SS].reshape(G, C, A, S, S)
        o = jnp.transpose(o, (0, 2, 1, 3, 4)).reshape(N_pad, C, S, S)
        crops.append(o[:N])
    return jnp.concatenate(crops, axis=1)


# ---------------- pure-JAX reference (mirrors the PyTorch code) ---------------- #
def cropper_reference(feature_maps, pixel, batch_index, strides, size):
    N = pixel.shape[0]
    start = -int((size - 1) / 2)
    end = int((size + 1) / 2)
    shift = jnp.array(
        [[x, y] for x in range(start, end) for y in range(start, end)],
        dtype=jnp.float32,
    )
    outs = []
    for f, stride in zip(feature_maps, strides):
        B, C, H, W = f.shape
        px = jnp.round(pixel / float(stride))
        p = px[:, None, :] + shift[None]                       # N x S*S x 2
        p = jnp.clip(p, 0.0, jnp.array([H - 1, W - 1], dtype=jnp.float32))
        feat = jnp.transpose(f, (0, 2, 3, 1)).reshape(B * H * W, C)
        idx = (batch_index[:, None] * (H * W)
               + (p[..., 0] * W + p[..., 1]).astype(jnp.int32)).reshape(-1)
        g = feat[idx].reshape(N, size, size, C)
        outs.append(jnp.transpose(g, (0, 3, 1, 2)))
    return jnp.concatenate(outs, axis=1)


if __name__ == "__main__":
    key = jax.random.PRNGKey(0)
    k1, k2, k3, k4 = jax.random.split(key, 4)

    B = 2
    size = 5                 # Cropper's shift construction requires odd size
    strides = [4, 8]
    # raster map is 64x64: scale0 = 16x16 (stride 4), scale1 = 8x8 (stride 8)
    f0 = jax.random.normal(k1, (B, 4, 16, 16), dtype=jnp.float32)
    f1 = jax.random.normal(k2, (B, 8, 8, 8), dtype=jnp.float32)

    N = 8  # agent_num
    pixel = jax.random.uniform(k3, (N, 2), minval=0.0, maxval=63.0,
                               dtype=jnp.float32)
    batch_index = jax.random.randint(k4, (N,), 0, B, dtype=jnp.int32)
    angle = jnp.zeros((N,), dtype=jnp.float32)  # unused (heading_norm=False)

    ref = cropper_reference([f0, f1], pixel, batch_index, strides, size)

    # Default config: one agent block (A=8, lanes padded 200 -> 256).
    out = cropper_forward(
        [f0, f1], pixel, batch_index, angle, strides=strides, size=size
    )
    out = jax.block_until_ready(out)
    assert out.shape == (N, 4 + 8, size, size), out.shape
    assert jnp.allclose(out, ref, atol=1e-5, rtol=1e-5), float(
        jnp.max(jnp.abs(out - ref))
    )

    # Multi-block config: exercises the g==0 table load reused by later grid
    # steps, agent padding, and per-block chunk skipping.
    out2 = cropper_forward(
        [f0, f1], pixel, batch_index, angle, strides=strides, size=size,
        block_agents=3,
    )
    out2 = jax.block_until_ready(out2)
    assert out2.shape == (N, 4 + 8, size, size), out2.shape
    assert jnp.allclose(out2, ref, atol=1e-5, rtol=1e-5), float(
        jnp.max(jnp.abs(out2 - ref))
    )

    print("KERNEL_OK")
</pallas_src>

<mosaic_0001>
module attributes {stable_mosaic.version = 11 : i64} {
  func.func @_crop_kernel(%arg0: i32, %arg1: memref<2xi32, #tpu.memory_space<smem>>, %arg2: memref<2xi32, #tpu.memory_space<smem>>, %arg3: memref<1x1x256xi32, #tpu.memory_space<vmem>>, %arg4: memref<1x1x256xi32, #tpu.memory_space<vmem>>, %arg5: memref<2x4x256xf32, #tpu.memory_space<any>>, %arg6: memref<2x8x64xf32, #tpu.memory_space<any>>, %arg7: memref<1x4x256xf32, #tpu.memory_space<vmem>>, %arg8: memref<1x8x256xf32, #tpu.memory_space<vmem>>, %arg9: memref<2x4x256xf32, #tpu.memory_space<vmem>>, %arg10: memref<2x8x64xf32, #tpu.memory_space<vmem>>, %arg11: memref<4x256xf32, #tpu.memory_space<vmem>>, %arg12: memref<8x256xf32, #tpu.memory_space<vmem>>) attributes {dimension_semantics = [#tpu.dimension_semantics<arbitrary>], iteration_bounds = array<i64: 1>, scalar_prefetch = 0 : i64, scratch_operands = 4 : i64, tpu.core_type = #tpu.core_type<tc>, window_params = [{transform_indices = @transform_0, window_bounds = array<i64: 2>}, {transform_indices = @transform_1, window_bounds = array<i64: 2>}, {transform_indices = @transform_2, window_bounds = array<i64: 1, 1, 256>}, {transform_indices = @transform_3, window_bounds = array<i64: 1, 1, 256>}, {}, {}, {transform_indices = @transform_6, window_bounds = array<i64: 1, 4, 256>}, {transform_indices = @transform_7, window_bounds = array<i64: 1, 8, 256>}]} {
    %c0_i32 = arith.constant 0 : i32
    %0 = arith.cmpi eq, %arg0, %c0_i32 : i32
    %1 = arith.extui %0 : i1 to i32
    %c0_i32_0 = arith.constant 0 : i32
    %2 = arith.cmpi ne, %1, %c0_i32_0 : i32
    scf.if %2 {
      "tpu.region"() ({
        %47 = tpu.sem_alloc : memref<!tpu.dma_semaphore, #tpu.memory_space<semaphore_mem>>
        tpu.enqueue_dma source(%arg5 : memref<2x4x256xf32, #tpu.memory_space<any>>) target(%arg9 : memref<2x4x256xf32, #tpu.memory_space<vmem>>) target_semaphore(%47 : memref<!tpu.dma_semaphore, #tpu.memory_space<semaphore_mem>>)
        tpu.wait_dma2 semaphore(%47 : memref<!tpu.dma_semaphore, #tpu.memory_space<semaphore_mem>>) src(%arg5 : memref<2x4x256xf32, #tpu.memory_space<any>>) dst(%arg9 : memref<2x4x256xf32, #tpu.memory_space<vmem>>)
        tpu.yield
      }) : () -> ()
      "tpu.region"() ({
        %47 = tpu.sem_alloc : memref<!tpu.dma_semaphore, #tpu.memory_space<semaphore_mem>>
        tpu.enqueue_dma source(%arg6 : memref<2x8x64xf32, #tpu.memory_space<any>>) target(%arg10 : memref<2x8x64xf32, #tpu.memory_space<vmem>>) target_semaphore(%47 : memref<!tpu.dma_semaphore, #tpu.memory_space<semaphore_mem>>)
        tpu.wait_dma2 semaphore(%47 : memref<!tpu.dma_semaphore, #tpu.memory_space<semaphore_mem>>) src(%arg6 : memref<2x8x64xf32, #tpu.memory_space<any>>) dst(%arg10 : memref<2x8x64xf32, #tpu.memory_space<vmem>>)
        tpu.yield
      }) : () -> ()
    } else {
    }
    %c0 = arith.constant 0 : index
    %c0_1 = arith.constant 0 : index
    %c0_2 = arith.constant 0 : index
    %3 = vector.load %arg3[%c0, %c0_1, %c0_2] : memref<1x1x256xi32, #tpu.memory_space<vmem>>, vector<1x1x256xi32>
    %4 = vector.shape_cast %3 : vector<1x1x256xi32> to vector<1x256xi32>
    %cst = arith.constant 0.000000e+00 : f32
    %5 = vector.broadcast %cst : f32 to vector<4x256xf32>
    %c0_3 = arith.constant 0 : index
    %c0_4 = arith.constant 0 : index
    %6 = vector.load %arg11[%c0_3, %c0_4] : memref<4x256xf32, #tpu.memory_space<vmem>>, vector<4x256xf32>
    tpu.vector_store %arg11[%c0_3, %c0_4], %5 {strides = array<i32>} : memref<4x256xf32, #tpu.memory_space<vmem>>, vector<4x256xf32>,
    %c2_i32 = arith.constant 2 : i32
    %7 = arith.muli %arg0, %c2_i32 : i32
    %c0_i32_5 = arith.constant 0 : i32
    %8 = arith.addi %7, %c0_i32_5 : i32
    %9 = arith.index_cast %8 : i32 to index
    %10 = memref.load %arg1[%9] : memref<2xi32, #tpu.memory_space<smem>>
    %c0_i32_6 = arith.constant 0 : i32
    %11 = arith.cmpi sgt, %10, %c0_i32_6 : i32
    %12 = arith.extui %11 : i1 to i32
    %c0_i32_7 = arith.constant 0 : i32
    %13 = arith.cmpi ne, %12, %c0_i32_7 : i32
    scf.if %13 {
      %47 = tpu.iota {dimensions = array<i32: 0>} : vector<256x256xi32>
      %c0_i32_35 = arith.constant 0 : i32
      %48 = vector.broadcast %c0_i32_35 : i32 to vector<256x256xi32>
      %49 = arith.addi %48, %47 : vector<256x256xi32>
      %50 = vector.broadcast %4 : vector<1x256xi32> to vector<256x256xi32>
      %51 = arith.cmpi eq, %49, %50 : vector<256x256xi32>
      %52 = arith.extui %51 : vector<256x256xi1> to vector<256x256xi32>
      %53 = arith.sitofp %52 : vector<256x256xi32> to vector<256x256xf32>
      %c0_36 = arith.constant 0 : index
      %c0_37 = arith.constant 0 : index
      %c0_38 = arith.constant 0 : index
      %54 = vector.load %arg9[%c0_36, %c0_37, %c0_38] : memref<2x4x256xf32, #tpu.memory_space<vmem>>, vector<1x4x256xf32>
      %55 = vector.shape_cast %54 : vector<1x4x256xf32> to vector<4x256xf32>
      %c0_39 = arith.constant 0 : index
      %c0_40 = arith.constant 0 : index
      %56 = vector.load %arg11[%c0_39, %c0_40] : memref<4x256xf32, #tpu.memory_space<vmem>>, vector<4x256xf32>
      %cst_41 = arith.constant dense<0.000000e+00> : vector<4x256xf32>
      %57 = tpu.matmul %55, %53, %cst_41 {dimension_numbers = #tpu.dot_dimension_numbers<[1], [0], [0], [1], [0, 0, 1, 1], [], []>, precision = #tpu.contract_precision<fp32>} : vector<4x256xf32>, vector<256x256xf32>, vector<4x256xf32> -> vector<4x256xf32>
      %58 = arith.addf %56, %57 : vector<4x256xf32>
      %c0_42 = arith.constant 0 : index
      %c0_43 = arith.constant 0 : index
      %59 = vector.load %arg11[%c0_42, %c0_43] : memref<4x256xf32, #tpu.memory_space<vmem>>, vector<4x256xf32>
      tpu.vector_store %arg11[%c0_42, %c0_43], %58 {strides = array<i32>} : memref<4x256xf32, #tpu.memory_space<vmem>>, vector<4x256xf32>,
    } else {
    }
    %c2_i32_8 = arith.constant 2 : i32
    %14 = arith.muli %arg0, %c2_i32_8 : i32
    %c1_i32 = arith.constant 1 : i32
    %15 = arith.addi %14, %c1_i32 : i32
    %16 = arith.index_cast %15 : i32 to index
    %17 = memref.load %arg1[%16] : memref<2xi32, #tpu.memory_space<smem>>
    %c0_i32_9 = arith.constant 0 : i32
    %18 = arith.cmpi sgt, %17, %c0_i32_9 : i32
    %19 = arith.extui %18 : i1 to i32
    %c0_i32_10 = arith.constant 0 : i32
    %20 = arith.cmpi ne, %19, %c0_i32_10 : i32
    scf.if %20 {
      %47 = tpu.iota {dimensions = array<i32: 0>} : vector<256x256xi32>
      %c256_i32 = arith.constant 256 : i32
      %48 = vector.broadcast %c256_i32 : i32 to vector<256x256xi32>
      %49 = arith.addi %48, %47 : vector<256x256xi32>
      %50 = vector.broadcast %4 : vector<1x256xi32> to vector<256x256xi32>
      %51 = arith.cmpi eq, %49, %50 : vector<256x256xi32>
      %52 = arith.extui %51 : vector<256x256xi1> to vector<256x256xi32>
      %53 = arith.sitofp %52 : vector<256x256xi32> to vector<256x256xf32>
      %c1 = arith.constant 1 : index
      %c0_35 = arith.constant 0 : index
      %c0_36 = arith.constant 0 : index
      %54 = vector.load %arg9[%c1, %c0_35, %c0_36] : memref<2x4x256xf32, #tpu.memory_space<vmem>>, vector<1x4x256xf32>
      %55 = vector.shape_cast %54 : vector<1x4x256xf32> to vector<4x256xf32>
      %c0_37 = arith.constant 0 : index
      %c0_38 = arith.constant 0 : index
      %56 = vector.load %arg11[%c0_37, %c0_38] : memref<4x256xf32, #tpu.memory_space<vmem>>, vector<4x256xf32>
      %cst_39 = arith.constant dense<0.000000e+00> : vector<4x256xf32>
      %57 = tpu.matmul %55, %53, %cst_39 {dimension_numbers = #tpu.dot_dimension_numbers<[1], [0], [0], [1], [0, 0, 1, 1], [], []>, precision = #tpu.contract_precision<fp32>} : vector<4x256xf32>, vector<256x256xf32>, vector<4x256xf32> -> vector<4x256xf32>
      %58 = arith.addf %56, %57 : vector<4x256xf32>
      %c0_40 = arith.constant 0 : index
      %c0_41 = arith.constant 0 : index
      %59 = vector.load %arg11[%c0_40, %c0_41] : memref<4x256xf32, #tpu.memory_space<vmem>>, vector<4x256xf32>
      tpu.vector_store %arg11[%c0_40, %c0_41], %58 {strides = array<i32>} : memref<4x256xf32, #tpu.memory_space<vmem>>, vector<4x256xf32>,
    } else {
    }
    %c0_11 = arith.constant 0 : index
    %c0_12 = arith.constant 0 : index
    %21 = vector.load %arg11[%c0_11, %c0_12] : memref<4x256xf32, #tpu.memory_space<vmem>>, vector<4x256xf32>
    %c0_13 = arith.constant 0 : index
    %c0_14 = arith.constant 0 : index
    %c0_15 = arith.constant 0 : index
    %22 = vector.load %arg7[%c0_13, %c0_14, %c0_15] : memref<1x4x256xf32, #tpu.memory_space<vmem>>, vector<1x4x256xf32>
    %23 = vector.shape_cast %22 : vector<1x4x256xf32> to vector<4x256xf32>
    %24 = vector.shape_cast %21 : vector<4x256xf32> to vector<1x4x256xf32>
    tpu.vector_store %arg7[%c0_13, %c0_14, %c0_15], %24 {strides = array<i32>} : memref<1x4x256xf32, #tpu.memory_space<vmem>>, vector<1x4x256xf32>,
    %c0_16 = arith.constant 0 : index
    %c0_17 = arith.constant 0 : index
    %c0_18 = arith.constant 0 : index
    %25 = vector.load %arg4[%c0_16, %c0_17, %c0_18] : memref<1x1x256xi32, #tpu.memory_space<vmem>>, vector<1x1x256xi32>
    %26 = vector.shape_cast %25 : vector<1x1x256xi32> to vector<1x256xi32>
    %cst_19 = arith.constant 0.000000e+00 : f32
    %27 = vector.broadcast %cst_19 : f32 to vector<8x256xf32>
    %c0_20 = arith.constant 0 : index
    %c0_21 = arith.constant 0 : index
    %28 = vector.load %arg12[%c0_20, %c0_21] : memref<8x256xf32, #tpu.memory_space<vmem>>, vector<8x256xf32>
    tpu.vector_store %arg12[%c0_20, %c0_21], %27 {strides = array<i32>} : memref<8x256xf32, #tpu.memory_space<vmem>>, vector<8x256xf32>,
    %c2_i32_22 = arith.constant 2 : i32
    %29 = arith.muli %arg0, %c2_i32_22 : i32
    %c0_i32_23 = arith.constant 0 : i32
    %30 = arith.addi %29, %c0_i32_23 : i32
    %31 = arith.index_cast %30 : i32 to index
    %32 = memref.load %arg2[%31] : memref<2xi32, #tpu.memory_space<smem>>
    %c0_i32_24 = arith.constant 0 : i32
    %33 = arith.cmpi sgt, %32, %c0_i32_24 : i32
    %34 = arith.extui %33 : i1 to i32
    %c0_i32_25 = arith.constant 0 : i32
    %35 = arith.cmpi ne, %34, %c0_i32_25 : i32
    scf.if %35 {
      %47 = tpu.iota {dimensions = array<i32: 0>} : vector<64x256xi32>
      %c0_i32_35 = arith.constant 0 : i32
      %48 = vector.broadcast %c0_i32_35 : i32 to vector<64x256xi32>
      %49 = arith.addi %48, %47 : vector<64x256xi32>
      %50 = vector.broadcast %26 : vector<1x256xi32> to vector<64x256xi32>
      %51 = arith.cmpi eq, %49, %50 : vector<64x256xi32>
      %52 = arith.extui %51 : vector<64x256xi1> to vector<64x256xi32>
      %53 = arith.sitofp %52 : vector<64x256xi32> to vector<64x256xf32>
      %c0_36 = arith.constant 0 : index
      %c0_37 = arith.constant 0 : index
      %c0_38 = arith.constant 0 : index
      %54 = vector.load %arg10[%c0_36, %c0_37, %c0_38] : memref<2x8x64xf32, #tpu.memory_space<vmem>>, vector<1x8x64xf32>
      %55 = vector.shape_cast %54 : vector<1x8x64xf32> to vector<8x64xf32>
      %c0_39 = arith.constant 0 : index
      %c0_40 = arith.constant 0 : index
      %56 = vector.load %arg12[%c0_39, %c0_40] : memref<8x256xf32, #tpu.memory_space<vmem>>, vector<8x256xf32>
      %cst_41 = arith.constant dense<0.000000e+00> : vector<8x256xf32>
      %57 = tpu.matmul %55, %53, %cst_41 {dimension_numbers = #tpu.dot_dimension_numbers<[1], [0], [0], [1], [0, 0, 1, 1], [], []>, precision = #tpu.contract_precision<fp32>} : vector<8x64xf32>, vector<64x256xf32>, vector<8x256xf32> -> vector<8x256xf32>
      %58 = arith.addf %56, %57 : vector<8x256xf32>
      %c0_42 = arith.constant 0 : index
      %c0_43 = arith.constant 0 : index
      %59 = vector.load %arg12[%c0_42, %c0_43] : memref<8x256xf32, #tpu.memory_space<vmem>>, vector<8x256xf32>
      tpu.vector_store %arg12[%c0_42, %c0_43], %58 {strides = array<i32>} : memref<8x256xf32, #tpu.memory_space<vmem>>, vector<8x256xf32>,
    } else {
    }
    %c2_i32_26 = arith.constant 2 : i32
    %36 = arith.muli %arg0, %c2_i32_26 : i32
    %c1_i32_27 = arith.constant 1 : i32
    %37 = arith.addi %36, %c1_i32_27 : i32
    %38 = arith.index_cast %37 : i32 to index
    %39 = memref.load %arg2[%38] : memref<2xi32, #tpu.memory_space<smem>>
    %c0_i32_28 = arith.constant 0 : i32
    %40 = arith.cmpi sgt, %39, %c0_i32_28 : i32
    %41 = arith.extui %40 : i1 to i32
    %c0_i32_29 = arith.constant 0 : i32
    %42 = arith.cmpi ne, %41, %c0_i32_29 : i32
    scf.if %42 {
      %47 = tpu.iota {dimensions = array<i32: 0>} : vector<64x256xi32>
      %c64_i32 = arith.constant 64 : i32
      %48 = vector.broadcast %c64_i32 : i32 to vector<64x256xi32>
      %49 = arith.addi %48, %47 : vector<64x256xi32>
      %50 = vector.broadcast %26 : vector<1x256xi32> to vector<64x256xi32>
      %51 = arith.cmpi eq, %49, %50 : vector<64x256xi32>
      %52 = arith.extui %51 : vector<64x256xi1> to vector<64x256xi32>
      %53 = arith.sitofp %52 : vector<64x256xi32> to vector<64x256xf32>
      %c1 = arith.constant 1 : index
      %c0_35 = arith.constant 0 : index
      %c0_36 = arith.constant 0 : index
      %54 = vector.load %arg10[%c1, %c0_35, %c0_36] : memref<2x8x64xf32, #tpu.memory_space<vmem>>, vector<1x8x64xf32>
      %55 = vector.shape_cast %54 : vector<1x8x64xf32> to vector<8x64xf32>
      %c0_37 = arith.constant 0 : index
      %c0_38 = arith.constant 0 : index
      %56 = vector.load %arg12[%c0_37, %c0_38] : memref<8x256xf32, #tpu.memory_space<vmem>>, vector<8x256xf32>
      %cst_39 = arith.constant dense<0.000000e+00> : vector<8x256xf32>
      %57 = tpu.matmul %55, %53, %cst_39 {dimension_numbers = #tpu.dot_dimension_numbers<[1], [0], [0], [1], [0, 0, 1, 1], [], []>, precision = #tpu.contract_precision<fp32>} : vector<8x64xf32>, vector<64x256xf32>, vector<8x256xf32> -> vector<8x256xf32>
      %58 = arith.addf %56, %57 : vector<8x256xf32>
      %c0_40 = arith.constant 0 : index
      %c0_41 = arith.constant 0 : index
      %59 = vector.load %arg12[%c0_40, %c0_41] : memref<8x256xf32, #tpu.memory_space<vmem>>, vector<8x256xf32>
      tpu.vector_store %arg12[%c0_40, %c0_41], %58 {strides = array<i32>} : memref<8x256xf32, #tpu.memory_space<vmem>>, vector<8x256xf32>,
    } else {
    }
    %c0_30 = arith.constant 0 : index
    %c0_31 = arith.constant 0 : index
    %43 = vector.load %arg12[%c0_30, %c0_31] : memref<8x256xf32, #tpu.memory_space<vmem>>, vector<8x256xf32>
    %c0_32 = arith.constant 0 : index
    %c0_33 = arith.constant 0 : index
    %c0_34 = arith.constant 0 : index
    %44 = vector.load %arg8[%c0_32, %c0_33, %c0_34] : memref<1x8x256xf32, #tpu.memory_space<vmem>>, vector<1x8x256xf32>
    %45 = vector.shape_cast %44 : vector<1x8x256xf32> to vector<8x256xf32>
    %46 = vector.shape_cast %43 : vector<8x256xf32> to vector<1x8x256xf32>
    tpu.vector_store %arg8[%c0_32, %c0_33, %c0_34], %46 {strides = array<i32>} : memref<1x8x256xf32, #tpu.memory_space<vmem>>, vector<1x8x256xf32>,
    return
  }
  func.func @transform_0(%arg0: i32) -> i32 {
    %c0_i32 = arith.constant 0 : i32
    %c0_i32_0 = arith.constant 0 : i32
    return %c0_i32 : i32
  }
  func.func @transform_1(%arg0: i32) -> i32 {
    %c0_i32 = arith.constant 0 : i32
    %c0_i32_0 = arith.constant 0 : i32
    return %c0_i32 : i32
  }
  func.func @transform_2(%arg0: i32) -> (i32, i32, i32) {
    %c0_i32 = arith.constant 0 : i32
    %c0_i32_0 = arith.constant 0 : i32
    %c0_i32_1 = arith.constant 0 : i32
    return %arg0, %c0_i32, %c0_i32_0 : i32, i32, i32
  }
  func.func @transform_3(%arg0: i32) -> (i32, i32, i32) {
    %c0_i32 = arith.constant 0 : i32
    %c0_i32_0 = arith.constant 0 : i32
    %c0_i32_1 = arith.constant 0 : i32
    return %arg0, %c0_i32, %c0_i32_0 : i32, i32, i32
  }
  func.func @transform_6(%arg0: i32) -> (i32, i32, i32) {
    %c0_i32 = arith.constant 0 : i32
    %c0_i32_0 = arith.constant 0 : i32
    %c0_i32_1 = arith.constant 0 : i32
    return %arg0, %c0_i32, %c0_i32_0 : i32, i32, i32
  }
  func.func @transform_7(%arg0: i32) -> (i32, i32, i32) {
    %c0_i32 = arith.constant 0 : i32
    %c0_i32_0 = arith.constant 0 : i32
    %c0_i32_1 = arith.constant 0 : i32
    return %arg0, %c0_i32, %c0_i32_0 : i32, i32, i32
  }
}

</mosaic_0001>

<llo_original>
// kernel: tpu_custom_call.1
$region0: #{tpu_custom_call.1}
  #allocation0 [shape = 'u32[]', space=smem, size = 0x4, offset = 0x4, fixed_abs, tag = 'smem constant byte address 0x4 - core index']
  #allocation1 [shape = 'u32[144,128]{1,0:T(1,128)}', space=vmem, size = 0x12000, scoped, tag = 'internal scratch']
  #allocation2 [shape = 'f32[2,4,256]{2,1,0:T(4,128)}', space=vmem, size = 0x2000, scoped, tag = 'scratch operand']
  #allocation3 [shape = 'f32[2,8,64]{2,1,0:T(8,128)}', space=vmem, size = 0x2000, scoped, tag = 'scratch operand']
  #allocation4 [shape = 'f32[4,256]{1,0:T(4,128)}', space=vmem, size = 0x1000, scoped, tag = 'scratch operand']
  #allocation5 [shape = 'f32[8,256]{1,0:T(8,128)}', space=vmem, size = 0x2000, scoped, tag = 'scratch operand']
  #allocation17 [shape = 's32[]', space=sflag, size = 0x4, offset = 0, fixed_abs, tag = 'sflag constant byte address 0x0 - dummy sync flag']
  #allocation18 [shape = 's32[]', space=sflag, size = 0x4, offset = 0, fixed_abs, tag = 'sflag constant byte address 0x0 - dummy sync flag']
  #allocation19 [shape = 'u32[]', space=smem, size = 0x4, offset = 0x44, fixed_abs, tag = 'smem constant byte address 0x44 - assertion arg 0']
  #allocation20 [shape = 'u32[]', space=smem, size = 0x4, offset = 0x48, fixed_abs, tag = 'smem constant byte address 0x48 - assertion arg 1']
  #allocation22 [shape = 's32[]', space=sflag, size = 0x4, offset = 0, fixed_abs, tag = 'sflag constant byte address 0x0 - dummy sync flag']
  %s0 = inlined_call_operand.hbm [shape: s32[2], index: 0, kind: input, shape index: {}]
  %s1 = inlined_call_operand.hbm [shape: s32[2], index: 1, kind: input, shape index: {}]
  %s2 = inlined_call_operand.vmem [shape: s32[1,1,256], index: 2, kind: input, shape index: {}]
  %s3 = inlined_call_operand.hbm [shape: s32[1,1,256], index: 3, kind: input, shape index: {}]
  %s4 = inlined_call_operand.hbm [shape: f32[2,4,256], index: 4, kind: input, shape index: {}]
  %s5 = inlined_call_operand.vmem [shape: f32[2,8,64], index: 5, kind: input, shape index: {}]
  %s6 = inlined_call_operand.hbm [shape: f32[1,4,256], index: 6, kind: output, shape index: {0}]
  %s7 = inlined_call_operand.hbm [shape: f32[1,8,256], index: 7, kind: output, shape index: {1}]
  %8 = xla_tuple %s6, %s7
  %s9 = sld [smem:[#allocation0]]
  $region106: #{tpu_custom_call.1} parent=0
    _
  %s11 = ssub.s32 1, %s9
  %s12 = scalar_select 0, %s11, %s9
  $region1: #{tpu_custom_call.1} parent=0
    #allocation6 [shape = 'u8[512]{0}', space=smem, size = 0x200, scoped, tag = 'input window, operand 0, single buffered']
    #allocation7 [shape = 's32[1]{0}', space=sflag, size = 0x4, scoped, tag = 'scoped memory for tpu_custom_call.1']
    #allocation8 [shape = 's32[1]{0}', space=sflag, size = 0x4, scoped, tag = 'scoped memory for tpu_custom_call.1']
    #allocation9 [shape = 's32[1]{0}', space=sflag, size = 0x4, scoped, tag = 'scoped memory for tpu_custom_call.1']
    #allocation10 [shape = 'u8[512]{0}', space=smem, size = 0x200, scoped, tag = 'input window, operand 1, single buffered']
    #allocation11 [shape = 's32[1]{0}', space=sflag, size = 0x4, scoped, tag = 'scoped memory for tpu_custom_call.1']
    #allocation12 [shape = 'u8[1024]{0}', space=vmem, size = 0x400, scoped, tag = 'input window, operand 3, single buffered']
    #allocation13 [shape = 'u8[4096]{0}', space=vmem, size = 0x1000, scoped, tag = 'output window, operand 0, single buffered']
    #allocation14 [shape = 'u8[8192]{0}', space=vmem, size = 0x2000, scoped, tag = 'output window, operand 1, single buffered']
    #allocation15 [shape = 's32[1]{0}', space=sflag, size = 0x4, scoped, tag = 'scoped memory for tpu_custom_call.1']
    %13 = vsyncpa [#allocation9], 0
    %14 = vsyncpa [#allocation11], 0
    %15 = vsyncpa [#allocation7], 0
    %16 = vsyncpa [#allocation8], 0
    %17 = vsyncpa [#allocation15], 0
    // Predicated region
    $region2: #{tpu_custom_call.1} parent=1 // pred_check
      _
    $region3: #{tpu_custom_call.1} parent=1 // pred_check_branch
      %19 = sbr.rel (0) target = $region5
    $region4: #{tpu_custom_call.1} parent=1 // pred_region
      %s21 = ssub.s32 16, 16
      %22 = vsyncadd [#allocation9], %s21
      %25 = dma.hbm_to_smem %s0, 16, [#allocation6], [#allocation9]
    $region5: #{tpu_custom_call.1} parent=1 // pred_fallthru
      _
    // Predicated region
    $region6: #{tpu_custom_call.1} parent=1 // pred_check
      _
    $region7: #{tpu_custom_call.1} parent=1 // pred_check_branch
      %27 = sbr.rel (0) target = $region9
    $region8: #{tpu_custom_call.1} parent=1 // pred_region
      %s29 = ssub.s32 16, 16
      %30 = vsyncadd [#allocation11], %s29
      %33 = dma.hbm_to_smem %s1, 16, [#allocation10], [#allocation11]
    $region9: #{tpu_custom_call.1} parent=1 // pred_fallthru
      _
    // Predicated region
    $region10: #{tpu_custom_call.1} parent=1 // pred_check
      _
    $region11: #{tpu_custom_call.1} parent=1 // pred_check_branch
      %35 = sbr.rel (0) target = $region13
    $region12: #{tpu_custom_call.1} parent=1 // pred_region
      _
    $region13: #{tpu_custom_call.1} parent=1 // pred_fallthru
      _
    // Predicated region
    $region14: #{tpu_custom_call.1} parent=1 // pred_check
      _
    $region15: #{tpu_custom_call.1} parent=1 // pred_check_branch
      %37 = sbr.rel (0) target = $region17
    $region16: #{tpu_custom_call.1} parent=1 // pred_region
      %s39 = ssub.s32 32, 32
      %40 = vsyncadd [#allocation7], %s39
      %s42 = sshll.u32 [#allocation12], 4
      %s43 = int_to_ptr.vmem [resolvable:$true] %s42
      %45 = dma.hbm_to_vmem [thread:$0]  %s3, 32, %s43, [#allocation7]
    $region17: #{tpu_custom_call.1} parent=1 // pred_fallthru
      _
    // Predicated region
    $region18: #{tpu_custom_call.1} parent=1 // pred_check
      _
    $region19: #{tpu_custom_call.1} parent=1 // pred_check_branch
      %47 = sbr.rel (0) target = $region21
    $region20: #{tpu_custom_call.1} parent=1 // pred_region
      %48 = dma.done [#allocation9], 16
    $region21: #{tpu_custom_call.1} parent=1 // pred_fallthru
      _
    // Predicated region
    $region22: #{tpu_custom_call.1} parent=1 // pred_check
      _
    $region23: #{tpu_custom_call.1} parent=1 // pred_check_branch
      %50 = sbr.rel (0) target = $region25
    $region24: #{tpu_custom_call.1} parent=1 // pred_region
      %51 = dma.done [#allocation11], 16
    $region25: #{tpu_custom_call.1} parent=1 // pred_fallthru
      _
    // Predicated region
    $region26: #{tpu_custom_call.1} parent=1 // pred_check
      _
    $region27: #{tpu_custom_call.1} parent=1 // pred_check_branch
      %53 = sbr.rel (0) target = $region29
    $region28: #{tpu_custom_call.1} parent=1 // pred_region
      %54 = dma.done [#allocation7], 32
    $region29: #{tpu_custom_call.1} parent=1 // pred_fallthru
      _
    %55 = sfence
    %p56 = scmp.eq.s32.totalorder 0, 0
    // Predicated region
    $region30: #{tpu_custom_call.1} parent=1 // pred_check
      %p57 = pneg %p56
    $region31: #{tpu_custom_call.1} parent=1 // pred_check_branch
      %59 = sbr.rel (%p57) target = $region33
    $region32: #{tpu_custom_call.1} parent=1 // pred_region
      $region34: #{tpu_custom_call.1} parent=32
        #allocation16 [shape = 's32[1]{0}', space=sflag, size = 0x4, scoped, tag = 'scoped memory for tpu_custom_call.1']
        // Predicated region
        $region35: #{tpu_custom_call.1} parent=34 // pred_check
          _
        $region36: #{tpu_custom_call.1} parent=34 // pred_check_branch
          %61 = sbr.rel target = $region38
        $region37: #{tpu_custom_call.1} parent=34 // pred_region
          %62 = sst [smem:[#allocation19]] [#allocation18]
          %63 = sst [smem:[#allocation20]] [#allocation17]
        $region38: #{tpu_custom_call.1} parent=34 // pred_fallthru
          _
        %65 = shalt.err (0)
        %s67 = sshll.u32 [#allocation2], 4
        %s68 = int_to_ptr.vmem [resolvable:$true] %s67
        %70 = dma.hbm_to_vmem [thread:$0]  %s4, 256, %s68, [#allocation16]
        %s71 = smul.u32 4, 2
        %s72 = smul.u32 %s71, 1
        %s73 = smul.u32 %s72, 2
        %s74 = sshll.u32 %s73, 4
        %75 = dma.done [#allocation16], %s74
      $region39: #{tpu_custom_call.1} parent=32
        #allocation21 [shape = 's32[1]{0}', space=sflag, size = 0x4, scoped, tag = 'scoped memory for tpu_custom_call.1']
        %p77 = scmp.lt.u32.totalorder 16, 8
        %p78 = pneg %p77
        // Predicated region
        $region40: #{tpu_custom_call.1} parent=39 // pred_check
          _
        $region41: #{tpu_custom_call.1} parent=39 // pred_check_branch
          %80 = sbr.rel (%p77) target = $region43
        $region42: #{tpu_custom_call.1} parent=39 // pred_region
          %s95 = sand.u32 16, 7
          %p96 = scmp.eq.s32.totalorder %s95, 0
          // Predicated region
          $region55: #{tpu_custom_call.1} parent=42 // pred_check
            %p97 = pneg %p96
          $region56: #{tpu_custom_call.1} parent=42 // pred_check_branch
            %99 = sbr.rel (%p97) target = $region58
          $region57: #{tpu_custom_call.1} parent=42 // pred_region
            loop: start=0, step=1, limit=1
            $region59: #{tpu_custom_call.1} parent=57 // loop_pre_header
              _
            $region60: #{tpu_custom_call.1} parent=57 // loop_header
              %s101 = sphi 0, %s105
              %p102 = scmp.ge.s32.totalorder %s101, 1
              %s106 = sphi %s5, %s5
              %s107 = sphi [#allocation3], [#allocation3]
            $region61: #{tpu_custom_call.1} parent=57 // loop_header_branch
              %104 = sbr.rel (%p102) target = $region65
            $region62: #{tpu_custom_call.1} parent=57 // loop_body
              %v108 = vld [vmem:[%s106] sm:$0xff]
              %109 = vst [vmem:[%s107] sm:$0xff] %v108
              %v110 = vld [vmem:[%s106 + $0x8] sm:$0xff]
              %111 = vst [vmem:[%s107 + $0x8] sm:$0xff] %v110
            $region63: #{tpu_custom_call.1} parent=57 // loop_footer
              %s105 = sadd.s32 1, %s101
            $region64: #{tpu_custom_call.1} parent=57 // loop_footer_branch
              %100 = sbr.rel target = $region60
            $region65: #{tpu_custom_call.1} parent=57 // loop_exit
              _
          $region58: #{tpu_custom_call.1} parent=42 // pred_fallthru
            _
          %p112 = pneg %p96
          // Predicated region
          $region66: #{tpu_custom_call.1} parent=42 // pred_check
            _
          $region67: #{tpu_custom_call.1} parent=42 // pred_check_branch
            %114 = sbr.rel (%p96) target = $region69
          $region68: #{tpu_custom_call.1} parent=42 // pred_region
            %s115 = sand.u32 16, 7
          $region69: #{tpu_custom_call.1} parent=42 // pred_fallthru
            _
        $region43: #{tpu_custom_call.1} parent=39 // pred_fallthru
          _
        // Predicated region
        $region44: #{tpu_custom_call.1} parent=39 // pred_check
          %p81 = pneg %p77
        $region45: #{tpu_custom_call.1} parent=39 // pred_check_branch
          %83 = sbr.rel (%p81) target = $region47
        $region46: #{tpu_custom_call.1} parent=39 // pred_region
          %s84 = sshllo.u32 0, 16
          loop: start=0, step=1, limit=1
          $region48: #{tpu_custom_call.1} parent=46 // loop_pre_header
            _
          $region49: #{tpu_custom_call.1} parent=46 // loop_header
            %s86 = sphi 0, %s90
            %p87 = scmp.ge.s32.totalorder %s86, 1
            %s91 = sphi %s5, %s5
            %s92 = sphi [#allocation3], [#allocation3]
          $region50: #{tpu_custom_call.1} parent=46 // loop_header_branch
            %89 = sbr.rel (%p87) target = $region54
          $region51: #{tpu_custom_call.1} parent=46 // loop_body
            %v93 = vld [vmem:[%s91] sm:%s84]
            %94 = vst [vmem:[%s92] sm:%s84] %v93
          $region52: #{tpu_custom_call.1} parent=46 // loop_footer
            %s90 = sadd.s32 1, %s86
          $region53: #{tpu_custom_call.1} parent=46 // loop_footer_branch
            %85 = sbr.rel target = $region49
          $region54: #{tpu_custom_call.1} parent=46 // loop_exit
            _
        $region47: #{tpu_custom_call.1} parent=39 // pred_fallthru
          _
        // Predicated region
        $region70: #{tpu_custom_call.1} parent=39 // pred_check
          _
        $region71: #{tpu_custom_call.1} parent=39 // pred_check_branch
          %118 = sbr.rel (0) target = $region73
        $region72: #{tpu_custom_call.1} parent=39 // pred_region
          %119 = vsyncadd [#allocation21], 256
        $region73: #{tpu_custom_call.1} parent=39 // pred_fallthru
          _
        %s120 = smul.u32 2, 8
        %s121 = smul.u32 %s120, 1
        %s122 = sshll.u32 %s121, 4
        %123 = dma.done [#allocation21], %s122
    $region33: #{tpu_custom_call.1} parent=1 // pred_fallthru
      _
    %v124 = vld [vmem:[%s2] sm:$0x3]
    %125 = vst [vmem:[#allocation4] sm:$0xff] 0.0
    %s126 = smul.u32 0, 2
    %s127 = sld [smem:[#allocation6 + %s126]]
    %p128 = scmp.gt.s32.totalorder %s127, 0
    // Predicated region
    $region74: #{tpu_custom_call.1} parent=1 // pred_check
      %p129 = pneg %p128
    $region75: #{tpu_custom_call.1} parent=1 // pred_check_branch
      %131 = sbr.rel (%p129) target = $region77
    $region76: #{tpu_custom_call.1} parent=1 // pred_region
      %v132 = vlaneseq
      %v133 = vshrl.u32 %v132, 7
      %v134 = vadd.s32 %v133, 8
      %v135 = vadd.s32 %v133, 16
      %v136 = vadd.s32 %v133, 24
      %v137 = vadd.s32 %v133, 32
      %v138 = vadd.s32 %v133, 40
      %v139 = vadd.s32 %v133, 48
      %v140 = vadd.s32 %v133, 56
      %v141 = vadd.s32 %v133, 64
      %v142 = vadd.s32 %v133, 72
      %v143 = vadd.s32 %v133, 80
      %v144 = vadd.s32 %v133, 88
      %v145 = vadd.s32 %v133, 96
      %v146 = vadd.s32 %v133, 104
      %v147 = vadd.s32 %v133, 112
      %v148 = vadd.s32 %v133, 120
      %v149 = vadd.s32 %v133, 128
      %v150 = vadd.s32 %v133, 136
      %v151 = vadd.s32 %v133, 144
      %v152 = vadd.s32 %v133, 152
      %v153 = vadd.s32 %v133, 160
      %v154 = vadd.s32 %v133, 168
      %v155 = vadd.s32 %v133, 176
      %v156 = vadd.s32 %v133, 184
      %v157 = vadd.s32 %v133, 192
      %v158 = vadd.s32 %v133, 200
      %v159 = vadd.s32 %v133, 208
      %v160 = vadd.s32 %v133, 216
      %v161 = vadd.s32 %v133, 224
      %v162 = vadd.s32 %v133, 232
      %v163 = vadd.s32 %v133, 240
      %v164 = vadd.s32 %v133, 248
      %v165 = vlaneseq
      %v166 = vshrl.u32 %v165, 7
      %v167 = vsub.s32 0, %v166
      %v168 = vrot.slane %v124, %v167
      %v169 = vlaneseq
      %v170 = vshrl.u32 %v169, 7
      %v171 = vsub.s32 1, %v170
      %v172 = vrot.slane %v124, %v171
      %vm173 = vcmp.eq.s32.totalorder %v133, %v168
      %vm174 = vcmp.eq.s32.totalorder %v133, %v172
      %vm175 = vcmp.eq.s32.totalorder %v134, %v168
      %vm176 = vcmp.eq.s32.totalorder %v134, %v172
      %vm177 = vcmp.eq.s32.totalorder %v135, %v168
      %vm178 = vcmp.eq.s32.totalorder %v135, %v172
      %vm179 = vcmp.eq.s32.totalorder %v136, %v168
      %vm180 = vcmp.eq.s32.totalorder %v136, %v172
      %vm181 = vcmp.eq.s32.totalorder %v137, %v168
      %vm182 = vcmp.eq.s32.totalorder %v137, %v172
      %vm183 = vcmp.eq.s32.totalorder %v138, %v168
      %vm184 = vcmp.eq.s32.totalorder %v138, %v172
      %vm185 = vcmp.eq.s32.totalorder %v139, %v168
      %vm186 = vcmp.eq.s32.totalorder %v139, %v172
      %vm187 = vcmp.eq.s32.totalorder %v140, %v168
      %vm188 = vcmp.eq.s32.totalorder %v140, %v172
      %vm189 = vcmp.eq.s32.totalorder %v141, %v168
      %vm190 = vcmp.eq.s32.totalorder %v141, %v172
      %vm191 = vcmp.eq.s32.totalorder %v142, %v168
      %vm192 = vcmp.eq.s32.totalorder %v142, %v172
      %vm193 = vcmp.eq.s32.totalorder %v143, %v168
      %vm194 = vcmp.eq.s32.totalorder %v143, %v172
      %vm195 = vcmp.eq.s32.totalorder %v144, %v168
      %vm196 = vcmp.eq.s32.totalorder %v144, %v172
      %vm197 = vcmp.eq.s32.totalorder %v145, %v168
      %vm198 = vcmp.eq.s32.totalorder %v145, %v172
      %vm199 = vcmp.eq.s32.totalorder %v146, %v168
      %vm200 = vcmp.eq.s32.totalorder %v146, %v172
      %vm201 = vcmp.eq.s32.totalorder %v147, %v168
      %vm202 = vcmp.eq.s32.totalorder %v147, %v172
      %vm203 = vcmp.eq.s32.totalorder %v148, %v168
      %vm204 = vcmp.eq.s32.totalorder %v148, %v172
      %vm205 = vcmp.eq.s32.totalorder %v149, %v168
      %vm206 = vcmp.eq.s32.totalorder %v149, %v172
      %vm207 = vcmp.eq.s32.totalorder %v150, %v168
      %vm208 = vcmp.eq.s32.totalorder %v150, %v172
      %vm209 = vcmp.eq.s32.totalorder %v151, %v168
      %vm210 = vcmp.eq.s32.totalorder %v151, %v172
      %vm211 = vcmp.eq.s32.totalorder %v152, %v168
      %vm212 = vcmp.eq.s32.totalorder %v152, %v172
      %vm213 = vcmp.eq.s32.totalorder %v153, %v168
      %vm214 = vcmp.eq.s32.totalorder %v153, %v172
      %vm215 = vcmp.eq.s32.totalorder %v154, %v168
      %vm216 = vcmp.eq.s32.totalorder %v154, %v172
      %vm217 = vcmp.eq.s32.totalorder %v155, %v168
      %vm218 = vcmp.eq.s32.totalorder %v155, %v172
      %vm219 = vcmp.eq.s32.totalorder %v156, %v168
      %vm220 = vcmp.eq.s32.totalorder %v156, %v172
      %vm221 = vcmp.eq.s32.totalorder %v157, %v168
      %vm222 = vcmp.eq.s32.totalorder %v157, %v172
      %vm223 = vcmp.eq.s32.totalorder %v158, %v168
      %vm224 = vcmp.eq.s32.totalorder %v158, %v172
      %vm225 = vcmp.eq.s32.totalorder %v159, %v168
      %vm226 = vcmp.eq.s32.totalorder %v159, %v172
      %vm227 = vcmp.eq.s32.totalorder %v160, %v168
      %vm228 = vcmp.eq.s32.totalorder %v160, %v172
      %vm229 = vcmp.eq.s32.totalorder %v161, %v168
      %vm230 = vcmp.eq.s32.totalorder %v161, %v172
      %vm231 = vcmp.eq.s32.totalorder %v162, %v168
      %vm232 = vcmp.eq.s32.totalorder %v162, %v172
      %vm233 = vcmp.eq.s32.totalorder %v163, %v168
      %vm234 = vcmp.eq.s32.totalorder %v163, %v172
      %vm235 = vcmp.eq.s32.totalorder %v164, %v168
      %vm236 = vcmp.eq.s32.totalorder %v164, %v172
      %v237 = vsel %vm173, 1, 0
      %v238 = vsel %vm174, 1, 0
      %v239 = vsel %vm175, 1, 0
      %v240 = vsel %vm176, 1, 0
      %v241 = vsel %vm177, 1, 0
      %v242 = vsel %vm178, 1, 0
      %v243 = vsel %vm179, 1, 0
      %v244 = vsel %vm180, 1, 0
      %v245 = vsel %vm181, 1, 0
      %v246 = vsel %vm182, 1, 0
      %v247 = vsel %vm183, 1, 0
      %v248 = vsel %vm184, 1, 0
      %v249 = vsel %vm185, 1, 0
      %v250 = vsel %vm186, 1, 0
      %v251 = vsel %vm187, 1, 0
      %v252 = vsel %vm188, 1, 0
      %v253 = vsel %vm189, 1, 0
      %v254 = vsel %vm190, 1, 0
      %v255 = vsel %vm191, 1, 0
      %v256 = vsel %vm192, 1, 0
      %v257 = vsel %vm193, 1, 0
      %v258 = vsel %vm194, 1, 0
      %v259 = vsel %vm195, 1, 0
      %v260 = vsel %vm196, 1, 0
      %v261 = vsel %vm197, 1, 0
      %v262 = vsel %vm198, 1, 0
      %v263 = vsel %vm199, 1, 0
      %v264 = vsel %vm200, 1, 0
      %v265 = vsel %vm201, 1, 0
      %v266 = vsel %vm202, 1, 0
      %v267 = vsel %vm203, 1, 0
      %v268 = vsel %vm204, 1, 0
      %v269 = vsel %vm205, 1, 0
      %v270 = vsel %vm206, 1, 0
      %v271 = vsel %vm207, 1, 0
      %v272 = vsel %vm208, 1, 0
      %v273 = vsel %vm209, 1, 0
      %v274 = vsel %vm210, 1, 0
      %v275 = vsel %vm211, 1, 0
      %v276 = vsel %vm212, 1, 0
      %v277 = vsel %vm213, 1, 0
      %v278 = vsel %vm214, 1, 0
      %v279 = vsel %vm215, 1, 0
      %v280 = vsel %vm216, 1, 0
      %v281 = vsel %vm217, 1, 0
      %v282 = vsel %vm218, 1, 0
      %v283 = vsel %vm219, 1, 0
      %v284 = vsel %vm220, 1, 0
      %v285 = vsel %vm221, 1, 0
      %v286 = vsel %vm222, 1, 0
      %v287 = vsel %vm223, 1, 0
      %v288 = vsel %vm224, 1, 0
      %v289 = vsel %vm225, 1, 0
      %v290 = vsel %vm226, 1, 0
      %v291 = vsel %vm227, 1, 0
      %v292 = vsel %vm228, 1, 0
      %v293 = vsel %vm229, 1, 0
      %v294 = vsel %vm230, 1, 0
      %v295 = vsel %vm231, 1, 0
      %v296 = vsel %vm232, 1, 0
      %v297 = vsel %vm233, 1, 0
      %v298 = vsel %vm234, 1, 0
      %v299 = vsel %vm235, 1, 0
      %v300 = vsel %vm236, 1, 0
      %v301 = vcvt.s32.f32 %v237
      %v302 = vcvt.s32.f32 %v238
      %v303 = vcvt.s32.f32 %v239
      %v304 = vcvt.s32.f32 %v240
      %v305 = vcvt.s32.f32 %v241
      %v306 = vcvt.s32.f32 %v242
      %v307 = vcvt.s32.f32 %v243
      %v308 = vcvt.s32.f32 %v244
      %v309 = vcvt.s32.f32 %v245
      %v310 = vcvt.s32.f32 %v246
      %v311 = vcvt.s32.f32 %v247
      %v312 = vcvt.s32.f32 %v248
      %v313 = vcvt.s32.f32 %v249
      %v314 = vcvt.s32.f32 %v250
      %v315 = vcvt.s32.f32 %v251
      %v316 = vcvt.s32.f32 %v252
      %v317 = vcvt.s32.f32 %v253
      %v318 = vcvt.s32.f32 %v254
      %v319 = vcvt.s32.f32 %v255
      %v320 = vcvt.s32.f32 %v256
      %v321 = vcvt.s32.f32 %v257
      %v322 = vcvt.s32.f32 %v258
      %v323 = vcvt.s32.f32 %v259
      %v324 = vcvt.s32.f32 %v260
      %v325 = vcvt.s32.f32 %v261
      %v326 = vcvt.s32.f32 %v262
      %v327 = vcvt.s32.f32 %v263
      %v328 = vcvt.s32.f32 %v264
      %v329 = vcvt.s32.f32 %v265
      %v330 = vcvt.s32.f32 %v266
      %v331 = vcvt.s32.f32 %v267
      %v332 = vcvt.s32.f32 %v268
      %v333 = vcvt.s32.f32 %v269
      %v334 = vcvt.s32.f32 %v270
      %v335 = vcvt.s32.f32 %v271
      %v336 = vcvt.s32.f32 %v272
      %v337 = vcvt.s32.f32 %v273
      %v338 = vcvt.s32.f32 %v274
      %v339 = vcvt.s32.f32 %v275
      %v340 = vcvt.s32.f32 %v276
      %v341 = vcvt.s32.f32 %v277
      %v342 = vcvt.s32.f32 %v278
      %v343 = vcvt.s32.f32 %v279
      %v344 = vcvt.s32.f32 %v280
      %v345 = vcvt.s32.f32 %v281
      %v346 = vcvt.s32.f32 %v282
      %v347 = vcvt.s32.f32 %v283
      %v348 = vcvt.s32.f32 %v284
      %v349 = vcvt.s32.f32 %v285
      %v350 = vcvt.s32.f32 %v286
      %v351 = vcvt.s32.f32 %v287
      %v352 = vcvt.s32.f32 %v288
      %v353 = vcvt.s32.f32 %v289
      %v354 = vcvt.s32.f32 %v290
      %v355 = vcvt.s32.f32 %v291
      %v356 = vcvt.s32.f32 %v292
      %v357 = vcvt.s32.f32 %v293
      %v358 = vcvt.s32.f32 %v294
      %v359 = vcvt.s32.f32 %v295
      %v360 = vcvt.s32.f32 %v296
      %v361 = vcvt.s32.f32 %v297
      %v362 = vcvt.s32.f32 %v298
      %v363 = vcvt.s32.f32 %v299
      %v364 = vcvt.s32.f32 %v300
      %v365 = vld [vmem:[#allocation2] sm:$0xff]
      %v366 = vld [vmem:[#allocation4] sm:$0xff]
      %v368 = vcombine.high %v365, %v365
      %v370 = vand.u32 %v302, 4294901760
      %371 = vmatprep.subr.mxu0 %v370
      %v372 = vand.u32 %v301, 4294901760
      %373 = vmatpush1.msra.mxu0 %v372
      %v374 = vand.u32 %v304, 4294901760
      %375 = vmatprep.subr.mxu0 %v374
      %v376 = vand.u32 %v303, 4294901760
      %377 = vmatpush1.msra.mxu0 %v376
      %v378 = vand.u32 %v306, 4294901760
      %379 = vmatprep.subr.mxu0 %v378
      %v380 = vand.u32 %v305, 4294901760
      %381 = vmatpush1.msra.mxu0 %v380
      %v382 = vand.u32 %v308, 4294901760
      %383 = vmatprep.subr.mxu0 %v382
      %v384 = vand.u32 %v307, 4294901760
      %385 = vmatpush1.msra.mxu0 %v384
      %v386 = vand.u32 %v310, 4294901760
      %387 = vmatprep.subr.mxu0 %v386
      %v388 = vand.u32 %v309, 4294901760
      %389 = vmatpush1.msra.mxu0 %v388
      %v390 = vand.u32 %v312, 4294901760
      %391 = vmatprep.subr.mxu0 %v390
      %v392 = vand.u32 %v311, 4294901760
      %393 = vmatpush1.msra.mxu0 %v392
      %v394 = vand.u32 %v314, 4294901760
      %395 = vmatprep.subr.mxu0 %v394
      %v396 = vand.u32 %v313, 4294901760
      %397 = vmatpush1.msra.mxu0 %v396
      %v398 = vand.u32 %v316, 4294901760
      %399 = vmatprep.subr.mxu0 %v398
      %v400 = vand.u32 %v315, 4294901760
      %401 = vmatpush1.msra.mxu0 %v400
      %v402 = vand.u32 %v318, 4294901760
      %403 = vmatprep.subr.mxu0 %v402
      %v404 = vand.u32 %v317, 4294901760
      %405 = vmatpush1.msra.mxu0 %v404
      %v406 = vand.u32 %v320, 4294901760
      %407 = vmatprep.subr.mxu0 %v406
      %v408 = vand.u32 %v319, 4294901760
      %409 = vmatpush1.msra.mxu0 %v408
      %v410 = vand.u32 %v322, 4294901760
      %411 = vmatprep.subr.mxu0 %v410
      %v412 = vand.u32 %v321, 4294901760
      %413 = vmatpush1.msra.mxu0 %v412
      %v414 = vand.u32 %v324, 4294901760
      %415 = vmatprep.subr.mxu0 %v414
      %v416 = vand.u32 %v323, 4294901760
      %417 = vmatpush1.msra.mxu0 %v416
      %v418 = vand.u32 %v326, 4294901760
      %419 = vmatprep.subr.mxu0 %v418
      %v420 = vand.u32 %v325, 4294901760
      %421 = vmatpush1.msra.mxu0 %v420
      %v422 = vand.u32 %v328, 4294901760
      %423 = vmatprep.subr.mxu0 %v422
      %v424 = vand.u32 %v327, 4294901760
      %425 = vmatpush1.msra.mxu0 %v424
      %v426 = vand.u32 %v330, 4294901760
      %427 = vmatprep.subr.mxu0 %v426
      %v428 = vand.u32 %v329, 4294901760
      %429 = vmatpush1.msra.mxu0 %v428
      %v430 = vand.u32 %v332, 4294901760
      %431 = vmatprep.subr.mxu0 %v430
      %v432 = vand.u32 %v331, 4294901760
      %433 = vmatpush1.msra.mxu0 %v432
      %v434 = vand.u32 %v334, 4294901760
      %435 = vmatprep.subr.mxu0 %v434
      %v436 = vand.u32 %v333, 4294901760
      %437 = vmatpush1.msra.mxu0 %v436
      %v438 = vand.u32 %v336, 4294901760
      %439 = vmatprep.subr.mxu0 %v438
      %v440 = vand.u32 %v335, 4294901760
      %441 = vmatpush1.msra.mxu0 %v440
      %v442 = vand.u32 %v338, 4294901760
      %443 = vmatprep.subr.mxu0 %v442
      %v444 = vand.u32 %v337, 4294901760
      %445 = vmatpush1.msra.mxu0 %v444
      %v446 = vand.u32 %v340, 4294901760
      %447 = vmatprep.subr.mxu0 %v446
      %v448 = vand.u32 %v339, 4294901760
      %449 = vmatpush1.msra.mxu0 %v448
      %v450 = vand.u32 %v342, 4294901760
      %451 = vmatprep.subr.mxu0 %v450
      %v452 = vand.u32 %v341, 4294901760
      %453 = vmatpush1.msra.mxu0 %v452
      %v454 = vand.u32 %v344, 4294901760
      %455 = vmatprep.subr.mxu0 %v454
      %v456 = vand.u32 %v343, 4294901760
      %457 = vmatpush1.msra.mxu0 %v456
      %v458 = vand.u32 %v346, 4294901760
      %459 = vmatprep.subr.mxu0 %v458
      %v460 = vand.u32 %v345, 4294901760
      %461 = vmatpush1.msra.mxu0 %v460
      %v462 = vand.u32 %v348, 4294901760
      %463 = vmatprep.subr.mxu0 %v462
      %v464 = vand.u32 %v347, 4294901760
      %465 = vmatpush1.msra.mxu0 %v464
      %v466 = vand.u32 %v350, 4294901760
      %467 = vmatprep.subr.mxu0 %v466
      %v468 = vand.u32 %v349, 4294901760
      %469 = vmatpush1.msra.mxu0 %v468
      %v470 = vand.u32 %v352, 4294901760
      %471 = vmatprep.subr.mxu0 %v470
      %v472 = vand.u32 %v351, 4294901760
      %473 = vmatpush1.msra.mxu0 %v472
      %v474 = vand.u32 %v354, 4294901760
      %475 = vmatprep.subr.mxu0 %v474
      %v476 = vand.u32 %v353, 4294901760
      %477 = vmatpush1.msra.mxu0 %v476
      %v478 = vand.u32 %v356, 4294901760
      %479 = vmatprep.subr.mxu0 %v478
      %v480 = vand.u32 %v355, 4294901760
      %481 = vmatpush1.msra.mxu0 %v480
      %v482 = vand.u32 %v358, 4294901760
      %483 = vmatprep.subr.mxu0 %v482
      %v484 = vand.u32 %v357, 4294901760
      %485 = vmatpush1.msra.mxu0 %v484
      %v486 = vand.u32 %v360, 4294901760
      %487 = vmatprep.subr.mxu0 %v486
      %v488 = vand.u32 %v359, 4294901760
      %489 = vmatpush1.msra.mxu0 %v488
      %v490 = vand.u32 %v362, 4294901760
      %491 = vmatprep.subr.mxu0 %v490
      %v492 = vand.u32 %v361, 4294901760
      %493 = vmatpush1.msra.mxu0 %v492
      %v494 = vand.u32 %v364, 4294901760
      %495 = vmatprep.subr.mxu0 %v494
      %v496 = vand.u32 %v363, 4294901760
      %497 = vmatpush1.msra.mxu0 %v496
      %v498 = vand.u32 %v368, 4294901760
      %v499 = vsub.f32 %v368, %v498
      %v500 = vand.u32 %v499, 4294901760
      %v501 = vsub.f32 %v499, %v500
      %v502 = vand.u32 %v501, 4294901760
      %503 = vmatprep.mubr.f32.mxu0 %v502
      %v504 = vand.u32 %v365, 4294901760
      %v505 = vsub.f32 %v365, %v504
      %v506 = vand.u32 %v505, 4294901760
      %v507 = vsub.f32 %v505, %v506
      %v508 = vand.u32 %v507, 4294901760
      %509 = vmatmul.mubr.f32.gmra.mrb[0].mxu0 %v508
      %v510 = vpop.f32.mrb[0].mxu0
      %v511 = vadd.f32 0.0, %v510
      %v512 = vpop.f32.mrb[0].mxu0
      %v513 = vadd.f32 0.0, %v512
      %514 = vdwg.mxu0
      %v515 = vand.u32 %v302, 4294901760
      %v516 = vsub.f32 %v302, %v515
      %v517 = vand.u32 %v516, 4294901760
      %v518 = vsub.f32 %v516, %v517
      %v519 = vand.u32 %v518, 4294901760
      %520 = vmatprep.subr.mxu0 %v519
      %v521 = vand.u32 %v301, 4294901760
      %v522 = vsub.f32 %v301, %v521
      %v523 = vand.u32 %v522, 4294901760
      %v524 = vsub.f32 %v522, %v523
      %v525 = vand.u32 %v524, 4294901760
      %526 = vmatpush1.msra.mxu0 %v525
      %v527 = vand.u32 %v304, 4294901760
      %v528 = vsub.f32 %v304, %v527
      %v529 = vand.u32 %v528, 4294901760
      %v530 = vsub.f32 %v528, %v529
      %v531 = vand.u32 %v530, 4294901760
      %532 = vmatprep.subr.mxu0 %v531
      %v533 = vand.u32 %v303, 4294901760
      %v534 = vsub.f32 %v303, %v533
      %v535 = vand.u32 %v534, 4294901760
      %v536 = vsub.f32 %v534, %v535
      %v537 = vand.u32 %v536, 4294901760
      %538 = vmatpush1.msra.mxu0 %v537
      %v539 = vand.u32 %v306, 4294901760
      %v540 = vsub.f32 %v306, %v539
      %v541 = vand.u32 %v540, 4294901760
      %v542 = vsub.f32 %v540, %v541
      %v543 = vand.u32 %v542, 4294901760
      %544 = vmatprep.subr.mxu0 %v543
      %v545 = vand.u32 %v305, 4294901760
      %v546 = vsub.f32 %v305, %v545
      %v547 = vand.u32 %v546, 4294901760
      %v548 = vsub.f32 %v546, %v547
      %v549 = vand.u32 %v548, 4294901760
      %550 = vmatpush1.msra.mxu0 %v549
      %v551 = vand.u32 %v308, 4294901760
      %v552 = vsub.f32 %v308, %v551
      %v553 = vand.u32 %v552, 4294901760
      %v554 = vsub.f32 %v552, %v553
      %v555 = vand.u32 %v554, 4294901760
      %556 = vmatprep.subr.mxu0 %v555
      %v557 = vand.u32 %v307, 4294901760
      %v558 = vsub.f32 %v307, %v557
      %v559 = vand.u32 %v558, 4294901760
      %v560 = vsub.f32 %v558, %v559
      %v561 = vand.u32 %v560, 4294901760
      %562 = vmatpush1.msra.mxu0 %v561
      %v563 = vand.u32 %v310, 4294901760
      %v564 = vsub.f32 %v310, %v563
      %v565 = vand.u32 %v564, 4294901760
      %v566 = vsub.f32 %v564, %v565
      %v567 = vand.u32 %v566, 4294901760
      %568 = vmatprep.subr.mxu0 %v567
      %v569 = vand.u32 %v309, 4294901760
      %v570 = vsub.f32 %v309, %v569
      %v571 = vand.u32 %v570, 4294901760
      %v572 = vsub.f32 %v570, %v571
      %v573 = vand.u32 %v572, 4294901760
      %574 = vmatpush1.msra.mxu0 %v573
      %v575 = vand.u32 %v312, 4294901760
      %v576 = vsub.f32 %v312, %v575
      %v577 = vand.u32 %v576, 4294901760
      %v578 = vsub.f32 %v576, %v577
      %v579 = vand.u32 %v578, 4294901760
      %580 = vmatprep.subr.mxu0 %v579
      %v581 = vand.u32 %v311, 4294901760
      %v582 = vsub.f32 %v311, %v581
      %v583 = vand.u32 %v582, 4294901760
      %v584 = vsub.f32 %v582, %v583
      %v585 = vand.u32 %v584, 4294901760
      %586 = vmatpush1.msra.mxu0 %v585
      %v587 = vand.u32 %v314, 4294901760
      %v588 = vsub.f32 %v314, %v587
      %v589 = vand.u32 %v588, 4294901760
      %v590 = vsub.f32 %v588, %v589
      %v591 = vand.u32 %v590, 4294901760
      %592 = vmatprep.subr.mxu0 %v591
      %v593 = vand.u32 %v313, 4294901760
      %v594 = vsub.f32 %v313, %v593
      %v595 = vand.u32 %v594, 4294901760
      %v596 = vsub.f32 %v594, %v595
      %v597 = vand.u32 %v596, 4294901760
      %598 = vmatpush1.msra.mxu0 %v597
      %v599 = vand.u32 %v316, 4294901760
      %v600 = vsub.f32 %v316, %v599
      %v601 = vand.u32 %v600, 4294901760
      %v602 = vsub.f32 %v600, %v601
      %v603 = vand.u32 %v602, 4294901760
      %604 = vmatprep.subr.mxu0 %v603
      %v605 = vand.u32 %v315, 4294901760
      %v606 = vsub.f32 %v315, %v605
      %v607 = vand.u32 %v606, 4294901760
      %v608 = vsub.f32 %v606, %v607
      %v609 = vand.u32 %v608, 4294901760
      %610 = vmatpush1.msra.mxu0 %v609
      %v611 = vand.u32 %v318, 4294901760
      %v612 = vsub.f32 %v318, %v611
      %v613 = vand.u32 %v612, 4294901760
      %v614 = vsub.f32 %v612, %v613
      %v615 = vand.u32 %v614, 4294901760
      %616 = vmatprep.subr.mxu0 %v615
      %v617 = vand.u32 %v317, 4294901760
      %v618 = vsub.f32 %v317, %v617
      %v619 = vand.u32 %v618, 4294901760
      %v620 = vsub.f32 %v618, %v619
      %v621 = vand.u32 %v620, 4294901760
      %622 = vmatpush1.msra.mxu0 %v621
      %v623 = vand.u32 %v320, 4294901760
      %v624 = vsub.f32 %v320, %v623
      %v625 = vand.u32 %v624, 4294901760
      %v626 = vsub.f32 %v624, %v625
      %v627 = vand.u32 %v626, 4294901760
      %628 = vmatprep.subr.mxu0 %v627
      %v629 = vand.u32 %v319, 4294901760
      %v630 = vsub.f32 %v319, %v629
      %v631 = vand.u32 %v630, 4294901760
      %v632 = vsub.f32 %v630, %v631
      %v633 = vand.u32 %v632, 4294901760
      %634 = vmatpush1.msra.mxu0 %v633
      %v635 = vand.u32 %v322, 4294901760
      %v636 = vsub.f32 %v322, %v635
      %v637 = vand.u32 %v636, 4294901760
      %v638 = vsub.f32 %v636, %v637
      %v639 = vand.u32 %v638, 4294901760
      %640 = vmatprep.subr.mxu0 %v639
      %v641 = vand.u32 %v321, 4294901760
      %v642 = vsub.f32 %v321, %v641
      %v643 = vand.u32 %v642, 4294901760
      %v644 = vsub.f32 %v642, %v643
      %v645 = vand.u32 %v644, 4294901760
      %646 = vmatpush1.msra.mxu0 %v645
      %v647 = vand.u32 %v324, 4294901760
      %v648 = vsub.f32 %v324, %v647
      %v649 = vand.u32 %v648, 4294901760
      %v650 = vsub.f32 %v648, %v649
      %v651 = vand.u32 %v650, 4294901760
      %652 = vmatprep.subr.mxu0 %v651
      %v653 = vand.u32 %v323, 4294901760
      %v654 = vsub.f32 %v323, %v653
      %v655 = vand.u32 %v654, 4294901760
      %v656 = vsub.f32 %v654, %v655
      %v657 = vand.u32 %v656, 4294901760
      %658 = vmatpush1.msra.mxu0 %v657
      %v659 = vand.u32 %v326, 4294901760
      %v660 = vsub.f32 %v326, %v659
      %v661 = vand.u32 %v660, 4294901760
      %v662 = vsub.f32 %v660, %v661
      %v663 = vand.u32 %v662, 4294901760
      %664 = vmatprep.subr.mxu0 %v663
      %v665 = vand.u32 %v325, 4294901760
      %v666 = vsub.f32 %v325, %v665
      %v667 = vand.u32 %v666, 4294901760
      %v668 = vsub.f32 %v666, %v667
      %v669 = vand.u32 %v668, 4294901760
      %670 = vmatpush1.msra.mxu0 %v669
      %v671 = vand.u32 %v328, 4294901760
      %v672 = vsub.f32 %v328, %v671
      %v673 = vand.u32 %v672, 4294901760
      %v674 = vsub.f32 %v672, %v673
      %v675 = vand.u32 %v674, 4294901760
      %676 = vmatprep.subr.mxu0 %v675
      %v677 = vand.u32 %v327, 4294901760
      %v678 = vsub.f32 %v327, %v677
      %v679 = vand.u32 %v678, 4294901760
      %v680 = vsub.f32 %v678, %v679
      %v681 = vand.u32 %v680, 4294901760
      %682 = vmatpush1.msra.mxu0 %v681
      %v683 = vand.u32 %v330, 4294901760
      %v684 = vsub.f32 %v330, %v683
      %v685 = vand.u32 %v684, 4294901760
      %v686 = vsub.f32 %v684, %v685
      %v687 = vand.u32 %v686, 4294901760
      %688 = vmatprep.subr.mxu0 %v687
      %v689 = vand.u32 %v329, 4294901760
      %v690 = vsub.f32 %v329, %v689
      %v691 = vand.u32 %v690, 4294901760
      %v692 = vsub.f32 %v690, %v691
      %v693 = vand.u32 %v692, 4294901760
      %694 = vmatpush1.msra.mxu0 %v693
      %v695 = vand.u32 %v332, 4294901760
      %v696 = vsub.f32 %v332, %v695
      %v697 = vand.u32 %v696, 4294901760
      %v698 = vsub.f32 %v696, %v697
      %v699 = vand.u32 %v698, 4294901760
      %700 = vmatprep.subr.mxu0 %v699
      %v701 = vand.u32 %v331, 4294901760
      %v702 = vsub.f32 %v331, %v701
      %v703 = vand.u32 %v702, 4294901760
      %v704 = vsub.f32 %v702, %v703
      %v705 = vand.u32 %v704, 4294901760
      %706 = vmatpush1.msra.mxu0 %v705
      %v707 = vand.u32 %v334, 4294901760
      %v708 = vsub.f32 %v334, %v707
      %v709 = vand.u32 %v708, 4294901760
      %v710 = vsub.f32 %v708, %v709
      %v711 = vand.u32 %v710, 4294901760
      %712 = vmatprep.subr.mxu0 %v711
      %v713 = vand.u32 %v333, 4294901760
      %v714 = vsub.f32 %v333, %v713
      %v715 = vand.u32 %v714, 4294901760
      %v716 = vsub.f32 %v714, %v715
      %v717 = vand.u32 %v716, 4294901760
      %718 = vmatpush1.msra.mxu0 %v717
      %v719 = vand.u32 %v336, 4294901760
      %v720 = vsub.f32 %v336, %v719
      %v721 = vand.u32 %v720, 4294901760
      %v722 = vsub.f32 %v720, %v721
      %v723 = vand.u32 %v722, 4294901760
      %724 = vmatprep.subr.mxu0 %v723
      %v725 = vand.u32 %v335, 4294901760
      %v726 = vsub.f32 %v335, %v725
      %v727 = vand.u32 %v726, 4294901760
      %v728 = vsub.f32 %v726, %v727
      %v729 = vand.u32 %v728, 4294901760
      %730 = vmatpush1.msra.mxu0 %v729
      %v731 = vand.u32 %v338, 4294901760
      %v732 = vsub.f32 %v338, %v731
      %v733 = vand.u32 %v732, 4294901760
      %v734 = vsub.f32 %v732, %v733
      %v735 = vand.u32 %v734, 4294901760
      %736 = vmatprep.subr.mxu0 %v735
      %v737 = vand.u32 %v337, 4294901760
      %v738 = vsub.f32 %v337, %v737
      %v739 = vand.u32 %v738, 4294901760
      %v740 = vsub.f32 %v738, %v739
      %v741 = vand.u32 %v740, 4294901760
      %742 = vmatpush1.msra.mxu0 %v741
      %v743 = vand.u32 %v340, 4294901760
      %v744 = vsub.f32 %v340, %v743
      %v745 = vand.u32 %v744, 4294901760
      %v746 = vsub.f32 %v744, %v745
      %v747 = vand.u32 %v746, 4294901760
      %748 = vmatprep.subr.mxu0 %v747
      %v749 = vand.u32 %v339, 4294901760
      %v750 = vsub.f32 %v339, %v749
      %v751 = vand.u32 %v750, 4294901760
      %v752 = vsub.f32 %v750, %v751
      %v753 = vand.u32 %v752, 4294901760
      %754 = vmatpush1.msra.mxu0 %v753
      %v755 = vand.u32 %v342, 4294901760
      %v756 = vsub.f32 %v342, %v755
      %v757 = vand.u32 %v756, 4294901760
      %v758 = vsub.f32 %v756, %v757
      %v759 = vand.u32 %v758, 4294901760
      %760 = vmatprep.subr.mxu0 %v759
      %v761 = vand.u32 %v341, 4294901760
      %v762 = vsub.f32 %v341, %v761
      %v763 = vand.u32 %v762, 4294901760
      %v764 = vsub.f32 %v762, %v763
      %v765 = vand.u32 %v764, 4294901760
      %766 = vmatpush1.msra.mxu0 %v765
      %v767 = vand.u32 %v344, 4294901760
      %v768 = vsub.f32 %v344, %v767
      %v769 = vand.u32 %v768, 4294901760
      %v770 = vsub.f32 %v768, %v769
      %v771 = vand.u32 %v770, 4294901760
      %772 = vmatprep.subr.mxu0 %v771
      %v773 = vand.u32 %v343, 4294901760
      %v774 = vsub.f32 %v343, %v773
      %v775 = vand.u32 %v774, 4294901760
      %v776 = vsub.f32 %v774, %v775
      %v777 = vand.u32 %v776, 4294901760
      %778 = vmatpush1.msra.mxu0 %v777
      %v779 = vand.u32 %v346, 4294901760
      %v780 = vsub.f32 %v346, %v779
      %v781 = vand.u32 %v780, 4294901760
      %v782 = vsub.f32 %v780, %v781
      %v783 = vand.u32 %v782, 4294901760
      %784 = vmatprep.subr.mxu0 %v783
      %v785 = vand.u32 %v345, 4294901760
      %v786 = vsub.f32 %v345, %v785
      %v787 = vand.u32 %v786, 4294901760
      %v788 = vsub.f32 %v786, %v787
      %v789 = vand.u32 %v788, 4294901760
      %790 = vmatpush1.msra.mxu0 %v789
      %v791 = vand.u32 %v348, 4294901760
      %v792 = vsub.f32 %v348, %v791
      %v793 = vand.u32 %v792, 4294901760
      %v794 = vsub.f32 %v792, %v793
      %v795 = vand.u32 %v794, 4294901760
      %796 = vmatprep.subr.mxu0 %v795
      %v797 = vand.u32 %v347, 4294901760
      %v798 = vsub.f32 %v347, %v797
      %v799 = vand.u32 %v798, 4294901760
      %v800 = vsub.f32 %v798, %v799
      %v801 = vand.u32 %v800, 4294901760
      %802 = vmatpush1.msra.mxu0 %v801
      %v803 = vand.u32 %v350, 4294901760
      %v804 = vsub.f32 %v350, %v803
      %v805 = vand.u32 %v804, 4294901760
      %v806 = vsub.f32 %v804, %v805
      %v807 = vand.u32 %v806, 4294901760
      %808 = vmatprep.subr.mxu0 %v807
      %v809 = vand.u32 %v349, 4294901760
      %v810 = vsub.f32 %v349, %v809
      %v811 = vand.u32 %v810, 4294901760
      %v812 = vsub.f32 %v810, %v811
      %v813 = vand.u32 %v812, 4294901760
      %814 = vmatpush1.msra.mxu0 %v813
      %v815 = vand.u32 %v352, 4294901760
      %v816 = vsub.f32 %v352, %v815
      %v817 = vand.u32 %v816, 4294901760
      %v818 = vsub.f32 %v816, %v817
      %v819 = vand.u32 %v818, 4294901760
      %820 = vmatprep.subr.mxu0 %v819
      %v821 = vand.u32 %v351, 4294901760
      %v822 = vsub.f32 %v351, %v821
      %v823 = vand.u32 %v822, 4294901760
      %v824 = vsub.f32 %v822, %v823
      %v825 = vand.u32 %v824, 4294901760
      %826 = vmatpush1.msra.mxu0 %v825
      %v827 = vand.u32 %v354, 4294901760
      %v828 = vsub.f32 %v354, %v827
      %v829 = vand.u32 %v828, 4294901760
      %v830 = vsub.f32 %v828, %v829
      %v831 = vand.u32 %v830, 4294901760
      %832 = vmatprep.subr.mxu0 %v831
      %v833 = vand.u32 %v353, 4294901760
      %v834 = vsub.f32 %v353, %v833
      %v835 = vand.u32 %v834, 4294901760
      %v836 = vsub.f32 %v834, %v835
      %v837 = vand.u32 %v836, 4294901760
      %838 = vmatpush1.msra.mxu0 %v837
      %v839 = vand.u32 %v356, 4294901760
      %v840 = vsub.f32 %v356, %v839
      %v841 = vand.u32 %v840, 4294901760
      %v842 = vsub.f32 %v840, %v841
      %v843 = vand.u32 %v842, 4294901760
      %844 = vmatprep.subr.mxu0 %v843
      %v845 = vand.u32 %v355, 4294901760
      %v846 = vsub.f32 %v355, %v845
      %v847 = vand.u32 %v846, 4294901760
      %v848 = vsub.f32 %v846, %v847
      %v849 = vand.u32 %v848, 4294901760
      %850 = vmatpush1.msra.mxu0 %v849
      %v851 = vand.u32 %v358, 4294901760
      %v852 = vsub.f32 %v358, %v851
      %v853 = vand.u32 %v852, 4294901760
      %v854 = vsub.f32 %v852, %v853
      %v855 = vand.u32 %v854, 4294901760
      %856 = vmatprep.subr.mxu0 %v855
      %v857 = vand.u32 %v357, 4294901760
      %v858 = vsub.f32 %v357, %v857
      %v859 = vand.u32 %v858, 4294901760
      %v860 = vsub.f32 %v858, %v859
      %v861 = vand.u32 %v860, 4294901760
      %862 = vmatpush1.msra.mxu0 %v861
      %v863 = vand.u32 %v360, 4294901760
      %v864 = vsub.f32 %v360, %v863
      %v865 = vand.u32 %v864, 4294901760
      %v866 = vsub.f32 %v864, %v865
      %v867 = vand.u32 %v866, 4294901760
      %868 = vmatprep.subr.mxu0 %v867
      %v869 = vand.u32 %v359, 4294901760
      %v870 = vsub.f32 %v359, %v869
      %v871 = vand.u32 %v870, 4294901760
      %v872 = vsub.f32 %v870, %v871
      %v873 = vand.u32 %v872, 4294901760
      %874 = vmatpush1.msra.mxu0 %v873
      %v875 = vand.u32 %v362, 4294901760
      %v876 = vsub.f32 %v362, %v875
      %v877 = vand.u32 %v876, 4294901760
      %v878 = vsub.f32 %v876, %v877
      %v879 = vand.u32 %v878, 4294901760
      %880 = vmatprep.subr.mxu0 %v879
      %v881 = vand.u32 %v361, 4294901760
      %v882 = vsub.f32 %v361, %v881
      %v883 = vand.u32 %v882, 4294901760
      %v884 = vsub.f32 %v882, %v883
      %v885 = vand.u32 %v884, 4294901760
      %886 = vmatpush1.msra.mxu0 %v885
      %v887 = vand.u32 %v364, 4294901760
      %v888 = vsub.f32 %v364, %v887
      %v889 = vand.u32 %v888, 4294901760
      %v890 = vsub.f32 %v888, %v889
      %v891 = vand.u32 %v890, 4294901760
      %892 = vmatprep.subr.mxu0 %v891
      %v893 = vand.u32 %v363, 4294901760
      %v894 = vsub.f32 %v363, %v893
      %v895 = vand.u32 %v894, 4294901760
      %v896 = vsub.f32 %v894, %v895
      %v897 = vand.u32 %v896, 4294901760
      %898 = vmatpush1.msra.mxu0 %v897
      %v899 = vand.u32 %v368, 4294901760
      %900 = vmatprep.mubr.f32.mxu0 %v899
      %v901 = vand.u32 %v365, 4294901760
      %902 = vmatmul.mubr.f32.gmra.mrb[0].mxu0 %v901
      %v903 = vpop.f32.mrb[0].mxu0
      %v904 = vadd.f32 %v511, %v903
      %v905 = vpop.f32.mrb[0].mxu0
      %v906 = vadd.f32 %v513, %v905
      %907 = vdwg.mxu0
      %v908 = vand.u32 %v302, 4294901760
      %v909 = vsub.f32 %v302, %v908
      %910 = vmatprep.subr.mxu0 %v909
      %v911 = vand.u32 %v301, 4294901760
      %v912 = vsub.f32 %v301, %v911
      %913 = vmatpush1.msra.mxu0 %v912
      %v914 = vand.u32 %v304, 4294901760
      %v915 = vsub.f32 %v304, %v914
      %916 = vmatprep.subr.mxu0 %v915
      %v917 = vand.u32 %v303, 4294901760
      %v918 = vsub.f32 %v303, %v917
      %919 = vmatpush1.msra.mxu0 %v918
      %v920 = vand.u32 %v306, 4294901760
      %v921 = vsub.f32 %v306, %v920
      %922 = vmatprep.subr.mxu0 %v921
      %v923 = vand.u32 %v305, 4294901760
      %v924 = vsub.f32 %v305, %v923
      %925 = vmatpush1.msra.mxu0 %v924
      %v926 = vand.u32 %v308, 4294901760
      %v927 = vsub.f32 %v308, %v926
      %928 = vmatprep.subr.mxu0 %v927
      %v929 = vand.u32 %v307, 4294901760
      %v930 = vsub.f32 %v307, %v929
      %931 = vmatpush1.msra.mxu0 %v930
      %v932 = vand.u32 %v310, 4294901760
      %v933 = vsub.f32 %v310, %v932
      %934 = vmatprep.subr.mxu0 %v933
      %v935 = vand.u32 %v309, 4294901760
      %v936 = vsub.f32 %v309, %v935
      %937 = vmatpush1.msra.mxu0 %v936
      %v938 = vand.u32 %v312, 4294901760
      %v939 = vsub.f32 %v312, %v938
      %940 = vmatprep.subr.mxu0 %v939
      %v941 = vand.u32 %v311, 4294901760
      %v942 = vsub.f32 %v311, %v941
      %943 = vmatpush1.msra.mxu0 %v942
      %v944 = vand.u32 %v314, 4294901760
      %v945 = vsub.f32 %v314, %v944
      %946 = vmatprep.subr.mxu0 %v945
      %v947 = vand.u32 %v313, 4294901760
      %v948 = vsub.f32 %v313, %v947
      %949 = vmatpush1.msra.mxu0 %v948
      %v950 = vand.u32 %v316, 4294901760
      %v951 = vsub.f32 %v316, %v950
      %952 = vmatprep.subr.mxu0 %v951
      %v953 = vand.u32 %v315, 4294901760
      %v954 = vsub.f32 %v315, %v953
      %955 = vmatpush1.msra.mxu0 %v954
      %v956 = vand.u32 %v318, 4294901760
      %v957 = vsub.f32 %v318, %v956
      %958 = vmatprep.subr.mxu0 %v957
      %v959 = vand.u32 %v317, 4294901760
      %v960 = vsub.f32 %v317, %v959
      %961 = vmatpush1.msra.mxu0 %v960
      %v962 = vand.u32 %v320, 4294901760
      %v963 = vsub.f32 %v320, %v962
      %964 = vmatprep.subr.mxu0 %v963
      %v965 = vand.u32 %v319, 4294901760
      %v966 = vsub.f32 %v319, %v965
      %967 = vmatpush1.msra.mxu0 %v966
      %v968 = vand.u32 %v322, 4294901760
      %v969 = vsub.f32 %v322, %v968
      %970 = vmatprep.subr.mxu0 %v969
      %v971 = vand.u32 %v321, 4294901760
      %v972 = vsub.f32 %v321, %v971
      %973 = vmatpush1.msra.mxu0 %v972
      %v974 = vand.u32 %v324, 4294901760
      %v975 = vsub.f32 %v324, %v974
      %976 = vmatprep.subr.mxu0 %v975
      %v977 = vand.u32 %v323, 4294901760
      %v978 = vsub.f32 %v323, %v977
      %979 = vmatpush1.msra.mxu0 %v978
      %v980 = vand.u32 %v326, 4294901760
      %v981 = vsub.f32 %v326, %v980
      %982 = vmatprep.subr.mxu0 %v981
      %v983 = vand.u32 %v325, 4294901760
      %v984 = vsub.f32 %v325, %v983
      %985 = vmatpush1.msra.mxu0 %v984
      %v986 = vand.u32 %v328, 4294901760
      %v987 = vsub.f32 %v328, %v986
      %988 = vmatprep.subr.mxu0 %v987
      %v989 = vand.u32 %v327, 4294901760
      %v990 = vsub.f32 %v327, %v989
      %991 = vmatpush1.msra.mxu0 %v990
      %v992 = vand.u32 %v330, 4294901760
      %v993 = vsub.f32 %v330, %v992
      %994 = vmatprep.subr.mxu0 %v993
      %v995 = vand.u32 %v329, 4294901760
      %v996 = vsub.f32 %v329, %v995
      %997 = vmatpush1.msra.mxu0 %v996
      %v998 = vand.u32 %v332, 4294901760
      %v999 = vsub.f32 %v332, %v998
      %1000 = vmatprep.subr.mxu0 %v999
      %v1001 = vand.u32 %v331, 4294901760
      %v1002 = vsub.f32 %v331, %v1001
      %1003 = vmatpush1.msra.mxu0 %v1002
      %v1004 = vand.u32 %v334, 4294901760
      %v1005 = vsub.f32 %v334, %v1004
      %1006 = vmatprep.subr.mxu0 %v1005
      %v1007 = vand.u32 %v333, 4294901760
      %v1008 = vsub.f32 %v333, %v1007
      %1009 = vmatpush1.msra.mxu0 %v1008
      %v1010 = vand.u32 %v336, 4294901760
      %v1011 = vsub.f32 %v336, %v1010
      %1012 = vmatprep.subr.mxu0 %v1011
      %v1013 = vand.u32 %v335, 4294901760
      %v1014 = vsub.f32 %v335, %v1013
      %1015 = vmatpush1.msra.mxu0 %v1014
      %v1016 = vand.u32 %v338, 4294901760
      %v1017 = vsub.f32 %v338, %v1016
      %1018 = vmatprep.subr.mxu0 %v1017
      %v1019 = vand.u32 %v337, 4294901760
      %v1020 = vsub.f32 %v337, %v1019
      %1021 = vmatpush1.msra.mxu0 %v1020
      %v1022 = vand.u32 %v340, 4294901760
      %v1023 = vsub.f32 %v340, %v1022
      %1024 = vmatprep.subr.mxu0 %v1023
      %v1025 = vand.u32 %v339, 4294901760
      %v1026 = vsub.f32 %v339, %v1025
      %1027 = vmatpush1.msra.mxu0 %v1026
      %v1028 = vand.u32 %v342, 4294901760
      %v1029 = vsub.f32 %v342, %v1028
      %1030 = vmatprep.subr.mxu0 %v1029
      %v1031 = vand.u32 %v341, 4294901760
      %v1032 = vsub.f32 %v341, %v1031
      %1033 = vmatpush1.msra.mxu0 %v1032
      %v1034 = vand.u32 %v344, 4294901760
      %v1035 = vsub.f32 %v344, %v1034
      %1036 = vmatprep.subr.mxu0 %v1035
      %v1037 = vand.u32 %v343, 4294901760
      %v1038 = vsub.f32 %v343, %v1037
      %1039 = vmatpush1.msra.mxu0 %v1038
      %v1040 = vand.u32 %v346, 4294901760
      %v1041 = vsub.f32 %v346, %v1040
      %1042 = vmatprep.subr.mxu0 %v1041
      %v1043 = vand.u32 %v345, 4294901760
      %v1044 = vsub.f32 %v345, %v1043
      %1045 = vmatpush1.msra.mxu0 %v1044
      %v1046 = vand.u32 %v348, 4294901760
      %v1047 = vsub.f32 %v348, %v1046
      %1048 = vmatprep.subr.mxu0 %v1047
      %v1049 = vand.u32 %v347, 4294901760
      %v1050 = vsub.f32 %v347, %v1049
      %1051 = vmatpush1.msra.mxu0 %v1050
      %v1052 = vand.u32 %v350, 4294901760
      %v1053 = vsub.f32 %v350, %v1052
      %1054 = vmatprep.subr.mxu0 %v1053
      %v1055 = vand.u32 %v349, 4294901760
      %v1056 = vsub.f32 %v349, %v1055
      %1057 = vmatpush1.msra.mxu0 %v1056
      %v1058 = vand.u32 %v352, 4294901760
      %v1059 = vsub.f32 %v352, %v1058
      %1060 = vmatprep.subr.mxu0 %v1059
      %v1061 = vand.u32 %v351, 4294901760
      %v1062 = vsub.f32 %v351, %v1061
      %1063 = vmatpush1.msra.mxu0 %v1062
      %v1064 = vand.u32 %v354, 4294901760
      %v1065 = vsub.f32 %v354, %v1064
      %1066 = vmatprep.subr.mxu0 %v1065
      %v1067 = vand.u32 %v353, 4294901760
      %v1068 = vsub.f32 %v353, %v1067
      %1069 = vmatpush1.msra.mxu0 %v1068
      %v1070 = vand.u32 %v356, 4294901760
      %v1071 = vsub.f32 %v356, %v1070
      %1072 = vmatprep.subr.mxu0 %v1071
      %v1073 = vand.u32 %v355, 4294901760
      %v1074 = vsub.f32 %v355, %v1073
      %1075 = vmatpush1.msra.mxu0 %v1074
      %v1076 = vand.u32 %v358, 4294901760
      %v1077 = vsub.f32 %v358, %v1076
      %1078 = vmatprep.subr.mxu0 %v1077
      %v1079 = vand.u32 %v357, 4294901760
      %v1080 = vsub.f32 %v357, %v1079
      %1081 = vmatpush1.msra.mxu0 %v1080
      %v1082 = vand.u32 %v360, 4294901760
      %v1083 = vsub.f32 %v360, %v1082
      %1084 = vmatprep.subr.mxu0 %v1083
      %v1085 = vand.u32 %v359, 4294901760
      %v1086 = vsub.f32 %v359, %v1085
      %1087 = vmatpush1.msra.mxu0 %v1086
      %v1088 = vand.u32 %v362, 4294901760
      %v1089 = vsub.f32 %v362, %v1088
      %1090 = vmatprep.subr.mxu0 %v1089
      %v1091 = vand.u32 %v361, 4294901760
      %v1092 = vsub.f32 %v361, %v1091
      %1093 = vmatpush1.msra.mxu0 %v1092
      %v1094 = vand.u32 %v364, 4294901760
      %v1095 = vsub.f32 %v364, %v1094
      %1096 = vmatprep.subr.mxu0 %v1095
      %v1097 = vand.u32 %v363, 4294901760
      %v1098 = vsub.f32 %v363, %v1097
      %1099 = vmatpush1.msra.mxu0 %v1098
      %v1100 = vand.u32 %v368, 4294901760
      %v1101 = vsub.f32 %v368, %v1100
      %1102 = vmatprep.mubr.f32.mxu0 %v1101
      %v1103 = vand.u32 %v365, 4294901760
      %v1104 = vsub.f32 %v365, %v1103
      %1105 = vmatmul.mubr.f32.gmra.mrb[0].mxu0 %v1104
      %v1106 = vpop.f32.mrb[0].mxu0
      %v1107 = vadd.f32 %v904, %v1106
      %v1108 = vpop.f32.mrb[0].mxu0
      %v1109 = vadd.f32 %v906, %v1108
      %1110 = vdwg.mxu0
      %v1111 = vand.u32 %v302, 4294901760
      %1112 = vmatprep.subr.mxu0 %v1111
      %v1113 = vand.u32 %v301, 4294901760
      %1114 = vmatpush1.msra.mxu0 %v1113
      %v1115 = vand.u32 %v304, 4294901760
      %1116 = vmatprep.subr.mxu0 %v1115
      %v1117 = vand.u32 %v303, 4294901760
      %1118 = vmatpush1.msra.mxu0 %v1117
      %v1119 = vand.u32 %v306, 4294901760
      %1120 = vmatprep.subr.mxu0 %v1119
      %v1121 = vand.u32 %v305, 4294901760
      %1122 = vmatpush1.msra.mxu0 %v1121
      %v1123 = vand.u32 %v308, 4294901760
      %1124 = vmatprep.subr.mxu0 %v1123
      %v1125 = vand.u32 %v307, 4294901760
      %1126 = vmatpush1.msra.mxu0 %v1125
      %v1127 = vand.u32 %v310, 4294901760
      %1128 = vmatprep.subr.mxu0 %v1127
      %v1129 = vand.u32 %v309, 4294901760
      %1130 = vmatpush1.msra.mxu0 %v1129
      %v1131 = vand.u32 %v312, 4294901760
      %1132 = vmatprep.subr.mxu0 %v1131
      %v1133 = vand.u32 %v311, 4294901760
      %1134 = vmatpush1.msra.mxu0 %v1133
      %v1135 = vand.u32 %v314, 4294901760
      %1136 = vmatprep.subr.mxu0 %v1135
      %v1137 = vand.u32 %v313, 4294901760
      %1138 = vmatpush1.msra.mxu0 %v1137
      %v1139 = vand.u32 %v316, 4294901760
      %1140 = vmatprep.subr.mxu0 %v1139
      %v1141 = vand.u32 %v315, 4294901760
      %1142 = vmatpush1.msra.mxu0 %v1141
      %v1143 = vand.u32 %v318, 4294901760
      %1144 = vmatprep.subr.mxu0 %v1143
      %v1145 = vand.u32 %v317, 4294901760
      %1146 = vmatpush1.msra.mxu0 %v1145
      %v1147 = vand.u32 %v320, 4294901760
      %1148 = vmatprep.subr.mxu0 %v1147
      %v1149 = vand.u32 %v319, 4294901760
      %1150 = vmatpush1.msra.mxu0 %v1149
      %v1151 = vand.u32 %v322, 4294901760
      %1152 = vmatprep.subr.mxu0 %v1151
      %v1153 = vand.u32 %v321, 4294901760
      %1154 = vmatpush1.msra.mxu0 %v1153
      %v1155 = vand.u32 %v324, 4294901760
      %1156 = vmatprep.subr.mxu0 %v1155
      %v1157 = vand.u32 %v323, 4294901760
      %1158 = vmatpush1.msra.mxu0 %v1157
      %v1159 = vand.u32 %v326, 4294901760
      %1160 = vmatprep.subr.mxu0 %v1159
      %v1161 = vand.u32 %v325, 4294901760
      %1162 = vmatpush1.msra.mxu0 %v1161
      %v1163 = vand.u32 %v328, 4294901760
      %1164 = vmatprep.subr.mxu0 %v1163
      %v1165 = vand.u32 %v327, 4294901760
      %1166 = vmatpush1.msra.mxu0 %v1165
      %v1167 = vand.u32 %v330, 4294901760
      %1168 = vmatprep.subr.mxu0 %v1167
      %v1169 = vand.u32 %v329, 4294901760
      %1170 = vmatpush1.msra.mxu0 %v1169
      %v1171 = vand.u32 %v332, 4294901760
      %1172 = vmatprep.subr.mxu0 %v1171
      %v1173 = vand.u32 %v331, 4294901760
      %1174 = vmatpush1.msra.mxu0 %v1173
      %v1175 = vand.u32 %v334, 4294901760
      %1176 = vmatprep.subr.mxu0 %v1175
      %v1177 = vand.u32 %v333, 4294901760
      %1178 = vmatpush1.msra.mxu0 %v1177
      %v1179 = vand.u32 %v336, 4294901760
      %1180 = vmatprep.subr.mxu0 %v1179
      %v1181 = vand.u32 %v335, 4294901760
      %1182 = vmatpush1.msra.mxu0 %v1181
      %v1183 = vand.u32 %v338, 4294901760
      %1184 = vmatprep.subr.mxu0 %v1183
      %v1185 = vand.u32 %v337, 4294901760
      %1186 = vmatpush1.msra.mxu0 %v1185
      %v1187 = vand.u32 %v340, 4294901760
      %1188 = vmatprep.subr.mxu0 %v1187
      %v1189 = vand.u32 %v339, 4294901760
      %1190 = vmatpush1.msra.mxu0 %v1189
      %v1191 = vand.u32 %v342, 4294901760
      %1192 = vmatprep.subr.mxu0 %v1191
      %v1193 = vand.u32 %v341, 4294901760
      %1194 = vmatpush1.msra.mxu0 %v1193
      %v1195 = vand.u32 %v344, 4294901760
      %1196 = vmatprep.subr.mxu0 %v1195
      %v1197 = vand.u32 %v343, 4294901760
      %1198 = vmatpush1.msra.mxu0 %v1197
      %v1199 = vand.u32 %v346, 4294901760
      %1200 = vmatprep.subr.mxu0 %v1199
      %v1201 = vand.u32 %v345, 4294901760
      %1202 = vmatpush1.msra.mxu0 %v1201
      %v1203 = vand.u32 %v348, 4294901760
      %1204 = vmatprep.subr.mxu0 %v1203
      %v1205 = vand.u32 %v347, 4294901760
      %1206 = vmatpush1.msra.mxu0 %v1205
      %v1207 = vand.u32 %v350, 4294901760
      %1208 = vmatprep.subr.mxu0 %v1207
      %v1209 = vand.u32 %v349, 4294901760
      %1210 = vmatpush1.msra.mxu0 %v1209
      %v1211 = vand.u32 %v352, 4294901760
      %1212 = vmatprep.subr.mxu0 %v1211
      %v1213 = vand.u32 %v351, 4294901760
      %1214 = vmatpush1.msra.mxu0 %v1213
      %v1215 = vand.u32 %v354, 4294901760
      %1216 = vmatprep.subr.mxu0 %v1215
      %v1217 = vand.u32 %v353, 4294901760
      %1218 = vmatpush1.msra.mxu0 %v1217
      %v1219 = vand.u32 %v356, 4294901760
      %1220 = vmatprep.subr.mxu0 %v1219
      %v1221 = vand.u32 %v355, 4294901760
      %1222 = vmatpush1.msra.mxu0 %v1221
      %v1223 = vand.u32 %v358, 4294901760
      %1224 = vmatprep.subr.mxu0 %v1223
      %v1225 = vand.u32 %v357, 4294901760
      %1226 = vmatpush1.msra.mxu0 %v1225
      %v1227 = vand.u32 %v360, 4294901760
      %1228 = vmatprep.subr.mxu0 %v1227
      %v1229 = vand.u32 %v359, 4294901760
      %1230 = vmatpush1.msra.mxu0 %v1229
      %v1231 = vand.u32 %v362, 4294901760
      %1232 = vmatprep.subr.mxu0 %v1231
      %v1233 = vand.u32 %v361, 4294901760
      %1234 = vmatpush1.msra.mxu0 %v1233
      %v1235 = vand.u32 %v364, 4294901760
      %1236 = vmatprep.subr.mxu0 %v1235
      %v1237 = vand.u32 %v363, 4294901760
      %1238 = vmatpush1.msra.mxu0 %v1237
      %v1239 = vand.u32 %v368, 4294901760
      %v1240 = vsub.f32 %v368, %v1239
      %v1241 = vand.u32 %v1240, 4294901760
      %1242 = vmatprep.mubr.f32.mxu0 %v1241
      %v1243 = vand.u32 %v365, 4294901760
      %v1244 = vsub.f32 %v365, %v1243
      %v1245 = vand.u32 %v1244, 4294901760
      %1246 = vmatmul.mubr.f32.gmra.mrb[0].mxu0 %v1245
      %v1247 = vpop.f32.mrb[0].mxu0
      %v1248 = vadd.f32 %v1107, %v1247
      %v1249 = vpop.f32.mrb[0].mxu0
      %v1250 = vadd.f32 %v1109, %v1249
      %1251 = vdwg.mxu0
      %v1252 = vand.u32 %v302, 4294901760
      %v1253 = vsub.f32 %v302, %v1252
      %v1254 = vand.u32 %v1253, 4294901760
      %1255 = vmatprep.subr.mxu0 %v1254
      %v1256 = vand.u32 %v301, 4294901760
      %v1257 = vsub.f32 %v301, %v1256
      %v1258 = vand.u32 %v1257, 4294901760
      %1259 = vmatpush1.msra.mxu0 %v1258
      %v1260 = vand.u32 %v304, 4294901760
      %v1261 = vsub.f32 %v304, %v1260
      %v1262 = vand.u32 %v1261, 4294901760
      %1263 = vmatprep.subr.mxu0 %v1262
      %v1264 = vand.u32 %v303, 4294901760
      %v1265 = vsub.f32 %v303, %v1264
      %v1266 = vand.u32 %v1265, 4294901760
      %1267 = vmatpush1.msra.mxu0 %v1266
      %v1268 = vand.u32 %v306, 4294901760
      %v1269 = vsub.f32 %v306, %v1268
      %v1270 = vand.u32 %v1269, 4294901760
      %1271 = vmatprep.subr.mxu0 %v1270
      %v1272 = vand.u32 %v305, 4294901760
      %v1273 = vsub.f32 %v305, %v1272
      %v1274 = vand.u32 %v1273, 4294901760
      %1275 = vmatpush1.msra.mxu0 %v1274
      %v1276 = vand.u32 %v308, 4294901760
      %v1277 = vsub.f32 %v308, %v1276
      %v1278 = vand.u32 %v1277, 4294901760
      %1279 = vmatprep.subr.mxu0 %v1278
      %v1280 = vand.u32 %v307, 4294901760
      %v1281 = vsub.f32 %v307, %v1280
      %v1282 = vand.u32 %v1281, 4294901760
      %1283 = vmatpush1.msra.mxu0 %v1282
      %v1284 = vand.u32 %v310, 4294901760
      %v1285 = vsub.f32 %v310, %v1284
      %v1286 = vand.u32 %v1285, 4294901760
      %1287 = vmatprep.subr.mxu0 %v1286
      %v1288 = vand.u32 %v309, 4294901760
      %v1289 = vsub.f32 %v309, %v1288
      %v1290 = vand.u32 %v1289, 4294901760
      %1291 = vmatpush1.msra.mxu0 %v1290
      %v1292 = vand.u32 %v312, 4294901760
      %v1293 = vsub.f32 %v312, %v1292
      %v1294 = vand.u32 %v1293, 4294901760
      %1295 = vmatprep.subr.mxu0 %v1294
      %v1296 = vand.u32 %v311, 4294901760
      %v1297 = vsub.f32 %v311, %v1296
      %v1298 = vand.u32 %v1297, 4294901760
      %1299 = vmatpush1.msra.mxu0 %v1298
      %v1300 = vand.u32 %v314, 4294901760
      %v1301 = vsub.f32 %v314, %v1300
      %v1302 = vand.u32 %v1301, 4294901760
      %1303 = vmatprep.subr.mxu0 %v1302
      %v1304 = vand.u32 %v313, 4294901760
      %v1305 = vsub.f32 %v313, %v1304
      %v1306 = vand.u32 %v1305, 4294901760
      %1307 = vmatpush1.msra.mxu0 %v1306
      %v1308 = vand.u32 %v316, 4294901760
      %v1309 = vsub.f32 %v316, %v1308
      %v1310 = vand.u32 %v1309, 4294901760
      %1311 = vmatprep.subr.mxu0 %v1310
      %v1312 = vand.u32 %v315, 4294901760
      %v1313 = vsub.f32 %v315, %v1312
      %v1314 = vand.u32 %v1313, 4294901760
      %1315 = vmatpush1.msra.mxu0 %v1314
      %v1316 = vand.u32 %v318, 4294901760
      %v1317 = vsub.f32 %v318, %v1316
      %v1318 = vand.u32 %v1317, 4294901760
      %1319 = vmatprep.subr.mxu0 %v1318
      %v1320 = vand.u32 %v317, 4294901760
      %v1321 = vsub.f32 %v317, %v1320
      %v1322 = vand.u32 %v1321, 4294901760
      %1323 = vmatpush1.msra.mxu0 %v1322
      %v1324 = vand.u32 %v320, 4294901760
      %v1325 = vsub.f32 %v320, %v1324
      %v1326 = vand.u32 %v1325, 4294901760
      %1327 = vmatprep.subr.mxu0 %v1326
      %v1328 = vand.u32 %v319, 4294901760
      %v1329 = vsub.f32 %v319, %v1328
      %v1330 = vand.u32 %v1329, 4294901760
      %1331 = vmatpush1.msra.mxu0 %v1330
      %v1332 = vand.u32 %v322, 4294901760
      %v1333 = vsub.f32 %v322, %v1332
      %v1334 = vand.u32 %v1333, 4294901760
      %1335 = vmatprep.subr.mxu0 %v1334
      %v1336 = vand.u32 %v321, 4294901760
      %v1337 = vsub.f32 %v321, %v1336
      %v1338 = vand.u32 %v1337, 4294901760
      %1339 = vmatpush1.msra.mxu0 %v1338
      %v1340 = vand.u32 %v324, 4294901760
      %v1341 = vsub.f32 %v324, %v1340
      %v1342 = vand.u32 %v1341, 4294901760
      %1343 = vmatprep.subr.mxu0 %v1342
      %v1344 = vand.u32 %v323, 4294901760
      %v1345 = vsub.f32 %v323, %v1344
      %v1346 = vand.u32 %v1345, 4294901760
      %1347 = vmatpush1.msra.mxu0 %v1346
      %v1348 = vand.u32 %v326, 4294901760
      %v1349 = vsub.f32 %v326, %v1348
      %v1350 = vand.u32 %v1349, 4294901760
      %1351 = vmatprep.subr.mxu0 %v1350
      %v1352 = vand.u32 %v325, 4294901760
      %v1353 = vsub.f32 %v325, %v1352
      %v1354 = vand.u32 %v1353, 4294901760
      %1355 = vmatpush1.msra.mxu0 %v1354
      %v1356 = vand.u32 %v328, 4294901760
      %v1357 = vsub.f32 %v328, %v1356
      %v1358 = vand.u32 %v1357, 4294901760
      %1359 = vmatprep.subr.mxu0 %v1358
      %v1360 = vand.u32 %v327, 4294901760
      %v1361 = vsub.f32 %v327, %v1360
      %v1362 = vand.u32 %v1361, 4294901760
      %1363 = vmatpush1.msra.mxu0 %v1362
      %v1364 = vand.u32 %v330, 4294901760
      %v1365 = vsub.f32 %v330, %v1364
      %v1366 = vand.u32 %v1365, 4294901760
      %1367 = vmatprep.subr.mxu0 %v1366
      %v1368 = vand.u32 %v329, 4294901760
      %v1369 = vsub.f32 %v329, %v1368
      %v1370 = vand.u32 %v1369, 4294901760
      %1371 = vmatpush1.msra.mxu0 %v1370
      %v1372 = vand.u32 %v332, 4294901760
      %v1373 = vsub.f32 %v332, %v1372
      %v1374 = vand.u32 %v1373, 4294901760
      %1375 = vmatprep.subr.mxu0 %v1374
      %v1376 = vand.u32 %v331, 4294901760
      %v1377 = vsub.f32 %v331, %v1376
      %v1378 = vand.u32 %v1377, 4294901760
      %1379 = vmatpush1.msra.mxu0 %v1378
      %v1380 = vand.u32 %v334, 4294901760
      %v1381 = vsub.f32 %v334, %v1380
      %v1382 = vand.u32 %v1381, 4294901760
      %1383 = vmatprep.subr.mxu0 %v1382
      %v1384 = vand.u32 %v333, 4294901760
      %v1385 = vsub.f32 %v333, %v1384
      %v1386 = vand.u32 %v1385, 4294901760
      %1387 = vmatpush1.msra.mxu0 %v1386
      %v1388 = vand.u32 %v336, 4294901760
      %v1389 = vsub.f32 %v336, %v1388
      %v1390 = vand.u32 %v1389, 4294901760
      %1391 = vmatprep.subr.mxu0 %v1390
      %v1392 = vand.u32 %v335, 4294901760
      %v1393 = vsub.f32 %v335, %v1392
      %v1394 = vand.u32 %v1393, 4294901760
      %1395 = vmatpush1.msra.mxu0 %v1394
      %v1396 = vand.u32 %v338, 4294901760
      %v1397 = vsub.f32 %v338, %v1396
      %v1398 = vand.u32 %v1397, 4294901760
      %1399 = vmatprep.subr.mxu0 %v1398
      %v1400 = vand.u32 %v337, 4294901760
      %v1401 = vsub.f32 %v337, %v1400
      %v1402 = vand.u32 %v1401, 4294901760
      %1403 = vmatpush1.msra.mxu0 %v1402
      %v1404 = vand.u32 %v340, 4294901760
      %v1405 = vsub.f32 %v340, %v1404
      %v1406 = vand.u32 %v1405, 4294901760
      %1407 = vmatprep.subr.mxu0 %v1406
      %v1408 = vand.u32 %v339, 4294901760
      %v1409 = vsub.f32 %v339, %v1408
      %v1410 = vand.u32 %v1409, 4294901760
      %1411 = vmatpush1.msra.mxu0 %v1410
      %v1412 = vand.u32 %v342, 4294901760
      %v1413 = vsub.f32 %v342, %v1412
      %v1414 = vand.u32 %v1413, 4294901760
      %1415 = vmatprep.subr.mxu0 %v1414
      %v1416 = vand.u32 %v341, 4294901760
      %v1417 = vsub.f32 %v341, %v1416
      %v1418 = vand.u32 %v1417, 4294901760
      %1419 = vmatpush1.msra.mxu0 %v1418
      %v1420 = vand.u32 %v344, 4294901760
      %v1421 = vsub.f32 %v344, %v1420
      %v1422 = vand.u32 %v1421, 4294901760
      %1423 = vmatprep.subr.mxu0 %v1422
      %v1424 = vand.u32 %v343, 4294901760
      %v1425 = vsub.f32 %v343, %v1424
      %v1426 = vand.u32 %v1425, 4294901760
      %1427 = vmatpush1.msra.mxu0 %v1426
      %v1428 = vand.u32 %v346, 4294901760
      %v1429 = vsub.f32 %v346, %v1428
      %v1430 = vand.u32 %v1429, 4294901760
      %1431 = vmatprep.subr.mxu0 %v1430
      %v1432 = vand.u32 %v345, 4294901760
      %v1433 = vsub.f32 %v345, %v1432
      %v1434 = vand.u32 %v1433, 4294901760
      %1435 = vmatpush1.msra.mxu0 %v1434
      %v1436 = vand.u32 %v348, 4294901760
      %v1437 = vsub.f32 %v348, %v1436
      %v1438 = vand.u32 %v1437, 4294901760
      %1439 = vmatprep.subr.mxu0 %v1438
      %v1440 = vand.u32 %v347, 4294901760
      %v1441 = vsub.f32 %v347, %v1440
      %v1442 = vand.u32 %v1441, 4294901760
      %1443 = vmatpush1.msra.mxu0 %v1442
      %v1444 = vand.u32 %v350, 4294901760
      %v1445 = vsub.f32 %v350, %v1444
      %v1446 = vand.u32 %v1445, 4294901760
      %1447 = vmatprep.subr.mxu0 %v1446
      %v1448 = vand.u32 %v349, 4294901760
      %v1449 = vsub.f32 %v349, %v1448
      %v1450 = vand.u32 %v1449, 4294901760
      %1451 = vmatpush1.msra.mxu0 %v1450
      %v1452 = vand.u32 %v352, 4294901760
      %v1453 = vsub.f32 %v352, %v1452
      %v1454 = vand.u32 %v1453, 4294901760
      %1455 = vmatprep.subr.mxu0 %v1454
      %v1456 = vand.u32 %v351, 4294901760
      %v1457 = vsub.f32 %v351, %v1456
      %v1458 = vand.u32 %v1457, 4294901760
      %1459 = vmatpush1.msra.mxu0 %v1458
      %v1460 = vand.u32 %v354, 4294901760
      %v1461 = vsub.f32 %v354, %v1460
      %v1462 = vand.u32 %v1461, 4294901760
      %1463 = vmatprep.subr.mxu0 %v1462
      %v1464 = vand.u32 %v353, 4294901760
      %v1465 = vsub.f32 %v353, %v1464
      %v1466 = vand.u32 %v1465, 4294901760
      %1467 = vmatpush1.msra.mxu0 %v1466
      %v1468 = vand.u32 %v356, 4294901760
      %v1469 = vsub.f32 %v356, %v1468
      %v1470 = vand.u32 %v1469, 4294901760
      %1471 = vmatprep.subr.mxu0 %v1470
      %v1472 = vand.u32 %v355, 4294901760
      %v1473 = vsub.f32 %v355, %v1472
      %v1474 = vand.u32 %v1473, 4294901760
      %1475 = vmatpush1.msra.mxu0 %v1474
      %v1476 = vand.u32 %v358, 4294901760
      %v1477 = vsub.f32 %v358, %v1476
      %v1478 = vand.u32 %v1477, 4294901760
      %1479 = vmatprep.subr.mxu0 %v1478
      %v1480 = vand.u32 %v357, 4294901760
      %v1481 = vsub.f32 %v357, %v1480
      %v1482 = vand.u32 %v1481, 4294901760
      %1483 = vmatpush1.msra.mxu0 %v1482
      %v1484 = vand.u32 %v360, 4294901760
      %v1485 = vsub.f32 %v360, %v1484
      %v1486 = vand.u32 %v1485, 4294901760
      %1487 = vmatprep.subr.mxu0 %v1486
      %v1488 = vand.u32 %v359, 4294901760
      %v1489 = vsub.f32 %v359, %v1488
      %v1490 = vand.u32 %v1489, 4294901760
      %1491 = vmatpush1.msra.mxu0 %v1490
      %v1492 = vand.u32 %v362, 4294901760
      %v1493 = vsub.f32 %v362, %v1492
      %v1494 = vand.u32 %v1493, 4294901760
      %1495 = vmatprep.subr.mxu0 %v1494
      %v1496 = vand.u32 %v361, 4294901760
      %v1497 = vsub.f32 %v361, %v1496
      %v1498 = vand.u32 %v1497, 4294901760
      %1499 = vmatpush1.msra.mxu0 %v1498
      %v1500 = vand.u32 %v364, 4294901760
      %v1501 = vsub.f32 %v364, %v1500
      %v1502 = vand.u32 %v1501, 4294901760
      %1503 = vmatprep.subr.mxu0 %v1502
      %v1504 = vand.u32 %v363, 4294901760
      %v1505 = vsub.f32 %v363, %v1504
      %v1506 = vand.u32 %v1505, 4294901760
      %1507 = vmatpush1.msra.mxu0 %v1506
      %v1508 = vand.u32 %v368, 4294901760
      %1509 = vmatprep.mubr.f32.mxu0 %v1508
      %v1510 = vand.u32 %v365, 4294901760
      %1511 = vmatmul.mubr.f32.gmra.mrb[0].mxu0 %v1510
      %v1512 = vpop.f32.mrb[0].mxu0
      %v1513 = vadd.f32 %v1248, %v1512
      %v1514 = vpop.f32.mrb[0].mxu0
      %v1515 = vadd.f32 %v1250, %v1514
      %1516 = vdwg.mxu0
      %v1517 = vand.u32 %v302, 4294901760
      %1518 = vmatprep.subr.mxu0 %v1517
      %v1519 = vand.u32 %v301, 4294901760
      %1520 = vmatpush1.msra.mxu0 %v1519
      %v1521 = vand.u32 %v304, 4294901760
      %1522 = vmatprep.subr.mxu0 %v1521
      %v1523 = vand.u32 %v303, 4294901760
      %1524 = vmatpush1.msra.mxu0 %v1523
      %v1525 = vand.u32 %v306, 4294901760
      %1526 = vmatprep.subr.mxu0 %v1525
      %v1527 = vand.u32 %v305, 4294901760
      %1528 = vmatpush1.msra.mxu0 %v1527
      %v1529 = vand.u32 %v308, 4294901760
      %1530 = vmatprep.subr.mxu0 %v1529
      %v1531 = vand.u32 %v307, 4294901760
      %1532 = vmatpush1.msra.mxu0 %v1531
      %v1533 = vand.u32 %v310, 4294901760
      %1534 = vmatprep.subr.mxu0 %v1533
      %v1535 = vand.u32 %v309, 4294901760
      %1536 = vmatpush1.msra.mxu0 %v1535
      %v1537 = vand.u32 %v312, 4294901760
      %1538 = vmatprep.subr.mxu0 %v1537
      %v1539 = vand.u32 %v311, 4294901760
      %1540 = vmatpush1.msra.mxu0 %v1539
      %v1541 = vand.u32 %v314, 4294901760
      %1542 = vmatprep.subr.mxu0 %v1541
      %v1543 = vand.u32 %v313, 4294901760
      %1544 = vmatpush1.msra.mxu0 %v1543
      %v1545 = vand.u32 %v316, 4294901760
      %1546 = vmatprep.subr.mxu0 %v1545
      %v1547 = vand.u32 %v315, 4294901760
      %1548 = vmatpush1.msra.mxu0 %v1547
      %v1549 = vand.u32 %v318, 4294901760
      %1550 = vmatprep.subr.mxu0 %v1549
      %v1551 = vand.u32 %v317, 4294901760
      %1552 = vmatpush1.msra.mxu0 %v1551
      %v1553 = vand.u32 %v320, 4294901760
      %1554 = vmatprep.subr.mxu0 %v1553
      %v1555 = vand.u32 %v319, 4294901760
      %1556 = vmatpush1.msra.mxu0 %v1555
      %v1557 = vand.u32 %v322, 4294901760
      %1558 = vmatprep.subr.mxu0 %v1557
      %v1559 = vand.u32 %v321, 4294901760
      %1560 = vmatpush1.msra.mxu0 %v1559
      %v1561 = vand.u32 %v324, 4294901760
      %1562 = vmatprep.subr.mxu0 %v1561
      %v1563 = vand.u32 %v323, 4294901760
      %1564 = vmatpush1.msra.mxu0 %v1563
      %v1565 = vand.u32 %v326, 4294901760
      %1566 = vmatprep.subr.mxu0 %v1565
      %v1567 = vand.u32 %v325, 4294901760
      %1568 = vmatpush1.msra.mxu0 %v1567
      %v1569 = vand.u32 %v328, 4294901760
      %1570 = vmatprep.subr.mxu0 %v1569
      %v1571 = vand.u32 %v327, 4294901760
      %1572 = vmatpush1.msra.mxu0 %v1571
      %v1573 = vand.u32 %v330, 4294901760
      %1574 = vmatprep.subr.mxu0 %v1573
      %v1575 = vand.u32 %v329, 4294901760
      %1576 = vmatpush1.msra.mxu0 %v1575
      %v1577 = vand.u32 %v332, 4294901760
      %1578 = vmatprep.subr.mxu0 %v1577
      %v1579 = vand.u32 %v331, 4294901760
      %1580 = vmatpush1.msra.mxu0 %v1579
      %v1581 = vand.u32 %v334, 4294901760
      %1582 = vmatprep.subr.mxu0 %v1581
      %v1583 = vand.u32 %v333, 4294901760
      %1584 = vmatpush1.msra.mxu0 %v1583
      %v1585 = vand.u32 %v336, 4294901760
      %1586 = vmatprep.subr.mxu0 %v1585
      %v1587 = vand.u32 %v335, 4294901760
      %1588 = vmatpush1.msra.mxu0 %v1587
      %v1589 = vand.u32 %v338, 4294901760
      %1590 = vmatprep.subr.mxu0 %v1589
      %v1591 = vand.u32 %v337, 4294901760
      %1592 = vmatpush1.msra.mxu0 %v1591
      %v1593 = vand.u32 %v340, 4294901760
      %1594 = vmatprep.subr.mxu0 %v1593
      %v1595 = vand.u32 %v339, 4294901760
      %1596 = vmatpush1.msra.mxu0 %v1595
      %v1597 = vand.u32 %v342, 4294901760
      %1598 = vmatprep.subr.mxu0 %v1597
      %v1599 = vand.u32 %v341, 4294901760
      %1600 = vmatpush1.msra.mxu0 %v1599
      %v1601 = vand.u32 %v344, 4294901760
      %1602 = vmatprep.subr.mxu0 %v1601
      %v1603 = vand.u32 %v343, 4294901760
      %1604 = vmatpush1.msra.mxu0 %v1603
      %v1605 = vand.u32 %v346, 4294901760
      %1606 = vmatprep.subr.mxu0 %v1605
      %v1607 = vand.u32 %v345, 4294901760
      %1608 = vmatpush1.msra.mxu0 %v1607
      %v1609 = vand.u32 %v348, 4294901760
      %1610 = vmatprep.subr.mxu0 %v1609
      %v1611 = vand.u32 %v347, 4294901760
      %1612 = vmatpush1.msra.mxu0 %v1611
      %v1613 = vand.u32 %v350, 4294901760
      %1614 = vmatprep.subr.mxu0 %v1613
      %v1615 = vand.u32 %v349, 4294901760
      %1616 = vmatpush1.msra.mxu0 %v1615
      %v1617 = vand.u32 %v352, 4294901760
      %1618 = vmatprep.subr.mxu0 %v1617
      %v1619 = vand.u32 %v351, 4294901760
      %1620 = vmatpush1.msra.mxu0 %v1619
      %v1621 = vand.u32 %v354, 4294901760
      %1622 = vmatprep.subr.mxu0 %v1621
      %v1623 = vand.u32 %v353, 4294901760
      %1624 = vmatpush1.msra.mxu0 %v1623
      %v1625 = vand.u32 %v356, 4294901760
      %1626 = vmatprep.subr.mxu0 %v1625
      %v1627 = vand.u32 %v355, 4294901760
      %1628 = vmatpush1.msra.mxu0 %v1627
      %v1629 = vand.u32 %v358, 4294901760
      %1630 = vmatprep.subr.mxu0 %v1629
      %v1631 = vand.u32 %v357, 4294901760
      %1632 = vmatpush1.msra.mxu0 %v1631
      %v1633 = vand.u32 %v360, 4294901760
      %1634 = vmatprep.subr.mxu0 %v1633
      %v1635 = vand.u32 %v359, 4294901760
      %1636 = vmatpush1.msra.mxu0 %v1635
      %v1637 = vand.u32 %v362, 4294901760
      %1638 = vmatprep.subr.mxu0 %v1637
      %v1639 = vand.u32 %v361, 4294901760
      %1640 = vmatpush1.msra.mxu0 %v1639
      %v1641 = vand.u32 %v364, 4294901760
      %1642 = vmatprep.subr.mxu0 %v1641
      %v1643 = vand.u32 %v363, 4294901760
      %1644 = vmatpush1.msra.mxu0 %v1643
      %v1645 = vand.u32 %v368, 4294901760
      %1646 = vmatprep.mubr.f32.mxu0 %v1645
      %v1647 = vand.u32 %v365, 4294901760
      %1648 = vmatmul.mubr.f32.gmra.mrb[0].mxu0 %v1647
      %v1649 = vpop.f32.mrb[0].mxu0
      %v1650 = vadd.f32 %v1513, %v1649
      %v1651 = vpop.f32.mrb[0].mxu0
      %v1652 = vadd.f32 %v1515, %v1651
      %1653 = vdwg.mxu0
      %v1656 = vcombine.low %v1650, %v1652
      %v1658 = vadd.f32 %v366, %v1656
      %1659 = vst [vmem:[#allocation4] sm:$0xff] %v1658
    $region77: #{tpu_custom_call.1} parent=1 // pred_fallthru
      _
    %s1660 = sadd.s32 %s126, 1
    %s1661 = sld [smem:[#allocation6 + %s1660]]
    %p1662 = scmp.gt.s32.totalorder %s1661, 0
    // Predicated region
    $region78: #{tpu_custom_call.1} parent=1 // pred_check
      %p1663 = pneg %p1662
    $region79: #{tpu_custom_call.1} parent=1 // pred_check_branch
      %1665 = sbr.rel (%p1663) target = $region81
    $region80: #{tpu_custom_call.1} parent=1 // pred_region
      %v1666 = vlaneseq
      %v1667 = vshrl.u32 %v1666, 7
      %v1668 = vadd.s32 %v1667, 8
      %v1669 = vadd.s32 %v1667, 16
      %v1670 = vadd.s32 %v1667, 24
      %v1671 = vadd.s32 %v1667, 32
      %v1672 = vadd.s32 %v1667, 40
      %v1673 = vadd.s32 %v1667, 48
      %v1674 = vadd.s32 %v1667, 56
      %v1675 = vadd.s32 %v1667, 64
      %v1676 = vadd.s32 %v1667, 72
      %v1677 = vadd.s32 %v1667, 80
      %v1678 = vadd.s32 %v1667, 88
      %v1679 = vadd.s32 %v1667, 96
      %v1680 = vadd.s32 %v1667, 104
      %v1681 = vadd.s32 %v1667, 112
      %v1682 = vadd.s32 %v1667, 120
      %v1683 = vadd.s32 %v1667, 128
      %v1684 = vadd.s32 %v1667, 136
      %v1685 = vadd.s32 %v1667, 144
      %v1686 = vadd.s32 %v1667, 152
      %v1687 = vadd.s32 %v1667, 160
      %v1688 = vadd.s32 %v1667, 168
      %v1689 = vadd.s32 %v1667, 176
      %v1690 = vadd.s32 %v1667, 184
      %v1691 = vadd.s32 %v1667, 192
      %v1692 = vadd.s32 %v1667, 200
      %v1693 = vadd.s32 %v1667, 208
      %v1694 = vadd.s32 %v1667, 216
      %v1695 = vadd.s32 %v1667, 224
      %v1696 = vadd.s32 %v1667, 232
      %v1697 = vadd.s32 %v1667, 240
      %v1698 = vadd.s32 %v1667, 248
      %v1699 = vadd.s32 %v1667, 256
      %v1700 = vadd.s32 %v1668, 256
      %v1701 = vadd.s32 %v1669, 256
      %v1702 = vadd.s32 %v1670, 256
      %v1703 = vadd.s32 %v1671, 256
      %v1704 = vadd.s32 %v1672, 256
      %v1705 = vadd.s32 %v1673, 256
      %v1706 = vadd.s32 %v1674, 256
      %v1707 = vadd.s32 %v1675, 256
      %v1708 = vadd.s32 %v1676, 256
      %v1709 = vadd.s32 %v1677, 256
      %v1710 = vadd.s32 %v1678, 256
      %v1711 = vadd.s32 %v1679, 256
      %v1712 = vadd.s32 %v1680, 256
      %v1713 = vadd.s32 %v1681, 256
      %v1714 = vadd.s32 %v1682, 256
      %v1715 = vadd.s32 %v1683, 256
      %v1716 = vadd.s32 %v1684, 256
      %v1717 = vadd.s32 %v1685, 256
      %v1718 = vadd.s32 %v1686, 256
      %v1719 = vadd.s32 %v1687, 256
      %v1720 = vadd.s32 %v1688, 256
      %v1721 = vadd.s32 %v1689, 256
      %v1722 = vadd.s32 %v1690, 256
      %v1723 = vadd.s32 %v1691, 256
      %v1724 = vadd.s32 %v1692, 256
      %v1725 = vadd.s32 %v1693, 256
      %v1726 = vadd.s32 %v1694, 256
      %v1727 = vadd.s32 %v1695, 256
      %v1728 = vadd.s32 %v1696, 256
      %v1729 = vadd.s32 %v1697, 256
      %v1730 = vadd.s32 %v1698, 256
      %v1731 = vlaneseq
      %v1732 = vshrl.u32 %v1731, 7
      %v1733 = vsub.s32 0, %v1732
      %v1734 = vrot.slane %v124, %v1733
      %v1735 = vlaneseq
      %v1736 = vshrl.u32 %v1735, 7
      %v1737 = vsub.s32 1, %v1736
      %v1738 = vrot.slane %v124, %v1737
      %vm1739 = vcmp.eq.s32.totalorder %v1699, %v1734
      %vm1740 = vcmp.eq.s32.totalorder %v1699, %v1738
      %vm1741 = vcmp.eq.s32.totalorder %v1700, %v1734
      %vm1742 = vcmp.eq.s32.totalorder %v1700, %v1738
      %vm1743 = vcmp.eq.s32.totalorder %v1701, %v1734
      %vm1744 = vcmp.eq.s32.totalorder %v1701, %v1738
      %vm1745 = vcmp.eq.s32.totalorder %v1702, %v1734
      %vm1746 = vcmp.eq.s32.totalorder %v1702, %v1738
      %vm1747 = vcmp.eq.s32.totalorder %v1703, %v1734
      %vm1748 = vcmp.eq.s32.totalorder %v1703, %v1738
      %vm1749 = vcmp.eq.s32.totalorder %v1704, %v1734
      %vm1750 = vcmp.eq.s32.totalorder %v1704, %v1738
      %vm1751 = vcmp.eq.s32.totalorder %v1705, %v1734
      %vm1752 = vcmp.eq.s32.totalorder %v1705, %v1738
      %vm1753 = vcmp.eq.s32.totalorder %v1706, %v1734
      %vm1754 = vcmp.eq.s32.totalorder %v1706, %v1738
      %vm1755 = vcmp.eq.s32.totalorder %v1707, %v1734
      %vm1756 = vcmp.eq.s32.totalorder %v1707, %v1738
      %vm1757 = vcmp.eq.s32.totalorder %v1708, %v1734
      %vm1758 = vcmp.eq.s32.totalorder %v1708, %v1738
      %vm1759 = vcmp.eq.s32.totalorder %v1709, %v1734
      %vm1760 = vcmp.eq.s32.totalorder %v1709, %v1738
      %vm1761 = vcmp.eq.s32.totalorder %v1710, %v1734
      %vm1762 = vcmp.eq.s32.totalorder %v1710, %v1738
      %vm1763 = vcmp.eq.s32.totalorder %v1711, %v1734
      %vm1764 = vcmp.eq.s32.totalorder %v1711, %v1738
      %vm1765 = vcmp.eq.s32.totalorder %v1712, %v1734
      %vm1766 = vcmp.eq.s32.totalorder %v1712, %v1738
      %vm1767 = vcmp.eq.s32.totalorder %v1713, %v1734
      %vm1768 = vcmp.eq.s32.totalorder %v1713, %v1738
      %vm1769 = vcmp.eq.s32.totalorder %v1714, %v1734
      %vm1770 = vcmp.eq.s32.totalorder %v1714, %v1738
      %vm1771 = vcmp.eq.s32.totalorder %v1715, %v1734
      %vm1772 = vcmp.eq.s32.totalorder %v1715, %v1738
      %vm1773 = vcmp.eq.s32.totalorder %v1716, %v1734
      %vm1774 = vcmp.eq.s32.totalorder %v1716, %v1738
      %vm1775 = vcmp.eq.s32.totalorder %v1717, %v1734
      %vm1776 = vcmp.eq.s32.totalorder %v1717, %v1738
      %vm1777 = vcmp.eq.s32.totalorder %v1718, %v1734
      %vm1778 = vcmp.eq.s32.totalorder %v1718, %v1738
      %vm1779 = vcmp.eq.s32.totalorder %v1719, %v1734
      %vm1780 = vcmp.eq.s32.totalorder %v1719, %v1738
      %vm1781 = vcmp.eq.s32.totalorder %v1720, %v1734
      %vm1782 = vcmp.eq.s32.totalorder %v1720, %v1738
      %vm1783 = vcmp.eq.s32.totalorder %v1721, %v1734
      %vm1784 = vcmp.eq.s32.totalorder %v1721, %v1738
      %vm1785 = vcmp.eq.s32.totalorder %v1722, %v1734
      %vm1786 = vcmp.eq.s32.totalorder %v1722, %v1738
      %vm1787 = vcmp.eq.s32.totalorder %v1723, %v1734
      %vm1788 = vcmp.eq.s32.totalorder %v1723, %v1738
      %vm1789 = vcmp.eq.s32.totalorder %v1724, %v1734
      %vm1790 = vcmp.eq.s32.totalorder %v1724, %v1738
      %vm1791 = vcmp.eq.s32.totalorder %v1725, %v1734
      %vm1792 = vcmp.eq.s32.totalorder %v1725, %v1738
      %vm1793 = vcmp.eq.s32.totalorder %v1726, %v1734
      %vm1794 = vcmp.eq.s32.totalorder %v1726, %v1738
      %vm1795 = vcmp.eq.s32.totalorder %v1727, %v1734
      %vm1796 = vcmp.eq.s32.totalorder %v1727, %v1738
      %vm1797 = vcmp.eq.s32.totalorder %v1728, %v1734
      %vm1798 = vcmp.eq.s32.totalorder %v1728, %v1738
      %vm1799 = vcmp.eq.s32.totalorder %v1729, %v1734
      %vm1800 = vcmp.eq.s32.totalorder %v1729, %v1738
      %vm1801 = vcmp.eq.s32.totalorder %v1730, %v1734
      %vm1802 = vcmp.eq.s32.totalorder %v1730, %v1738
      %v1803 = vsel %vm1739, 1, 0
      %v1804 = vsel %vm1740, 1, 0
      %v1805 = vsel %vm1741, 1, 0
      %v1806 = vsel %vm1742, 1, 0
      %v1807 = vsel %vm1743, 1, 0
      %v1808 = vsel %vm1744, 1, 0
      %v1809 = vsel %vm1745, 1, 0
      %v1810 = vsel %vm1746, 1, 0
      %v1811 = vsel %vm1747, 1, 0
      %v1812 = vsel %vm1748, 1, 0
      %v1813 = vsel %vm1749, 1, 0
      %v1814 = vsel %vm1750, 1, 0
      %v1815 = vsel %vm1751, 1, 0
      %v1816 = vsel %vm1752, 1, 0
      %v1817 = vsel %vm1753, 1, 0
      %v1818 = vsel %vm1754, 1, 0
      %v1819 = vsel %vm1755, 1, 0
      %v1820 = vsel %vm1756, 1, 0
      %v1821 = vsel %vm1757, 1, 0
      %v1822 = vsel %vm1758, 1, 0
      %v1823 = vsel %vm1759, 1, 0
      %v1824 = vsel %vm1760, 1, 0
      %v1825 = vsel %vm1761, 1, 0
      %v1826 = vsel %vm1762, 1, 0
      %v1827 = vsel %vm1763, 1, 0
      %v1828 = vsel %vm1764, 1, 0
      %v1829 = vsel %vm1765, 1, 0
      %v1830 = vsel %vm1766, 1, 0
      %v1831 = vsel %vm1767, 1, 0
      %v1832 = vsel %vm1768, 1, 0
      %v1833 = vsel %vm1769, 1, 0
      %v1834 = vsel %vm1770, 1, 0
      %v1835 = vsel %vm1771, 1, 0
      %v1836 = vsel %vm1772, 1, 0
      %v1837 = vsel %vm1773, 1, 0
      %v1838 = vsel %vm1774, 1, 0
      %v1839 = vsel %vm1775, 1, 0
      %v1840 = vsel %vm1776, 1, 0
      %v1841 = vsel %vm1777, 1, 0
      %v1842 = vsel %vm1778, 1, 0
      %v1843 = vsel %vm1779, 1, 0
      %v1844 = vsel %vm1780, 1, 0
      %v1845 = vsel %vm1781, 1, 0
      %v1846 = vsel %vm1782, 1, 0
      %v1847 = vsel %vm1783, 1, 0
      %v1848 = vsel %vm1784, 1, 0
      %v1849 = vsel %vm1785, 1, 0
      %v1850 = vsel %vm1786, 1, 0
      %v1851 = vsel %vm1787, 1, 0
      %v1852 = vsel %vm1788, 1, 0
      %v1853 = vsel %vm1789, 1, 0
      %v1854 = vsel %vm1790, 1, 0
      %v1855 = vsel %vm1791, 1, 0
      %v1856 = vsel %vm1792, 1, 0
      %v1857 = vsel %vm1793, 1, 0
      %v1858 = vsel %vm1794, 1, 0
      %v1859 = vsel %vm1795, 1, 0
      %v1860 = vsel %vm1796, 1, 0
      %v1861 = vsel %vm1797, 1, 0
      %v1862 = vsel %vm1798, 1, 0
      %v1863 = vsel %vm1799, 1, 0
      %v1864 = vsel %vm1800, 1, 0
      %v1865 = vsel %vm1801, 1, 0
      %v1866 = vsel %vm1802, 1, 0
      %v1867 = vcvt.s32.f32 %v1803
      %v1868 = vcvt.s32.f32 %v1804
      %v1869 = vcvt.s32.f32 %v1805
      %v1870 = vcvt.s32.f32 %v1806
      %v1871 = vcvt.s32.f32 %v1807
      %v1872 = vcvt.s32.f32 %v1808
      %v1873 = vcvt.s32.f32 %v1809
      %v1874 = vcvt.s32.f32 %v1810
      %v1875 = vcvt.s32.f32 %v1811
      %v1876 = vcvt.s32.f32 %v1812
      %v1877 = vcvt.s32.f32 %v1813
      %v1878 = vcvt.s32.f32 %v1814
      %v1879 = vcvt.s32.f32 %v1815
      %v1880 = vcvt.s32.f32 %v1816
      %v1881 = vcvt.s32.f32 %v1817
      %v1882 = vcvt.s32.f32 %v1818
      %v1883 = vcvt.s32.f32 %v1819
      %v1884 = vcvt.s32.f32 %v1820
      %v1885 = vcvt.s32.f32 %v1821
      %v1886 = vcvt.s32.f32 %v1822
      %v1887 = vcvt.s32.f32 %v1823
      %v1888 = vcvt.s32.f32 %v1824
      %v1889 = vcvt.s32.f32 %v1825
      %v1890 = vcvt.s32.f32 %v1826
      %v1891 = vcvt.s32.f32 %v1827
      %v1892 = vcvt.s32.f32 %v1828
      %v1893 = vcvt.s32.f32 %v1829
      %v1894 = vcvt.s32.f32 %v1830
      %v1895 = vcvt.s32.f32 %v1831
      %v1896 = vcvt.s32.f32 %v1832
      %v1897 = vcvt.s32.f32 %v1833
      %v1898 = vcvt.s32.f32 %v1834
      %v1899 = vcvt.s32.f32 %v1835
      %v1900 = vcvt.s32.f32 %v1836
      %v1901 = vcvt.s32.f32 %v1837
      %v1902 = vcvt.s32.f32 %v1838
      %v1903 = vcvt.s32.f32 %v1839
      %v1904 = vcvt.s32.f32 %v1840
      %v1905 = vcvt.s32.f32 %v1841
      %v1906 = vcvt.s32.f32 %v1842
      %v1907 = vcvt.s32.f32 %v1843
      %v1908 = vcvt.s32.f32 %v1844
      %v1909 = vcvt.s32.f32 %v1845
      %v1910 = vcvt.s32.f32 %v1846
      %v1911 = vcvt.s32.f32 %v1847
      %v1912 = vcvt.s32.f32 %v1848
      %v1913 = vcvt.s32.f32 %v1849
      %v1914 = vcvt.s32.f32 %v1850
      %v1915 = vcvt.s32.f32 %v1851
      %v1916 = vcvt.s32.f32 %v1852
      %v1917 = vcvt.s32.f32 %v1853
      %v1918 = vcvt.s32.f32 %v1854
      %v1919 = vcvt.s32.f32 %v1855
      %v1920 = vcvt.s32.f32 %v1856
      %v1921 = vcvt.s32.f32 %v1857
      %v1922 = vcvt.s32.f32 %v1858
      %v1923 = vcvt.s32.f32 %v1859
      %v1924 = vcvt.s32.f32 %v1860
      %v1925 = vcvt.s32.f32 %v1861
      %v1926 = vcvt.s32.f32 %v1862
      %v1927 = vcvt.s32.f32 %v1863
      %v1928 = vcvt.s32.f32 %v1864
      %v1929 = vcvt.s32.f32 %v1865
      %v1930 = vcvt.s32.f32 %v1866
      %s1931 = scalar_lea.vmem [#allocation2], 8
      %v1932 = vld [vmem:[%s1931] sm:$0xff]
      %v1933 = vld [vmem:[#allocation4] sm:$0xff]
      %v1935 = vcombine.high %v1932, %v1932
      %v1937 = vand.u32 %v1868, 4294901760
      %1938 = vmatprep.subr.mxu0 %v1937
      %v1939 = vand.u32 %v1867, 4294901760
      %1940 = vmatpush1.msra.mxu0 %v1939
      %v1941 = vand.u32 %v1870, 4294901760
      %1942 = vmatprep.subr.mxu0 %v1941
      %v1943 = vand.u32 %v1869, 4294901760
      %1944 = vmatpush1.msra.mxu0 %v1943
      %v1945 = vand.u32 %v1872, 4294901760
      %1946 = vmatprep.subr.mxu0 %v1945
      %v1947 = vand.u32 %v1871, 4294901760
      %1948 = vmatpush1.msra.mxu0 %v1947
      %v1949 = vand.u32 %v1874, 4294901760
      %1950 = vmatprep.subr.mxu0 %v1949
      %v1951 = vand.u32 %v1873, 4294901760
      %1952 = vmatpush1.msra.mxu0 %v1951
      %v1953 = vand.u32 %v1876, 4294901760
      %1954 = vmatprep.subr.mxu0 %v1953
      %v1955 = vand.u32 %v1875, 4294901760
      %1956 = vmatpush1.msra.mxu0 %v1955
      %v1957 = vand.u32 %v1878, 4294901760
      %1958 = vmatprep.subr.mxu0 %v1957
      %v1959 = vand.u32 %v1877, 4294901760
      %1960 = vmatpush1.msra.mxu0 %v1959
      %v1961 = vand.u32 %v1880, 4294901760
      %1962 = vmatprep.subr.mxu0 %v1961
      %v1963 = vand.u32 %v1879, 4294901760
      %1964 = vmatpush1.msra.mxu0 %v1963
      %v1965 = vand.u32 %v1882, 4294901760
      %1966 = vmatprep.subr.mxu0 %v1965
      %v1967 = vand.u32 %v1881, 4294901760
      %1968 = vmatpush1.msra.mxu0 %v1967
      %v1969 = vand.u32 %v1884, 4294901760
      %1970 = vmatprep.subr.mxu0 %v1969
      %v1971 = vand.u32 %v1883, 4294901760
      %1972 = vmatpush1.msra.mxu0 %v1971
      %v1973 = vand.u32 %v1886, 4294901760
      %1974 = vmatprep.subr.mxu0 %v1973
      %v1975 = vand.u32 %v1885, 4294901760
      %1976 = vmatpush1.msra.mxu0 %v1975
      %v1977 = vand.u32 %v1888, 4294901760
      %1978 = vmatprep.subr.mxu0 %v1977
      %v1979 = vand.u32 %v1887, 4294901760
      %1980 = vmatpush1.msra.mxu0 %v1979
      %v1981 = vand.u32 %v1890, 4294901760
      %1982 = vmatprep.subr.mxu0 %v1981
      %v1983 = vand.u32 %v1889, 4294901760
      %1984 = vmatpush1.msra.mxu0 %v1983
      %v1985 = vand.u32 %v1892, 4294901760
      %1986 = vmatprep.subr.mxu0 %v1985
      %v1987 = vand.u32 %v1891, 4294901760
      %1988 = vmatpush1.msra.mxu0 %v1987
      %v1989 = vand.u32 %v1894, 4294901760
      %1990 = vmatprep.subr.mxu0 %v1989
      %v1991 = vand.u32 %v1893, 4294901760
      %1992 = vmatpush1.msra.mxu0 %v1991
      %v1993 = vand.u32 %v1896, 4294901760
      %1994 = vmatprep.subr.mxu0 %v1993
      %v1995 = vand.u32 %v1895, 4294901760
      %1996 = vmatpush1.msra.mxu0 %v1995
      %v1997 = vand.u32 %v1898, 4294901760
      %1998 = vmatprep.subr.mxu0 %v1997
      %v1999 = vand.u32 %v1897, 4294901760
      %2000 = vmatpush1.msra.mxu0 %v1999
      %v2001 = vand.u32 %v1900, 4294901760
      %2002 = vmatprep.subr.mxu0 %v2001
      %v2003 = vand.u32 %v1899, 4294901760
      %2004 = vmatpush1.msra.mxu0 %v2003
      %v2005 = vand.u32 %v1902, 4294901760
      %2006 = vmatprep.subr.mxu0 %v2005
      %v2007 = vand.u32 %v1901, 4294901760
      %2008 = vmatpush1.msra.mxu0 %v2007
      %v2009 = vand.u32 %v1904, 4294901760
      %2010 = vmatprep.subr.mxu0 %v2009
      %v2011 = vand.u32 %v1903, 4294901760
      %2012 = vmatpush1.msra.mxu0 %v2011
      %v2013 = vand.u32 %v1906, 4294901760
      %2014 = vmatprep.subr.mxu0 %v2013
      %v2015 = vand.u32 %v1905, 4294901760
      %2016 = vmatpush1.msra.mxu0 %v2015
      %v2017 = vand.u32 %v1908, 4294901760
      %2018 = vmatprep.subr.mxu0 %v2017
      %v2019 = vand.u32 %v1907, 4294901760
      %2020 = vmatpush1.msra.mxu0 %v2019
      %v2021 = vand.u32 %v1910, 4294901760
      %2022 = vmatprep.subr.mxu0 %v2021
      %v2023 = vand.u32 %v1909, 4294901760
      %2024 = vmatpush1.msra.mxu0 %v2023
      %v2025 = vand.u32 %v1912, 4294901760
      %2026 = vmatprep.subr.mxu0 %v2025
      %v2027 = vand.u32 %v1911, 4294901760
      %2028 = vmatpush1.msra.mxu0 %v2027
      %v2029 = vand.u32 %v1914, 4294901760
      %2030 = vmatprep.subr.mxu0 %v2029
      %v2031 = vand.u32 %v1913, 4294901760
      %2032 = vmatpush1.msra.mxu0 %v2031
      %v2033 = vand.u32 %v1916, 4294901760
      %2034 = vmatprep.subr.mxu0 %v2033
      %v2035 = vand.u32 %v1915, 4294901760
      %2036 = vmatpush1.msra.mxu0 %v2035
      %v2037 = vand.u32 %v1918, 4294901760
      %2038 = vmatprep.subr.mxu0 %v2037
      %v2039 = vand.u32 %v1917, 4294901760
      %2040 = vmatpush1.msra.mxu0 %v2039
      %v2041 = vand.u32 %v1920, 4294901760
      %2042 = vmatprep.subr.mxu0 %v2041
      %v2043 = vand.u32 %v1919, 4294901760
      %2044 = vmatpush1.msra.mxu0 %v2043
      %v2045 = vand.u32 %v1922, 4294901760
      %2046 = vmatprep.subr.mxu0 %v2045
      %v2047 = vand.u32 %v1921, 4294901760
      %2048 = vmatpush1.msra.mxu0 %v2047
      %v2049 = vand.u32 %v1924, 4294901760
      %2050 = vmatprep.subr.mxu0 %v2049
      %v2051 = vand.u32 %v1923, 4294901760
      %2052 = vmatpush1.msra.mxu0 %v2051
      %v2053 = vand.u32 %v1926, 4294901760
      %2054 = vmatprep.subr.mxu0 %v2053
      %v2055 = vand.u32 %v1925, 4294901760
      %2056 = vmatpush1.msra.mxu0 %v2055
      %v2057 = vand.u32 %v1928, 4294901760
      %2058 = vmatprep.subr.mxu0 %v2057
      %v2059 = vand.u32 %v1927, 4294901760
      %2060 = vmatpush1.msra.mxu0 %v2059
      %v2061 = vand.u32 %v1930, 4294901760
      %2062 = vmatprep.subr.mxu0 %v2061
      %v2063 = vand.u32 %v1929, 4294901760
      %2064 = vmatpush1.msra.mxu0 %v2063
      %v2065 = vand.u32 %v1935, 4294901760
      %v2066 = vsub.f32 %v1935, %v2065
      %v2067 = vand.u32 %v2066, 4294901760
      %v2068 = vsub.f32 %v2066, %v2067
      %v2069 = vand.u32 %v2068, 4294901760
      %2070 = vmatprep.mubr.f32.mxu0 %v2069
      %v2071 = vand.u32 %v1932, 4294901760
      %v2072 = vsub.f32 %v1932, %v2071
      %v2073 = vand.u32 %v2072, 4294901760
      %v2074 = vsub.f32 %v2072, %v2073
      %v2075 = vand.u32 %v2074, 4294901760
      %2076 = vmatmul.mubr.f32.gmra.mrb[0].mxu0 %v2075
      %v2077 = vpop.f32.mrb[0].mxu0
      %v2078 = vadd.f32 0.0, %v2077
      %v2079 = vpop.f32.mrb[0].mxu0
      %v2080 = vadd.f32 0.0, %v2079
      %2081 = vdwg.mxu0
      %v2082 = vand.u32 %v1868, 4294901760
      %v2083 = vsub.f32 %v1868, %v2082
      %v2084 = vand.u32 %v2083, 4294901760
      %v2085 = vsub.f32 %v2083, %v2084
      %v2086 = vand.u32 %v2085, 4294901760
      %2087 = vmatprep.subr.mxu0 %v2086
      %v2088 = vand.u32 %v1867, 4294901760
      %v2089 = vsub.f32 %v1867, %v2088
      %v2090 = vand.u32 %v2089, 4294901760
      %v2091 = vsub.f32 %v2089, %v2090
      %v2092 = vand.u32 %v2091, 4294901760
      %2093 = vmatpush1.msra.mxu0 %v2092
      %v2094 = vand.u32 %v1870, 4294901760
      %v2095 = vsub.f32 %v1870, %v2094
      %v2096 = vand.u32 %v2095, 4294901760
      %v2097 = vsub.f32 %v2095, %v2096
      %v2098 = vand.u32 %v2097, 4294901760
      %2099 = vmatprep.subr.mxu0 %v2098
      %v2100 = vand.u32 %v1869, 4294901760
      %v2101 = vsub.f32 %v1869, %v2100
      %v2102 = vand.u32 %v2101, 4294901760
      %v2103 = vsub.f32 %v2101, %v2102
      %v2104 = vand.u32 %v2103, 4294901760
      %2105 = vmatpush1.msra.mxu0 %v2104
      %v2106 = vand.u32 %v1872, 4294901760
      %v2107 = vsub.f32 %v1872, %v2106
      %v2108 = vand.u32 %v2107, 4294901760
      %v2109 = vsub.f32 %v2107, %v2108
      %v2110 = vand.u32 %v2109, 4294901760
      %2111 = vmatprep.subr.mxu0 %v2110
      %v2112 = vand.u32 %v1871, 4294901760
      %v2113 = vsub.f32 %v1871, %v2112
      %v2114 = vand.u32 %v2113, 4294901760
      %v2115 = vsub.f32 %v2113, %v2114
      %v2116 = vand.u32 %v2115, 4294901760
      %2117 = vmatpush1.msra.mxu0 %v2116
      %v2118 = vand.u32 %v1874, 4294901760
      %v2119 = vsub.f32 %v1874, %v2118
      %v2120 = vand.u32 %v2119, 4294901760
      %v2121 = vsub.f32 %v2119, %v2120
      %v2122 = vand.u32 %v2121, 4294901760
      %2123 = vmatprep.subr.mxu0 %v2122
      %v2124 = vand.u32 %v1873, 4294901760
      %v2125 = vsub.f32 %v1873, %v2124
      %v2126 = vand.u32 %v2125, 4294901760
      %v2127 = vsub.f32 %v2125, %v2126
      %v2128 = vand.u32 %v2127, 4294901760
      %2129 = vmatpush1.msra.mxu0 %v2128
      %v2130 = vand.u32 %v1876, 4294901760
      %v2131 = vsub.f32 %v1876, %v2130
      %v2132 = vand.u32 %v2131, 4294901760
      %v2133 = vsub.f32 %v2131, %v2132
      %v2134 = vand.u32 %v2133, 4294901760
      %2135 = vmatprep.subr.mxu0 %v2134
      %v2136 = vand.u32 %v1875, 4294901760
      %v2137 = vsub.f32 %v1875, %v2136
      %v2138 = vand.u32 %v2137, 4294901760
      %v2139 = vsub.f32 %v2137, %v2138
      %v2140 = vand.u32 %v2139, 4294901760
      %2141 = vmatpush1.msra.mxu0 %v2140
      %v2142 = vand.u32 %v1878, 4294901760
      %v2143 = vsub.f32 %v1878, %v2142
      %v2144 = vand.u32 %v2143, 4294901760
      %v2145 = vsub.f32 %v2143, %v2144
      %v2146 = vand.u32 %v2145, 4294901760
      %2147 = vmatprep.subr.mxu0 %v2146
      %v2148 = vand.u32 %v1877, 4294901760
      %v2149 = vsub.f32 %v1877, %v2148
      %v2150 = vand.u32 %v2149, 4294901760
      %v2151 = vsub.f32 %v2149, %v2150
      %v2152 = vand.u32 %v2151, 4294901760
      %2153 = vmatpush1.msra.mxu0 %v2152
      %v2154 = vand.u32 %v1880, 4294901760
      %v2155 = vsub.f32 %v1880, %v2154
      %v2156 = vand.u32 %v2155, 4294901760
      %v2157 = vsub.f32 %v2155, %v2156
      %v2158 = vand.u32 %v2157, 4294901760
      %2159 = vmatprep.subr.mxu0 %v2158
      %v2160 = vand.u32 %v1879, 4294901760
      %v2161 = vsub.f32 %v1879, %v2160
      %v2162 = vand.u32 %v2161, 4294901760
      %v2163 = vsub.f32 %v2161, %v2162
      %v2164 = vand.u32 %v2163, 4294901760
      %2165 = vmatpush1.msra.mxu0 %v2164
      %v2166 = vand.u32 %v1882, 4294901760
      %v2167 = vsub.f32 %v1882, %v2166
      %v2168 = vand.u32 %v2167, 4294901760
      %v2169 = vsub.f32 %v2167, %v2168
      %v2170 = vand.u32 %v2169, 4294901760
      %2171 = vmatprep.subr.mxu0 %v2170
      %v2172 = vand.u32 %v1881, 4294901760
      %v2173 = vsub.f32 %v1881, %v2172
      %v2174 = vand.u32 %v2173, 4294901760
      %v2175 = vsub.f32 %v2173, %v2174
      %v2176 = vand.u32 %v2175, 4294901760
      %2177 = vmatpush1.msra.mxu0 %v2176
      %v2178 = vand.u32 %v1884, 4294901760
      %v2179 = vsub.f32 %v1884, %v2178
      %v2180 = vand.u32 %v2179, 4294901760
      %v2181 = vsub.f32 %v2179, %v2180
      %v2182 = vand.u32 %v2181, 4294901760
      %2183 = vmatprep.subr.mxu0 %v2182
      %v2184 = vand.u32 %v1883, 4294901760
      %v2185 = vsub.f32 %v1883, %v2184
      %v2186 = vand.u32 %v2185, 4294901760
      %v2187 = vsub.f32 %v2185, %v2186
      %v2188 = vand.u32 %v2187, 4294901760
      %2189 = vmatpush1.msra.mxu0 %v2188
      %v2190 = vand.u32 %v1886, 4294901760
      %v2191 = vsub.f32 %v1886, %v2190
      %v2192 = vand.u32 %v2191, 4294901760
      %v2193 = vsub.f32 %v2191, %v2192
      %v2194 = vand.u32 %v2193, 4294901760
      %2195 = vmatprep.subr.mxu0 %v2194
      %v2196 = vand.u32 %v1885, 4294901760
      %v2197 = vsub.f32 %v1885, %v2196
      %v2198 = vand.u32 %v2197, 4294901760
      %v2199 = vsub.f32 %v2197, %v2198
      %v2200 = vand.u32 %v2199, 4294901760
      %2201 = vmatpush1.msra.mxu0 %v2200
      %v2202 = vand.u32 %v1888, 4294901760
      %v2203 = vsub.f32 %v1888, %v2202
      %v2204 = vand.u32 %v2203, 4294901760
      %v2205 = vsub.f32 %v2203, %v2204
      %v2206 = vand.u32 %v2205, 4294901760
      %2207 = vmatprep.subr.mxu0 %v2206
      %v2208 = vand.u32 %v1887, 4294901760
      %v2209 = vsub.f32 %v1887, %v2208
      %v2210 = vand.u32 %v2209, 4294901760
      %v2211 = vsub.f32 %v2209, %v2210
      %v2212 = vand.u32 %v2211, 4294901760
      %2213 = vmatpush1.msra.mxu0 %v2212
      %v2214 = vand.u32 %v1890, 4294901760
      %v2215 = vsub.f32 %v1890, %v2214
      %v2216 = vand.u32 %v2215, 4294901760
      %v2217 = vsub.f32 %v2215, %v2216
      %v2218 = vand.u32 %v2217, 4294901760
      %2219 = vmatprep.subr.mxu0 %v2218
      %v2220 = vand.u32 %v1889, 4294901760
      %v2221 = vsub.f32 %v1889, %v2220
      %v2222 = vand.u32 %v2221, 4294901760
      %v2223 = vsub.f32 %v2221, %v2222
      %v2224 = vand.u32 %v2223, 4294901760
      %2225 = vmatpush1.msra.mxu0 %v2224
      %v2226 = vand.u32 %v1892, 4294901760
      %v2227 = vsub.f32 %v1892, %v2226
      %v2228 = vand.u32 %v2227, 4294901760
      %v2229 = vsub.f32 %v2227, %v2228
      %v2230 = vand.u32 %v2229, 4294901760
      %2231 = vmatprep.subr.mxu0 %v2230
      %v2232 = vand.u32 %v1891, 4294901760
      %v2233 = vsub.f32 %v1891, %v2232
      %v2234 = vand.u32 %v2233, 4294901760
      %v2235 = vsub.f32 %v2233, %v2234
      %v2236 = vand.u32 %v2235, 4294901760
      %2237 = vmatpush1.msra.mxu0 %v2236
      %v2238 = vand.u32 %v1894, 4294901760
      %v2239 = vsub.f32 %v1894, %v2238
      %v2240 = vand.u32 %v2239, 4294901760
      %v2241 = vsub.f32 %v2239, %v2240
      %v2242 = vand.u32 %v2241, 4294901760
      %2243 = vmatprep.subr.mxu0 %v2242
      %v2244 = vand.u32 %v1893, 4294901760
      %v2245 = vsub.f32 %v1893, %v2244
      %v2246 = vand.u32 %v2245, 4294901760
      %v2247 = vsub.f32 %v2245, %v2246
      %v2248 = vand.u32 %v2247, 4294901760
      %2249 = vmatpush1.msra.mxu0 %v2248
      %v2250 = vand.u32 %v1896, 4294901760
      %v2251 = vsub.f32 %v1896, %v2250
      %v2252 = vand.u32 %v2251, 4294901760
      %v2253 = vsub.f32 %v2251, %v2252
      %v2254 = vand.u32 %v2253, 4294901760
      %2255 = vmatprep.subr.mxu0 %v2254
      %v2256 = vand.u32 %v1895, 4294901760
      %v2257 = vsub.f32 %v1895, %v2256
      %v2258 = vand.u32 %v2257, 4294901760
      %v2259 = vsub.f32 %v2257, %v2258
      %v2260 = vand.u32 %v2259, 4294901760
      %2261 = vmatpush1.msra.mxu0 %v2260
      %v2262 = vand.u32 %v1898, 4294901760
      %v2263 = vsub.f32 %v1898, %v2262
      %v2264 = vand.u32 %v2263, 4294901760
      %v2265 = vsub.f32 %v2263, %v2264
      %v2266 = vand.u32 %v2265, 4294901760
      %2267 = vmatprep.subr.mxu0 %v2266
      %v2268 = vand.u32 %v1897, 4294901760
      %v2269 = vsub.f32 %v1897, %v2268
      %v2270 = vand.u32 %v2269, 4294901760
      %v2271 = vsub.f32 %v2269, %v2270
      %v2272 = vand.u32 %v2271, 4294901760
      %2273 = vmatpush1.msra.mxu0 %v2272
      %v2274 = vand.u32 %v1900, 4294901760
      %v2275 = vsub.f32 %v1900, %v2274
      %v2276 = vand.u32 %v2275, 4294901760
      %v2277 = vsub.f32 %v2275, %v2276
      %v2278 = vand.u32 %v2277, 4294901760
      %2279 = vmatprep.subr.mxu0 %v2278
      %v2280 = vand.u32 %v1899, 4294901760
      %v2281 = vsub.f32 %v1899, %v2280
      %v2282 = vand.u32 %v2281, 4294901760
      %v2283 = vsub.f32 %v2281, %v2282
      %v2284 = vand.u32 %v2283, 4294901760
      %2285 = vmatpush1.msra.mxu0 %v2284
      %v2286 = vand.u32 %v1902, 4294901760
      %v2287 = vsub.f32 %v1902, %v2286
      %v2288 = vand.u32 %v2287, 4294901760
      %v2289 = vsub.f32 %v2287, %v2288
      %v2290 = vand.u32 %v2289, 4294901760
      %2291 = vmatprep.subr.mxu0 %v2290
      %v2292 = vand.u32 %v1901, 4294901760
      %v2293 = vsub.f32 %v1901, %v2292
      %v2294 = vand.u32 %v2293, 4294901760
      %v2295 = vsub.f32 %v2293, %v2294
      %v2296 = vand.u32 %v2295, 4294901760
      %2297 = vmatpush1.msra.mxu0 %v2296
      %v2298 = vand.u32 %v1904, 4294901760
      %v2299 = vsub.f32 %v1904, %v2298
      %v2300 = vand.u32 %v2299, 4294901760
      %v2301 = vsub.f32 %v2299, %v2300
      %v2302 = vand.u32 %v2301, 4294901760
      %2303 = vmatprep.subr.mxu0 %v2302
      %v2304 = vand.u32 %v1903, 4294901760
      %v2305 = vsub.f32 %v1903, %v2304
      %v2306 = vand.u32 %v2305, 4294901760
      %v2307 = vsub.f32 %v2305, %v2306
      %v2308 = vand.u32 %v2307, 4294901760
      %2309 = vmatpush1.msra.mxu0 %v2308
      %v2310 = vand.u32 %v1906, 4294901760
      %v2311 = vsub.f32 %v1906, %v2310
      %v2312 = vand.u32 %v2311, 4294901760
      %v2313 = vsub.f32 %v2311, %v2312
      %v2314 = vand.u32 %v2313, 4294901760
      %2315 = vmatprep.subr.mxu0 %v2314
      %v2316 = vand.u32 %v1905, 4294901760
      %v2317 = vsub.f32 %v1905, %v2316
      %v2318 = vand.u32 %v2317, 4294901760
      %v2319 = vsub.f32 %v2317, %v2318
      %v2320 = vand.u32 %v2319, 4294901760
      %2321 = vmatpush1.msra.mxu0 %v2320
      %v2322 = vand.u32 %v1908, 4294901760
      %v2323 = vsub.f32 %v1908, %v2322
      %v2324 = vand.u32 %v2323, 4294901760
      %v2325 = vsub.f32 %v2323, %v2324
      %v2326 = vand.u32 %v2325, 4294901760
      %2327 = vmatprep.subr.mxu0 %v2326
      %v2328 = vand.u32 %v1907, 4294901760
      %v2329 = vsub.f32 %v1907, %v2328
      %v2330 = vand.u32 %v2329, 4294901760
      %v2331 = vsub.f32 %v2329, %v2330
      %v2332 = vand.u32 %v2331, 4294901760
      %2333 = vmatpush1.msra.mxu0 %v2332
      %v2334 = vand.u32 %v1910, 4294901760
      %v2335 = vsub.f32 %v1910, %v2334
      %v2336 = vand.u32 %v2335, 4294901760
      %v2337 = vsub.f32 %v2335, %v2336
      %v2338 = vand.u32 %v2337, 4294901760
      %2339 = vmatprep.subr.mxu0 %v2338
      %v2340 = vand.u32 %v1909, 4294901760
      %v2341 = vsub.f32 %v1909, %v2340
      %v2342 = vand.u32 %v2341, 4294901760
      %v2343 = vsub.f32 %v2341, %v2342
      %v2344 = vand.u32 %v2343, 4294901760
      %2345 = vmatpush1.msra.mxu0 %v2344
      %v2346 = vand.u32 %v1912, 4294901760
      %v2347 = vsub.f32 %v1912, %v2346
      %v2348 = vand.u32 %v2347, 4294901760
      %v2349 = vsub.f32 %v2347, %v2348
      %v2350 = vand.u32 %v2349, 4294901760
      %2351 = vmatprep.subr.mxu0 %v2350
      %v2352 = vand.u32 %v1911, 4294901760
      %v2353 = vsub.f32 %v1911, %v2352
      %v2354 = vand.u32 %v2353, 4294901760
      %v2355 = vsub.f32 %v2353, %v2354
      %v2356 = vand.u32 %v2355, 4294901760
      %2357 = vmatpush1.msra.mxu0 %v2356
      %v2358 = vand.u32 %v1914, 4294901760
      %v2359 = vsub.f32 %v1914, %v2358
      %v2360 = vand.u32 %v2359, 4294901760
      %v2361 = vsub.f32 %v2359, %v2360
      %v2362 = vand.u32 %v2361, 4294901760
      %2363 = vmatprep.subr.mxu0 %v2362
      %v2364 = vand.u32 %v1913, 4294901760
      %v2365 = vsub.f32 %v1913, %v2364
      %v2366 = vand.u32 %v2365, 4294901760
      %v2367 = vsub.f32 %v2365, %v2366
      %v2368 = vand.u32 %v2367, 4294901760
      %2369 = vmatpush1.msra.mxu0 %v2368
      %v2370 = vand.u32 %v1916, 4294901760
      %v2371 = vsub.f32 %v1916, %v2370
      %v2372 = vand.u32 %v2371, 4294901760
      %v2373 = vsub.f32 %v2371, %v2372
      %v2374 = vand.u32 %v2373, 4294901760
      %2375 = vmatprep.subr.mxu0 %v2374
      %v2376 = vand.u32 %v1915, 4294901760
      %v2377 = vsub.f32 %v1915, %v2376
      %v2378 = vand.u32 %v2377, 4294901760
      %v2379 = vsub.f32 %v2377, %v2378
      %v2380 = vand.u32 %v2379, 4294901760
      %2381 = vmatpush1.msra.mxu0 %v2380
      %v2382 = vand.u32 %v1918, 4294901760
      %v2383 = vsub.f32 %v1918, %v2382
      %v2384 = vand.u32 %v2383, 4294901760
      %v2385 = vsub.f32 %v2383, %v2384
      %v2386 = vand.u32 %v2385, 4294901760
      %2387 = vmatprep.subr.mxu0 %v2386
      %v2388 = vand.u32 %v1917, 4294901760
      %v2389 = vsub.f32 %v1917, %v2388
      %v2390 = vand.u32 %v2389, 4294901760
      %v2391 = vsub.f32 %v2389, %v2390
      %v2392 = vand.u32 %v2391, 4294901760
      %2393 = vmatpush1.msra.mxu0 %v2392
      %v2394 = vand.u32 %v1920, 4294901760
      %v2395 = vsub.f32 %v1920, %v2394
      %v2396 = vand.u32 %v2395, 4294901760
      %v2397 = vsub.f32 %v2395, %v2396
      %v2398 = vand.u32 %v2397, 4294901760
      %2399 = vmatprep.subr.mxu0 %v2398
      %v2400 = vand.u32 %v1919, 4294901760
      %v2401 = vsub.f32 %v1919, %v2400
      %v2402 = vand.u32 %v2401, 4294901760
      %v2403 = vsub.f32 %v2401, %v2402
      %v2404 = vand.u32 %v2403, 4294901760
      %2405 = vmatpush1.msra.mxu0 %v2404
      %v2406 = vand.u32 %v1922, 4294901760
      %v2407 = vsub.f32 %v1922, %v2406
      %v2408 = vand.u32 %v2407, 4294901760
      %v2409 = vsub.f32 %v2407, %v2408
      %v2410 = vand.u32 %v2409, 4294901760
      %2411 = vmatprep.subr.mxu0 %v2410
      %v2412 = vand.u32 %v1921, 4294901760
      %v2413 = vsub.f32 %v1921, %v2412
      %v2414 = vand.u32 %v2413, 4294901760
      %v2415 = vsub.f32 %v2413, %v2414
      %v2416 = vand.u32 %v2415, 4294901760
      %2417 = vmatpush1.msra.mxu0 %v2416
      %v2418 = vand.u32 %v1924, 4294901760
      %v2419 = vsub.f32 %v1924, %v2418
      %v2420 = vand.u32 %v2419, 4294901760
      %v2421 = vsub.f32 %v2419, %v2420
      %v2422 = vand.u32 %v2421, 4294901760
      %2423 = vmatprep.subr.mxu0 %v2422
      %v2424 = vand.u32 %v1923, 4294901760
      %v2425 = vsub.f32 %v1923, %v2424
      %v2426 = vand.u32 %v2425, 4294901760
      %v2427 = vsub.f32 %v2425, %v2426
      %v2428 = vand.u32 %v2427, 4294901760
      %2429 = vmatpush1.msra.mxu0 %v2428
      %v2430 = vand.u32 %v1926, 4294901760
      %v2431 = vsub.f32 %v1926, %v2430
      %v2432 = vand.u32 %v2431, 4294901760
      %v2433 = vsub.f32 %v2431, %v2432
      %v2434 = vand.u32 %v2433, 4294901760
      %2435 = vmatprep.subr.mxu0 %v2434
      %v2436 = vand.u32 %v1925, 4294901760
      %v2437 = vsub.f32 %v1925, %v2436
      %v2438 = vand.u32 %v2437, 4294901760
      %v2439 = vsub.f32 %v2437, %v2438
      %v2440 = vand.u32 %v2439, 4294901760
      %2441 = vmatpush1.msra.mxu0 %v2440
      %v2442 = vand.u32 %v1928, 4294901760
      %v2443 = vsub.f32 %v1928, %v2442
      %v2444 = vand.u32 %v2443, 4294901760
      %v2445 = vsub.f32 %v2443, %v2444
      %v2446 = vand.u32 %v2445, 4294901760
      %2447 = vmatprep.subr.mxu0 %v2446
      %v2448 = vand.u32 %v1927, 4294901760
      %v2449 = vsub.f32 %v1927, %v2448
      %v2450 = vand.u32 %v2449, 4294901760
      %v2451 = vsub.f32 %v2449, %v2450
      %v2452 = vand.u32 %v2451, 4294901760
      %2453 = vmatpush1.msra.mxu0 %v2452
      %v2454 = vand.u32 %v1930, 4294901760
      %v2455 = vsub.f32 %v1930, %v2454
      %v2456 = vand.u32 %v2455, 4294901760
      %v2457 = vsub.f32 %v2455, %v2456
      %v2458 = vand.u32 %v2457, 4294901760
      %2459 = vmatprep.subr.mxu0 %v2458
      %v2460 = vand.u32 %v1929, 4294901760
      %v2461 = vsub.f32 %v1929, %v2460
      %v2462 = vand.u32 %v2461, 4294901760
      %v2463 = vsub.f32 %v2461, %v2462
      %v2464 = vand.u32 %v2463, 4294901760
      %2465 = vmatpush1.msra.mxu0 %v2464
      %v2466 = vand.u32 %v1935, 4294901760
      %2467 = vmatprep.mubr.f32.mxu0 %v2466
      %v2468 = vand.u32 %v1932, 4294901760
      %2469 = vmatmul.mubr.f32.gmra.mrb[0].mxu0 %v2468
      %v2470 = vpop.f32.mrb[0].mxu0
      %v2471 = vadd.f32 %v2078, %v2470
      %v2472 = vpop.f32.mrb[0].mxu0
      %v2473 = vadd.f32 %v2080, %v2472
      %2474 = vdwg.mxu0
      %v2475 = vand.u32 %v1868, 4294901760
      %v2476 = vsub.f32 %v1868, %v2475
      %2477 = vmatprep.subr.mxu0 %v2476
      %v2478 = vand.u32 %v1867, 4294901760
      %v2479 = vsub.f32 %v1867, %v2478
      %2480 = vmatpush1.msra.mxu0 %v2479
      %v2481 = vand.u32 %v1870, 4294901760
      %v2482 = vsub.f32 %v1870, %v2481
      %2483 = vmatprep.subr.mxu0 %v2482
      %v2484 = vand.u32 %v1869, 4294901760
      %v2485 = vsub.f32 %v1869, %v2484
      %2486 = vmatpush1.msra.mxu0 %v2485
      %v2487 = vand.u32 %v1872, 4294901760
      %v2488 = vsub.f32 %v1872, %v2487
      %2489 = vmatprep.subr.mxu0 %v2488
      %v2490 = vand.u32 %v1871, 4294901760
      %v2491 = vsub.f32 %v1871, %v2490
      %2492 = vmatpush1.msra.mxu0 %v2491
      %v2493 = vand.u32 %v1874, 4294901760
      %v2494 = vsub.f32 %v1874, %v2493
      %2495 = vmatprep.subr.mxu0 %v2494
      %v2496 = vand.u32 %v1873, 4294901760
      %v2497 = vsub.f32 %v1873, %v2496
      %2498 = vmatpush1.msra.mxu0 %v2497
      %v2499 = vand.u32 %v1876, 4294901760
      %v2500 = vsub.f32 %v1876, %v2499
      %2501 = vmatprep.subr.mxu0 %v2500
      %v2502 = vand.u32 %v1875, 4294901760
      %v2503 = vsub.f32 %v1875, %v2502
      %2504 = vmatpush1.msra.mxu0 %v2503
      %v2505 = vand.u32 %v1878, 4294901760
      %v2506 = vsub.f32 %v1878, %v2505
      %2507 = vmatprep.subr.mxu0 %v2506
      %v2508 = vand.u32 %v1877, 4294901760
      %v2509 = vsub.f32 %v1877, %v2508
      %2510 = vmatpush1.msra.mxu0 %v2509
      %v2511 = vand.u32 %v1880, 4294901760
      %v2512 = vsub.f32 %v1880, %v2511
      %2513 = vmatprep.subr.mxu0 %v2512
      %v2514 = vand.u32 %v1879, 4294901760
      %v2515 = vsub.f32 %v1879, %v2514
      %2516 = vmatpush1.msra.mxu0 %v2515
      %v2517 = vand.u32 %v1882, 4294901760
      %v2518 = vsub.f32 %v1882, %v2517
      %2519 = vmatprep.subr.mxu0 %v2518
      %v2520 = vand.u32 %v1881, 4294901760
      %v2521 = vsub.f32 %v1881, %v2520
      %2522 = vmatpush1.msra.mxu0 %v2521
      %v2523 = vand.u32 %v1884, 4294901760
      %v2524 = vsub.f32 %v1884, %v2523
      %2525 = vmatprep.subr.mxu0 %v2524
      %v2526 = vand.u32 %v1883, 4294901760
      %v2527 = vsub.f32 %v1883, %v2526
      %2528 = vmatpush1.msra.mxu0 %v2527
      %v2529 = vand.u32 %v1886, 4294901760
      %v2530 = vsub.f32 %v1886, %v2529
      %2531 = vmatprep.subr.mxu0 %v2530
      %v2532 = vand.u32 %v1885, 4294901760
      %v2533 = vsub.f32 %v1885, %v2532
      %2534 = vmatpush1.msra.mxu0 %v2533
      %v2535 = vand.u32 %v1888, 4294901760
      %v2536 = vsub.f32 %v1888, %v2535
      %2537 = vmatprep.subr.mxu0 %v2536
      %v2538 = vand.u32 %v1887, 4294901760
      %v2539 = vsub.f32 %v1887, %v2538
      %2540 = vmatpush1.msra.mxu0 %v2539
      %v2541 = vand.u32 %v1890, 4294901760
      %v2542 = vsub.f32 %v1890, %v2541
      %2543 = vmatprep.subr.mxu0 %v2542
      %v2544 = vand.u32 %v1889, 4294901760
      %v2545 = vsub.f32 %v1889, %v2544
      %2546 = vmatpush1.msra.mxu0 %v2545
      %v2547 = vand.u32 %v1892, 4294901760
      %v2548 = vsub.f32 %v1892, %v2547
      %2549 = vmatprep.subr.mxu0 %v2548
      %v2550 = vand.u32 %v1891, 4294901760
      %v2551 = vsub.f32 %v1891, %v2550
      %2552 = vmatpush1.msra.mxu0 %v2551
      %v2553 = vand.u32 %v1894, 4294901760
      %v2554 = vsub.f32 %v1894, %v2553
      %2555 = vmatprep.subr.mxu0 %v2554
      %v2556 = vand.u32 %v1893, 4294901760
      %v2557 = vsub.f32 %v1893, %v2556
      %2558 = vmatpush1.msra.mxu0 %v2557
      %v2559 = vand.u32 %v1896, 4294901760
      %v2560 = vsub.f32 %v1896, %v2559
      %2561 = vmatprep.subr.mxu0 %v2560
      %v2562 = vand.u32 %v1895, 4294901760
      %v2563 = vsub.f32 %v1895, %v2562
      %2564 = vmatpush1.msra.mxu0 %v2563
      %v2565 = vand.u32 %v1898, 4294901760
      %v2566 = vsub.f32 %v1898, %v2565
      %2567 = vmatprep.subr.mxu0 %v2566
      %v2568 = vand.u32 %v1897, 4294901760
      %v2569 = vsub.f32 %v1897, %v2568
      %2570 = vmatpush1.msra.mxu0 %v2569
      %v2571 = vand.u32 %v1900, 4294901760
      %v2572 = vsub.f32 %v1900, %v2571
      %2573 = vmatprep.subr.mxu0 %v2572
      %v2574 = vand.u32 %v1899, 4294901760
      %v2575 = vsub.f32 %v1899, %v2574
      %2576 = vmatpush1.msra.mxu0 %v2575
      %v2577 = vand.u32 %v1902, 4294901760
      %v2578 = vsub.f32 %v1902, %v2577
      %2579 = vmatprep.subr.mxu0 %v2578
      %v2580 = vand.u32 %v1901, 4294901760
      %v2581 = vsub.f32 %v1901, %v2580
      %2582 = vmatpush1.msra.mxu0 %v2581
      %v2583 = vand.u32 %v1904, 4294901760
      %v2584 = vsub.f32 %v1904, %v2583
      %2585 = vmatprep.subr.mxu0 %v2584
      %v2586 = vand.u32 %v1903, 4294901760
      %v2587 = vsub.f32 %v1903, %v2586
      %2588 = vmatpush1.msra.mxu0 %v2587
      %v2589 = vand.u32 %v1906, 4294901760
      %v2590 = vsub.f32 %v1906, %v2589
      %2591 = vmatprep.subr.mxu0 %v2590
      %v2592 = vand.u32 %v1905, 4294901760
      %v2593 = vsub.f32 %v1905, %v2592
      %2594 = vmatpush1.msra.mxu0 %v2593
      %v2595 = vand.u32 %v1908, 4294901760
      %v2596 = vsub.f32 %v1908, %v2595
      %2597 = vmatprep.subr.mxu0 %v2596
      %v2598 = vand.u32 %v1907, 4294901760
      %v2599 = vsub.f32 %v1907, %v2598
      %2600 = vmatpush1.msra.mxu0 %v2599
      %v2601 = vand.u32 %v1910, 4294901760
      %v2602 = vsub.f32 %v1910, %v2601
      %2603 = vmatprep.subr.mxu0 %v2602
      %v2604 = vand.u32 %v1909, 4294901760
      %v2605 = vsub.f32 %v1909, %v2604
      %2606 = vmatpush1.msra.mxu0 %v2605
      %v2607 = vand.u32 %v1912, 4294901760
      %v2608 = vsub.f32 %v1912, %v2607
      %2609 = vmatprep.subr.mxu0 %v2608
      %v2610 = vand.u32 %v1911, 4294901760
      %v2611 = vsub.f32 %v1911, %v2610
      %2612 = vmatpush1.msra.mxu0 %v2611
      %v2613 = vand.u32 %v1914, 4294901760
      %v2614 = vsub.f32 %v1914, %v2613
      %2615 = vmatprep.subr.mxu0 %v2614
      %v2616 = vand.u32 %v1913, 4294901760
      %v2617 = vsub.f32 %v1913, %v2616
      %2618 = vmatpush1.msra.mxu0 %v2617
      %v2619 = vand.u32 %v1916, 4294901760
      %v2620 = vsub.f32 %v1916, %v2619
      %2621 = vmatprep.subr.mxu0 %v2620
      %v2622 = vand.u32 %v1915, 4294901760
      %v2623 = vsub.f32 %v1915, %v2622
      %2624 = vmatpush1.msra.mxu0 %v2623
      %v2625 = vand.u32 %v1918, 4294901760
      %v2626 = vsub.f32 %v1918, %v2625
      %2627 = vmatprep.subr.mxu0 %v2626
      %v2628 = vand.u32 %v1917, 4294901760
      %v2629 = vsub.f32 %v1917, %v2628
      %2630 = vmatpush1.msra.mxu0 %v2629
      %v2631 = vand.u32 %v1920, 4294901760
      %v2632 = vsub.f32 %v1920, %v2631
      %2633 = vmatprep.subr.mxu0 %v2632
      %v2634 = vand.u32 %v1919, 4294901760
      %v2635 = vsub.f32 %v1919, %v2634
      %2636 = vmatpush1.msra.mxu0 %v2635
      %v2637 = vand.u32 %v1922, 4294901760
      %v2638 = vsub.f32 %v1922, %v2637
      %2639 = vmatprep.subr.mxu0 %v2638
      %v2640 = vand.u32 %v1921, 4294901760
      %v2641 = vsub.f32 %v1921, %v2640
      %2642 = vmatpush1.msra.mxu0 %v2641
      %v2643 = vand.u32 %v1924, 4294901760
      %v2644 = vsub.f32 %v1924, %v2643
      %2645 = vmatprep.subr.mxu0 %v2644
      %v2646 = vand.u32 %v1923, 4294901760
      %v2647 = vsub.f32 %v1923, %v2646
      %2648 = vmatpush1.msra.mxu0 %v2647
      %v2649 = vand.u32 %v1926, 4294901760
      %v2650 = vsub.f32 %v1926, %v2649
      %2651 = vmatprep.subr.mxu0 %v2650
      %v2652 = vand.u32 %v1925, 4294901760
      %v2653 = vsub.f32 %v1925, %v2652
      %2654 = vmatpush1.msra.mxu0 %v2653
      %v2655 = vand.u32 %v1928, 4294901760
      %v2656 = vsub.f32 %v1928, %v2655
      %2657 = vmatprep.subr.mxu0 %v2656
      %v2658 = vand.u32 %v1927, 4294901760
      %v2659 = vsub.f32 %v1927, %v2658
      %2660 = vmatpush1.msra.mxu0 %v2659
      %v2661 = vand.u32 %v1930, 4294901760
      %v2662 = vsub.f32 %v1930, %v2661
      %2663 = vmatprep.subr.mxu0 %v2662
      %v2664 = vand.u32 %v1929, 4294901760
      %v2665 = vsub.f32 %v1929, %v2664
      %2666 = vmatpush1.msra.mxu0 %v2665
      %v2667 = vand.u32 %v1935, 4294901760
      %v2668 = vsub.f32 %v1935, %v2667
      %2669 = vmatprep.mubr.f32.mxu0 %v2668
      %v2670 = vand.u32 %v1932, 4294901760
      %v2671 = vsub.f32 %v1932, %v2670
      %2672 = vmatmul.mubr.f32.gmra.mrb[0].mxu0 %v2671
      %v2673 = vpop.f32.mrb[0].mxu0
      %v2674 = vadd.f32 %v2471, %v2673
      %v2675 = vpop.f32.mrb[0].mxu0
      %v2676 = vadd.f32 %v2473, %v2675
      %2677 = vdwg.mxu0
      %v2678 = vand.u32 %v1868, 4294901760
      %2679 = vmatprep.subr.mxu0 %v2678
      %v2680 = vand.u32 %v1867, 4294901760
      %2681 = vmatpush1.msra.mxu0 %v2680
      %v2682 = vand.u32 %v1870, 4294901760
      %2683 = vmatprep.subr.mxu0 %v2682
      %v2684 = vand.u32 %v1869, 4294901760
      %2685 = vmatpush1.msra.mxu0 %v2684
      %v2686 = vand.u32 %v1872, 4294901760
      %2687 = vmatprep.subr.mxu0 %v2686
      %v2688 = vand.u32 %v1871, 4294901760
      %2689 = vmatpush1.msra.mxu0 %v2688
      %v2690 = vand.u32 %v1874, 4294901760
      %2691 = vmatprep.subr.mxu0 %v2690
      %v2692 = vand.u32 %v1873, 4294901760
      %2693 = vmatpush1.msra.mxu0 %v2692
      %v2694 = vand.u32 %v1876, 4294901760
      %2695 = vmatprep.subr.mxu0 %v2694
      %v2696 = vand.u32 %v1875, 4294901760
      %2697 = vmatpush1.msra.mxu0 %v2696
      %v2698 = vand.u32 %v1878, 4294901760
      %2699 = vmatprep.subr.mxu0 %v2698
      %v2700 = vand.u32 %v1877, 4294901760
      %2701 = vmatpush1.msra.mxu0 %v2700
      %v2702 = vand.u32 %v1880, 4294901760
      %2703 = vmatprep.subr.mxu0 %v2702
      %v2704 = vand.u32 %v1879, 4294901760
      %2705 = vmatpush1.msra.mxu0 %v2704
      %v2706 = vand.u32 %v1882, 4294901760
      %2707 = vmatprep.subr.mxu0 %v2706
      %v2708 = vand.u32 %v1881, 4294901760
      %2709 = vmatpush1.msra.mxu0 %v2708
      %v2710 = vand.u32 %v1884, 4294901760
      %2711 = vmatprep.subr.mxu0 %v2710
      %v2712 = vand.u32 %v1883, 4294901760
      %2713 = vmatpush1.msra.mxu0 %v2712
      %v2714 = vand.u32 %v1886, 4294901760
      %2715 = vmatprep.subr.mxu0 %v2714
      %v2716 = vand.u32 %v1885, 4294901760
      %2717 = vmatpush1.msra.mxu0 %v2716
      %v2718 = vand.u32 %v1888, 4294901760
      %2719 = vmatprep.subr.mxu0 %v2718
      %v2720 = vand.u32 %v1887, 4294901760
      %2721 = vmatpush1.msra.mxu0 %v2720
      %v2722 = vand.u32 %v1890, 4294901760
      %2723 = vmatprep.subr.mxu0 %v2722
      %v2724 = vand.u32 %v1889, 4294901760
      %2725 = vmatpush1.msra.mxu0 %v2724
      %v2726 = vand.u32 %v1892, 4294901760
      %2727 = vmatprep.subr.mxu0 %v2726
      %v2728 = vand.u32 %v1891, 4294901760
      %2729 = vmatpush1.msra.mxu0 %v2728
      %v2730 = vand.u32 %v1894, 4294901760
      %2731 = vmatprep.subr.mxu0 %v2730
      %v2732 = vand.u32 %v1893, 4294901760
      %2733 = vmatpush1.msra.mxu0 %v2732
      %v2734 = vand.u32 %v1896, 4294901760
      %2735 = vmatprep.subr.mxu0 %v2734
      %v2736 = vand.u32 %v1895, 4294901760
      %2737 = vmatpush1.msra.mxu0 %v2736
      %v2738 = vand.u32 %v1898, 4294901760
      %2739 = vmatprep.subr.mxu0 %v2738
      %v2740 = vand.u32 %v1897, 4294901760
      %2741 = vmatpush1.msra.mxu0 %v2740
      %v2742 = vand.u32 %v1900, 4294901760
      %2743 = vmatprep.subr.mxu0 %v2742
      %v2744 = vand.u32 %v1899, 4294901760
      %2745 = vmatpush1.msra.mxu0 %v2744
      %v2746 = vand.u32 %v1902, 4294901760
      %2747 = vmatprep.subr.mxu0 %v2746
      %v2748 = vand.u32 %v1901, 4294901760
      %2749 = vmatpush1.msra.mxu0 %v2748
      %v2750 = vand.u32 %v1904, 4294901760
      %2751 = vmatprep.subr.mxu0 %v2750
      %v2752 = vand.u32 %v1903, 4294901760
      %2753 = vmatpush1.msra.mxu0 %v2752
      %v2754 = vand.u32 %v1906, 4294901760
      %2755 = vmatprep.subr.mxu0 %v2754
      %v2756 = vand.u32 %v1905, 4294901760
      %2757 = vmatpush1.msra.mxu0 %v2756
      %v2758 = vand.u32 %v1908, 4294901760
      %2759 = vmatprep.subr.mxu0 %v2758
      %v2760 = vand.u32 %v1907, 4294901760
      %2761 = vmatpush1.msra.mxu0 %v2760
      %v2762 = vand.u32 %v1910, 4294901760
      %2763 = vmatprep.subr.mxu0 %v2762
      %v2764 = vand.u32 %v1909, 4294901760
      %2765 = vmatpush1.msra.mxu0 %v2764
      %v2766 = vand.u32 %v1912, 4294901760
      %2767 = vmatprep.subr.mxu0 %v2766
      %v2768 = vand.u32 %v1911, 4294901760
      %2769 = vmatpush1.msra.mxu0 %v2768
      %v2770 = vand.u32 %v1914, 4294901760
      %2771 = vmatprep.subr.mxu0 %v2770
      %v2772 = vand.u32 %v1913, 4294901760
      %2773 = vmatpush1.msra.mxu0 %v2772
      %v2774 = vand.u32 %v1916, 4294901760
      %2775 = vmatprep.subr.mxu0 %v2774
      %v2776 = vand.u32 %v1915, 4294901760
      %2777 = vmatpush1.msra.mxu0 %v2776
      %v2778 = vand.u32 %v1918, 4294901760
      %2779 = vmatprep.subr.mxu0 %v2778
      %v2780 = vand.u32 %v1917, 4294901760
      %2781 = vmatpush1.msra.mxu0 %v2780
      %v2782 = vand.u32 %v1920, 4294901760
      %2783 = vmatprep.subr.mxu0 %v2782
      %v2784 = vand.u32 %v1919, 4294901760
      %2785 = vmatpush1.msra.mxu0 %v2784
      %v2786 = vand.u32 %v1922, 4294901760
      %2787 = vmatprep.subr.mxu0 %v2786
      %v2788 = vand.u32 %v1921, 4294901760
      %2789 = vmatpush1.msra.mxu0 %v2788
      %v2790 = vand.u32 %v1924, 4294901760
      %2791 = vmatprep.subr.mxu0 %v2790
      %v2792 = vand.u32 %v1923, 4294901760
      %2793 = vmatpush1.msra.mxu0 %v2792
      %v2794 = vand.u32 %v1926, 4294901760
      %2795 = vmatprep.subr.mxu0 %v2794
      %v2796 = vand.u32 %v1925, 4294901760
      %2797 = vmatpush1.msra.mxu0 %v2796
      %v2798 = vand.u32 %v1928, 4294901760
      %2799 = vmatprep.subr.mxu0 %v2798
      %v2800 = vand.u32 %v1927, 4294901760
      %2801 = vmatpush1.msra.mxu0 %v2800
      %v2802 = vand.u32 %v1930, 4294901760
      %2803 = vmatprep.subr.mxu0 %v2802
      %v2804 = vand.u32 %v1929, 4294901760
      %2805 = vmatpush1.msra.mxu0 %v2804
      %v2806 = vand.u32 %v1935, 4294901760
      %v2807 = vsub.f32 %v1935, %v2806
      %v2808 = vand.u32 %v2807, 4294901760
      %2809 = vmatprep.mubr.f32.mxu0 %v2808
      %v2810 = vand.u32 %v1932, 4294901760
      %v2811 = vsub.f32 %v1932, %v2810
      %v2812 = vand.u32 %v2811, 4294901760
      %2813 = vmatmul.mubr.f32.gmra.mrb[0].mxu0 %v2812
      %v2814 = vpop.f32.mrb[0].mxu0
      %v2815 = vadd.f32 %v2674, %v2814
      %v2816 = vpop.f32.mrb[0].mxu0
      %v2817 = vadd.f32 %v2676, %v2816
      %2818 = vdwg.mxu0
      %v2819 = vand.u32 %v1868, 4294901760
      %v2820 = vsub.f32 %v1868, %v2819
      %v2821 = vand.u32 %v2820, 4294901760
      %2822 = vmatprep.subr.mxu0 %v2821
      %v2823 = vand.u32 %v1867, 4294901760
      %v2824 = vsub.f32 %v1867, %v2823
      %v2825 = vand.u32 %v2824, 4294901760
      %2826 = vmatpush1.msra.mxu0 %v2825
      %v2827 = vand.u32 %v1870, 4294901760
      %v2828 = vsub.f32 %v1870, %v2827
      %v2829 = vand.u32 %v2828, 4294901760
      %2830 = vmatprep.subr.mxu0 %v2829
      %v2831 = vand.u32 %v1869, 4294901760
      %v2832 = vsub.f32 %v1869, %v2831
      %v2833 = vand.u32 %v2832, 4294901760
      %2834 = vmatpush1.msra.mxu0 %v2833
      %v2835 = vand.u32 %v1872, 4294901760
      %v2836 = vsub.f32 %v1872, %v2835
      %v2837 = vand.u32 %v2836, 4294901760
      %2838 = vmatprep.subr.mxu0 %v2837
      %v2839 = vand.u32 %v1871, 4294901760
      %v2840 = vsub.f32 %v1871, %v2839
      %v2841 = vand.u32 %v2840, 4294901760
      %2842 = vmatpush1.msra.mxu0 %v2841
      %v2843 = vand.u32 %v1874, 4294901760
      %v2844 = vsub.f32 %v1874, %v2843
      %v2845 = vand.u32 %v2844, 4294901760
      %2846 = vmatprep.subr.mxu0 %v2845
      %v2847 = vand.u32 %v1873, 4294901760
      %v2848 = vsub.f32 %v1873, %v2847
      %v2849 = vand.u32 %v2848, 4294901760
      %2850 = vmatpush1.msra.mxu0 %v2849
      %v2851 = vand.u32 %v1876, 4294901760
      %v2852 = vsub.f32 %v1876, %v2851
      %v2853 = vand.u32 %v2852, 4294901760
      %2854 = vmatprep.subr.mxu0 %v2853
      %v2855 = vand.u32 %v1875, 4294901760
      %v2856 = vsub.f32 %v1875, %v2855
      %v2857 = vand.u32 %v2856, 4294901760
      %2858 = vmatpush1.msra.mxu0 %v2857
      %v2859 = vand.u32 %v1878, 4294901760
      %v2860 = vsub.f32 %v1878, %v2859
      %v2861 = vand.u32 %v2860, 4294901760
      %2862 = vmatprep.subr.mxu0 %v2861
      %v2863 = vand.u32 %v1877, 4294901760
      %v2864 = vsub.f32 %v1877, %v2863
      %v2865 = vand.u32 %v2864, 4294901760
      %2866 = vmatpush1.msra.mxu0 %v2865
      %v2867 = vand.u32 %v1880, 4294901760
      %v2868 = vsub.f32 %v1880, %v2867
      %v2869 = vand.u32 %v2868, 4294901760
      %2870 = vmatprep.subr.mxu0 %v2869
      %v2871 = vand.u32 %v1879, 4294901760
      %v2872 = vsub.f32 %v1879, %v2871
      %v2873 = vand.u32 %v2872, 4294901760
      %2874 = vmatpush1.msra.mxu0 %v2873
      %v2875 = vand.u32 %v1882, 4294901760
      %v2876 = vsub.f32 %v1882, %v2875
      %v2877 = vand.u32 %v2876, 4294901760
      %2878 = vmatprep.subr.mxu0 %v2877
      %v2879 = vand.u32 %v1881, 4294901760
      %v2880 = vsub.f32 %v1881, %v2879
      %v2881 = vand.u32 %v2880, 4294901760
      %2882 = vmatpush1.msra.mxu0 %v2881
      %v2883 = vand.u32 %v1884, 4294901760
      %v2884 = vsub.f32 %v1884, %v2883
      %v2885 = vand.u32 %v2884, 4294901760
      %2886 = vmatprep.subr.mxu0 %v2885
      %v2887 = vand.u32 %v1883, 4294901760
      %v2888 = vsub.f32 %v1883, %v2887
      %v2889 = vand.u32 %v2888, 4294901760
      %2890 = vmatpush1.msra.mxu0 %v2889
      %v2891 = vand.u32 %v1886, 4294901760
      %v2892 = vsub.f32 %v1886, %v2891
      %v2893 = vand.u32 %v2892, 4294901760
      %2894 = vmatprep.subr.mxu0 %v2893
      %v2895 = vand.u32 %v1885, 4294901760
      %v2896 = vsub.f32 %v1885, %v2895
      %v2897 = vand.u32 %v2896, 4294901760
      %2898 = vmatpush1.msra.mxu0 %v2897
      %v2899 = vand.u32 %v1888, 4294901760
      %v2900 = vsub.f32 %v1888, %v2899
      %v2901 = vand.u32 %v2900, 4294901760
      %2902 = vmatprep.subr.mxu0 %v2901
      %v2903 = vand.u32 %v1887, 4294901760
      %v2904 = vsub.f32 %v1887, %v2903
      %v2905 = vand.u32 %v2904, 4294901760
      %2906 = vmatpush1.msra.mxu0 %v2905
      %v2907 = vand.u32 %v1890, 4294901760
      %v2908 = vsub.f32 %v1890, %v2907
      %v2909 = vand.u32 %v2908, 4294901760
      %2910 = vmatprep.subr.mxu0 %v2909
      %v2911 = vand.u32 %v1889, 4294901760
      %v2912 = vsub.f32 %v1889, %v2911
      %v2913 = vand.u32 %v2912, 4294901760
      %2914 = vmatpush1.msra.mxu0 %v2913
      %v2915 = vand.u32 %v1892, 4294901760
      %v2916 = vsub.f32 %v1892, %v2915
      %v2917 = vand.u32 %v2916, 4294901760
      %2918 = vmatprep.subr.mxu0 %v2917
      %v2919 = vand.u32 %v1891, 4294901760
      %v2920 = vsub.f32 %v1891, %v2919
      %v2921 = vand.u32 %v2920, 4294901760
      %2922 = vmatpush1.msra.mxu0 %v2921
      %v2923 = vand.u32 %v1894, 4294901760
      %v2924 = vsub.f32 %v1894, %v2923
      %v2925 = vand.u32 %v2924, 4294901760
      %2926 = vmatprep.subr.mxu0 %v2925
      %v2927 = vand.u32 %v1893, 4294901760
      %v2928 = vsub.f32 %v1893, %v2927
      %v2929 = vand.u32 %v2928, 4294901760
      %2930 = vmatpush1.msra.mxu0 %v2929
      %v2931 = vand.u32 %v1896, 4294901760
      %v2932 = vsub.f32 %v1896, %v2931
      %v2933 = vand.u32 %v2932, 4294901760
      %2934 = vmatprep.subr.mxu0 %v2933
      %v2935 = vand.u32 %v1895, 4294901760
      %v2936 = vsub.f32 %v1895, %v2935
      %v2937 = vand.u32 %v2936, 4294901760
      %2938 = vmatpush1.msra.mxu0 %v2937
      %v2939 = vand.u32 %v1898, 4294901760
      %v2940 = vsub.f32 %v1898, %v2939
      %v2941 = vand.u32 %v2940, 4294901760
      %2942 = vmatprep.subr.mxu0 %v2941
      %v2943 = vand.u32 %v1897, 4294901760
      %v2944 = vsub.f32 %v1897, %v2943
      %v2945 = vand.u32 %v2944, 4294901760
      %2946 = vmatpush1.msra.mxu0 %v2945
      %v2947 = vand.u32 %v1900, 4294901760
      %v2948 = vsub.f32 %v1900, %v2947
      %v2949 = vand.u32 %v2948, 4294901760
      %2950 = vmatprep.subr.mxu0 %v2949
      %v2951 = vand.u32 %v1899, 4294901760
      %v2952 = vsub.f32 %v1899, %v2951
      %v2953 = vand.u32 %v2952, 4294901760
      %2954 = vmatpush1.msra.mxu0 %v2953
      %v2955 = vand.u32 %v1902, 4294901760
      %v2956 = vsub.f32 %v1902, %v2955
      %v2957 = vand.u32 %v2956, 4294901760
      %2958 = vmatprep.subr.mxu0 %v2957
      %v2959 = vand.u32 %v1901, 4294901760
      %v2960 = vsub.f32 %v1901, %v2959
      %v2961 = vand.u32 %v2960, 4294901760
      %2962 = vmatpush1.msra.mxu0 %v2961
      %v2963 = vand.u32 %v1904, 4294901760
      %v2964 = vsub.f32 %v1904, %v2963
      %v2965 = vand.u32 %v2964, 4294901760
      %2966 = vmatprep.subr.mxu0 %v2965
      %v2967 = vand.u32 %v1903, 4294901760
      %v2968 = vsub.f32 %v1903, %v2967
      %v2969 = vand.u32 %v2968, 4294901760
      %2970 = vmatpush1.msra.mxu0 %v2969
      %v2971 = vand.u32 %v1906, 4294901760
      %v2972 = vsub.f32 %v1906, %v2971
      %v2973 = vand.u32 %v2972, 4294901760
      %2974 = vmatprep.subr.mxu0 %v2973
      %v2975 = vand.u32 %v1905, 4294901760
      %v2976 = vsub.f32 %v1905, %v2975
      %v2977 = vand.u32 %v2976, 4294901760
      %2978 = vmatpush1.msra.mxu0 %v2977
      %v2979 = vand.u32 %v1908, 4294901760
      %v2980 = vsub.f32 %v1908, %v2979
      %v2981 = vand.u32 %v2980, 4294901760
      %2982 = vmatprep.subr.mxu0 %v2981
      %v2983 = vand.u32 %v1907, 4294901760
      %v2984 = vsub.f32 %v1907, %v2983
      %v2985 = vand.u32 %v2984, 4294901760
      %2986 = vmatpush1.msra.mxu0 %v2985
      %v2987 = vand.u32 %v1910, 4294901760
      %v2988 = vsub.f32 %v1910, %v2987
      %v2989 = vand.u32 %v2988, 4294901760
      %2990 = vmatprep.subr.mxu0 %v2989
      %v2991 = vand.u32 %v1909, 4294901760
      %v2992 = vsub.f32 %v1909, %v2991
      %v2993 = vand.u32 %v2992, 4294901760
      %2994 = vmatpush1.msra.mxu0 %v2993
      %v2995 = vand.u32 %v1912, 4294901760
      %v2996 = vsub.f32 %v1912, %v2995
      %v2997 = vand.u32 %v2996, 4294901760
      %2998 = vmatprep.subr.mxu0 %v2997
      %v2999 = vand.u32 %v1911, 4294901760
      %v3000 = vsub.f32 %v1911, %v2999
      %v3001 = vand.u32 %v3000, 4294901760
      %3002 = vmatpush1.msra.mxu0 %v3001
      %v3003 = vand.u32 %v1914, 4294901760
      %v3004 = vsub.f32 %v1914, %v3003
      %v3005 = vand.u32 %v3004, 4294901760
      %3006 = vmatprep.subr.mxu0 %v3005
      %v3007 = vand.u32 %v1913, 4294901760
      %v3008 = vsub.f32 %v1913, %v3007
      %v3009 = vand.u32 %v3008, 4294901760
      %3010 = vmatpush1.msra.mxu0 %v3009
      %v3011 = vand.u32 %v1916, 4294901760
      %v3012 = vsub.f32 %v1916, %v3011
      %v3013 = vand.u32 %v3012, 4294901760
      %3014 = vmatprep.subr.mxu0 %v3013
      %v3015 = vand.u32 %v1915, 4294901760
      %v3016 = vsub.f32 %v1915, %v3015
      %v3017 = vand.u32 %v3016, 4294901760
      %3018 = vmatpush1.msra.mxu0 %v3017
      %v3019 = vand.u32 %v1918, 4294901760
      %v3020 = vsub.f32 %v1918, %v3019
      %v3021 = vand.u32 %v3020, 4294901760
      %3022 = vmatprep.subr.mxu0 %v3021
      %v3023 = vand.u32 %v1917, 4294901760
      %v3024 = vsub.f32 %v1917, %v3023
      %v3025 = vand.u32 %v3024, 4294901760
      %3026 = vmatpush1.msra.mxu0 %v3025
      %v3027 = vand.u32 %v1920, 4294901760
      %v3028 = vsub.f32 %v1920, %v3027
      %v3029 = vand.u32 %v3028, 4294901760
      %3030 = vmatprep.subr.mxu0 %v3029
      %v3031 = vand.u32 %v1919, 4294901760
      %v3032 = vsub.f32 %v1919, %v3031
      %v3033 = vand.u32 %v3032, 4294901760
      %3034 = vmatpush1.msra.mxu0 %v3033
      %v3035 = vand.u32 %v1922, 4294901760
      %v3036 = vsub.f32 %v1922, %v3035
      %v3037 = vand.u32 %v3036, 4294901760
      %3038 = vmatprep.subr.mxu0 %v3037
      %v3039 = vand.u32 %v1921, 4294901760
      %v3040 = vsub.f32 %v1921, %v3039
      %v3041 = vand.u32 %v3040, 4294901760
      %3042 = vmatpush1.msra.mxu0 %v3041
      %v3043 = vand.u32 %v1924, 4294901760
      %v3044 = vsub.f32 %v1924, %v3043
      %v3045 = vand.u32 %v3044, 4294901760
      %3046 = vmatprep.subr.mxu0 %v3045
      %v3047 = vand.u32 %v1923, 4294901760
      %v3048 = vsub.f32 %v1923, %v3047
      %v3049 = vand.u32 %v3048, 4294901760
      %3050 = vmatpush1.msra.mxu0 %v3049
      %v3051 = vand.u32 %v1926, 4294901760
      %v3052 = vsub.f32 %v1926, %v3051
      %v3053 = vand.u32 %v3052, 4294901760
      %3054 = vmatprep.subr.mxu0 %v3053
      %v3055 = vand.u32 %v1925, 4294901760
      %v3056 = vsub.f32 %v1925, %v3055
      %v3057 = vand.u32 %v3056, 4294901760
      %3058 = vmatpush1.msra.mxu0 %v3057
      %v3059 = vand.u32 %v1928, 4294901760
      %v3060 = vsub.f32 %v1928, %v3059
      %v3061 = vand.u32 %v3060, 4294901760
      %3062 = vmatprep.subr.mxu0 %v3061
      %v3063 = vand.u32 %v1927, 4294901760
      %v3064 = vsub.f32 %v1927, %v3063
      %v3065 = vand.u32 %v3064, 4294901760
      %3066 = vmatpush1.msra.mxu0 %v3065
      %v3067 = vand.u32 %v1930, 4294901760
      %v3068 = vsub.f32 %v1930, %v3067
      %v3069 = vand.u32 %v3068, 4294901760
      %3070 = vmatprep.subr.mxu0 %v3069
      %v3071 = vand.u32 %v1929, 4294901760
      %v3072 = vsub.f32 %v1929, %v3071
      %v3073 = vand.u32 %v3072, 4294901760
      %3074 = vmatpush1.msra.mxu0 %v3073
      %v3075 = vand.u32 %v1935, 4294901760
      %3076 = vmatprep.mubr.f32.mxu0 %v3075
      %v3077 = vand.u32 %v1932, 4294901760
      %3078 = vmatmul.mubr.f32.gmra.mrb[0].mxu0 %v3077
      %v3079 = vpop.f32.mrb[0].mxu0
      %v3080 = vadd.f32 %v2815, %v3079
      %v3081 = vpop.f32.mrb[0].mxu0
      %v3082 = vadd.f32 %v2817, %v3081
      %3083 = vdwg.mxu0
      %v3084 = vand.u32 %v1868, 4294901760
      %3085 = vmatprep.subr.mxu0 %v3084
      %v3086 = vand.u32 %v1867, 4294901760
      %3087 = vmatpush1.msra.mxu0 %v3086
      %v3088 = vand.u32 %v1870, 4294901760
      %3089 = vmatprep.subr.mxu0 %v3088
      %v3090 = vand.u32 %v1869, 4294901760
      %3091 = vmatpush1.msra.mxu0 %v3090
      %v3092 = vand.u32 %v1872, 4294901760
      %3093 = vmatprep.subr.mxu0 %v3092
      %v3094 = vand.u32 %v1871, 4294901760
      %3095 = vmatpush1.msra.mxu0 %v3094
      %v3096 = vand.u32 %v1874, 4294901760
      %3097 = vmatprep.subr.mxu0 %v3096
      %v3098 = vand.u32 %v1873, 4294901760
      %3099 = vmatpush1.msra.mxu0 %v3098
      %v3100 = vand.u32 %v1876, 4294901760
      %3101 = vmatprep.subr.mxu0 %v3100
      %v3102 = vand.u32 %v1875, 4294901760
      %3103 = vmatpush1.msra.mxu0 %v3102
      %v3104 = vand.u32 %v1878, 4294901760
      %3105 = vmatprep.subr.mxu0 %v3104
      %v3106 = vand.u32 %v1877, 4294901760
      %3107 = vmatpush1.msra.mxu0 %v3106
      %v3108 = vand.u32 %v1880, 4294901760
      %3109 = vmatprep.subr.mxu0 %v3108
      %v3110 = vand.u32 %v1879, 4294901760
      %3111 = vmatpush1.msra.mxu0 %v3110
      %v3112 = vand.u32 %v1882, 4294901760
      %3113 = vmatprep.subr.mxu0 %v3112
      %v3114 = vand.u32 %v1881, 4294901760
      %3115 = vmatpush1.msra.mxu0 %v3114
      %v3116 = vand.u32 %v1884, 4294901760
      %3117 = vmatprep.subr.mxu0 %v3116
      %v3118 = vand.u32 %v1883, 4294901760
      %3119 = vmatpush1.msra.mxu0 %v3118
      %v3120 = vand.u32 %v1886, 4294901760
      %3121 = vmatprep.subr.mxu0 %v3120
      %v3122 = vand.u32 %v1885, 4294901760
      %3123 = vmatpush1.msra.mxu0 %v3122
      %v3124 = vand.u32 %v1888, 4294901760
      %3125 = vmatprep.subr.mxu0 %v3124
      %v3126 = vand.u32 %v1887, 4294901760
      %3127 = vmatpush1.msra.mxu0 %v3126
      %v3128 = vand.u32 %v1890, 4294901760
      %3129 = vmatprep.subr.mxu0 %v3128
      %v3130 = vand.u32 %v1889, 4294901760
      %3131 = vmatpush1.msra.mxu0 %v3130
      %v3132 = vand.u32 %v1892, 4294901760
      %3133 = vmatprep.subr.mxu0 %v3132
      %v3134 = vand.u32 %v1891, 4294901760
      %3135 = vmatpush1.msra.mxu0 %v3134
      %v3136 = vand.u32 %v1894, 4294901760
      %3137 = vmatprep.subr.mxu0 %v3136
      %v3138 = vand.u32 %v1893, 4294901760
      %3139 = vmatpush1.msra.mxu0 %v3138
      %v3140 = vand.u32 %v1896, 4294901760
      %3141 = vmatprep.subr.mxu0 %v3140
      %v3142 = vand.u32 %v1895, 4294901760
      %3143 = vmatpush1.msra.mxu0 %v3142
      %v3144 = vand.u32 %v1898, 4294901760
      %3145 = vmatprep.subr.mxu0 %v3144
      %v3146 = vand.u32 %v1897, 4294901760
      %3147 = vmatpush1.msra.mxu0 %v3146
      %v3148 = vand.u32 %v1900, 4294901760
      %3149 = vmatprep.subr.mxu0 %v3148
      %v3150 = vand.u32 %v1899, 4294901760
      %3151 = vmatpush1.msra.mxu0 %v3150
      %v3152 = vand.u32 %v1902, 4294901760
      %3153 = vmatprep.subr.mxu0 %v3152
      %v3154 = vand.u32 %v1901, 4294901760
      %3155 = vmatpush1.msra.mxu0 %v3154
      %v3156 = vand.u32 %v1904, 4294901760
      %3157 = vmatprep.subr.mxu0 %v3156
      %v3158 = vand.u32 %v1903, 4294901760
      %3159 = vmatpush1.msra.mxu0 %v3158
      %v3160 = vand.u32 %v1906, 4294901760
      %3161 = vmatprep.subr.mxu0 %v3160
      %v3162 = vand.u32 %v1905, 4294901760
      %3163 = vmatpush1.msra.mxu0 %v3162
      %v3164 = vand.u32 %v1908, 4294901760
      %3165 = vmatprep.subr.mxu0 %v3164
      %v3166 = vand.u32 %v1907, 4294901760
      %3167 = vmatpush1.msra.mxu0 %v3166
      %v3168 = vand.u32 %v1910, 4294901760
      %3169 = vmatprep.subr.mxu0 %v3168
      %v3170 = vand.u32 %v1909, 4294901760
      %3171 = vmatpush1.msra.mxu0 %v3170
      %v3172 = vand.u32 %v1912, 4294901760
      %3173 = vmatprep.subr.mxu0 %v3172
      %v3174 = vand.u32 %v1911, 4294901760
      %3175 = vmatpush1.msra.mxu0 %v3174
      %v3176 = vand.u32 %v1914, 4294901760
      %3177 = vmatprep.subr.mxu0 %v3176
      %v3178 = vand.u32 %v1913, 4294901760
      %3179 = vmatpush1.msra.mxu0 %v3178
      %v3180 = vand.u32 %v1916, 4294901760
      %3181 = vmatprep.subr.mxu0 %v3180
      %v3182 = vand.u32 %v1915, 4294901760
      %3183 = vmatpush1.msra.mxu0 %v3182
      %v3184 = vand.u32 %v1918, 4294901760
      %3185 = vmatprep.subr.mxu0 %v3184
      %v3186 = vand.u32 %v1917, 4294901760
      %3187 = vmatpush1.msra.mxu0 %v3186
      %v3188 = vand.u32 %v1920, 4294901760
      %3189 = vmatprep.subr.mxu0 %v3188
      %v3190 = vand.u32 %v1919, 4294901760
      %3191 = vmatpush1.msra.mxu0 %v3190
      %v3192 = vand.u32 %v1922, 4294901760
      %3193 = vmatprep.subr.mxu0 %v3192
      %v3194 = vand.u32 %v1921, 4294901760
      %3195 = vmatpush1.msra.mxu0 %v3194
      %v3196 = vand.u32 %v1924, 4294901760
      %3197 = vmatprep.subr.mxu0 %v3196
      %v3198 = vand.u32 %v1923, 4294901760
      %3199 = vmatpush1.msra.mxu0 %v3198
      %v3200 = vand.u32 %v1926, 4294901760
      %3201 = vmatprep.subr.mxu0 %v3200
      %v3202 = vand.u32 %v1925, 4294901760
      %3203 = vmatpush1.msra.mxu0 %v3202
      %v3204 = vand.u32 %v1928, 4294901760
      %3205 = vmatprep.subr.mxu0 %v3204
      %v3206 = vand.u32 %v1927, 4294901760
      %3207 = vmatpush1.msra.mxu0 %v3206
      %v3208 = vand.u32 %v1930, 4294901760
      %3209 = vmatprep.subr.mxu0 %v3208
      %v3210 = vand.u32 %v1929, 4294901760
      %3211 = vmatpush1.msra.mxu0 %v3210
      %v3212 = vand.u32 %v1935, 4294901760
      %3213 = vmatprep.mubr.f32.mxu0 %v3212
      %v3214 = vand.u32 %v1932, 4294901760
      %3215 = vmatmul.mubr.f32.gmra.mrb[0].mxu0 %v3214
      %v3216 = vpop.f32.mrb[0].mxu0
      %v3217 = vadd.f32 %v3080, %v3216
      %v3218 = vpop.f32.mrb[0].mxu0
      %v3219 = vadd.f32 %v3082, %v3218
      %3220 = vdwg.mxu0
      %v3223 = vcombine.low %v3217, %v3219
      %v3225 = vadd.f32 %v1933, %v3223
      %3226 = vst [vmem:[#allocation4] sm:$0xff] %v3225
    $region81: #{tpu_custom_call.1} parent=1 // pred_fallthru
      _
    %v3227 = vld [vmem:[#allocation4] sm:$0xff]
    %3228 = vst [vmem:[#allocation13] sm:$0xff] %v3227
    %v3229 = vld [vmem:[#allocation12] sm:$0x3]
    %3230 = vst [vmem:[#allocation5] sm:$0xff] 0.0
    %3231 = vst [vmem:[#allocation5 + $0x8] sm:$0xff] 0.0
    %s3232 = sld [smem:[#allocation10 + %s126]]
    %p3233 = scmp.gt.s32.totalorder %s3232, 0
    // Predicated region
    $region82: #{tpu_custom_call.1} parent=1 // pred_check
      %p3234 = pneg %p3233
    $region83: #{tpu_custom_call.1} parent=1 // pred_check_branch
      %3236 = sbr.rel (%p3234) target = $region85
    $region84: #{tpu_custom_call.1} parent=1 // pred_region
      %v3237 = vlaneseq
      %v3238 = vshrl.u32 %v3237, 7
      %v3239 = vadd.s32 %v3238, 8
      %v3240 = vadd.s32 %v3238, 16
      %v3241 = vadd.s32 %v3238, 24
      %v3242 = vadd.s32 %v3238, 32
      %v3243 = vadd.s32 %v3238, 40
      %v3244 = vadd.s32 %v3238, 48
      %v3245 = vadd.s32 %v3238, 56
      %v3246 = vlaneseq
      %v3247 = vshrl.u32 %v3246, 7
      %v3248 = vsub.s32 0, %v3247
      %v3249 = vrot.slane %v3229, %v3248
      %v3250 = vlaneseq
      %v3251 = vshrl.u32 %v3250, 7
      %v3252 = vsub.s32 1, %v3251
      %v3253 = vrot.slane %v3229, %v3252
      %vm3254 = vcmp.eq.s32.totalorder %v3238, %v3249
      %vm3255 = vcmp.eq.s32.totalorder %v3238, %v3253
      %vm3256 = vcmp.eq.s32.totalorder %v3239, %v3249
      %vm3257 = vcmp.eq.s32.totalorder %v3239, %v3253
      %vm3258 = vcmp.eq.s32.totalorder %v3240, %v3249
      %vm3259 = vcmp.eq.s32.totalorder %v3240, %v3253
      %vm3260 = vcmp.eq.s32.totalorder %v3241, %v3249
      %vm3261 = vcmp.eq.s32.totalorder %v3241, %v3253
      %vm3262 = vcmp.eq.s32.totalorder %v3242, %v3249
      %vm3263 = vcmp.eq.s32.totalorder %v3242, %v3253
      %vm3264 = vcmp.eq.s32.totalorder %v3243, %v3249
      %vm3265 = vcmp.eq.s32.totalorder %v3243, %v3253
      %vm3266 = vcmp.eq.s32.totalorder %v3244, %v3249
      %vm3267 = vcmp.eq.s32.totalorder %v3244, %v3253
      %vm3268 = vcmp.eq.s32.totalorder %v3245, %v3249
      %vm3269 = vcmp.eq.s32.totalorder %v3245, %v3253
      %v3270 = vsel %vm3254, 1, 0
      %v3271 = vsel %vm3255, 1, 0
      %v3272 = vsel %vm3256, 1, 0
      %v3273 = vsel %vm3257, 1, 0
      %v3274 = vsel %vm3258, 1, 0
      %v3275 = vsel %vm3259, 1, 0
      %v3276 = vsel %vm3260, 1, 0
      %v3277 = vsel %vm3261, 1, 0
      %v3278 = vsel %vm3262, 1, 0
      %v3279 = vsel %vm3263, 1, 0
      %v3280 = vsel %vm3264, 1, 0
      %v3281 = vsel %vm3265, 1, 0
      %v3282 = vsel %vm3266, 1, 0
      %v3283 = vsel %vm3267, 1, 0
      %v3284 = vsel %vm3268, 1, 0
      %v3285 = vsel %vm3269, 1, 0
      %v3286 = vcvt.s32.f32 %v3270
      %v3287 = vcvt.s32.f32 %v3271
      %v3288 = vcvt.s32.f32 %v3272
      %v3289 = vcvt.s32.f32 %v3273
      %v3290 = vcvt.s32.f32 %v3274
      %v3291 = vcvt.s32.f32 %v3275
      %v3292 = vcvt.s32.f32 %v3276
      %v3293 = vcvt.s32.f32 %v3277
      %v3294 = vcvt.s32.f32 %v3278
      %v3295 = vcvt.s32.f32 %v3279
      %v3296 = vcvt.s32.f32 %v3280
      %v3297 = vcvt.s32.f32 %v3281
      %v3298 = vcvt.s32.f32 %v3282
      %v3299 = vcvt.s32.f32 %v3283
      %v3300 = vcvt.s32.f32 %v3284
      %v3301 = vcvt.s32.f32 %v3285
      %v3302 = vld [vmem:[#allocation3] sm:$0xff]
      %v3303 = vld [vmem:[#allocation5] sm:$0xff]
      %v3304 = vld [vmem:[#allocation5 + $0x8] sm:$0xff]
      %vm3305 = vcmask 523264
      %v3307 = vsel %vm3305, %v3302, 0
      %v3309 = vand.u32 %v3287, 4294901760
      %3310 = vmatprep.subr.mxu0 %v3309
      %v3311 = vand.u32 %v3286, 4294901760
      %3312 = vmatpush1.msra.mxu0 %v3311
      %v3313 = vand.u32 %v3289, 4294901760
      %3314 = vmatprep.subr.mxu0 %v3313
      %v3315 = vand.u32 %v3288, 4294901760
      %3316 = vmatpush1.msra.mxu0 %v3315
      %v3317 = vand.u32 %v3291, 4294901760
      %3318 = vmatprep.subr.mxu0 %v3317
      %v3319 = vand.u32 %v3290, 4294901760
      %3320 = vmatpush1.msra.mxu0 %v3319
      %v3321 = vand.u32 %v3293, 4294901760
      %3322 = vmatprep.subr.mxu0 %v3321
      %v3323 = vand.u32 %v3292, 4294901760
      %3324 = vmatpush1.msra.mxu0 %v3323
      %v3325 = vand.u32 %v3295, 4294901760
      %3326 = vmatprep.subr.mxu0 %v3325
      %v3327 = vand.u32 %v3294, 4294901760
      %3328 = vmatpush1.msra.mxu0 %v3327
      %v3329 = vand.u32 %v3297, 4294901760
      %3330 = vmatprep.subr.mxu0 %v3329
      %v3331 = vand.u32 %v3296, 4294901760
      %3332 = vmatpush1.msra.mxu0 %v3331
      %v3333 = vand.u32 %v3299, 4294901760
      %3334 = vmatprep.subr.mxu0 %v3333
      %v3335 = vand.u32 %v3298, 4294901760
      %3336 = vmatpush1.msra.mxu0 %v3335
      %v3337 = vand.u32 %v3301, 4294901760
      %3338 = vmatprep.subr.mxu0 %v3337
      %v3339 = vand.u32 %v3300, 4294901760
      %3340 = vmatpush1.msra.mxu0 %v3339
      %3341 = vmatprep.subr.mxu0 0.0
      %3342 = vmatpush1.msra.mxu0 0.0
      %3343 = vmatprep.subr.mxu0 0.0
      %3344 = vmatpush1.msra.mxu0 0.0
      %3345 = vmatprep.subr.mxu0 0.0
      %3346 = vmatpush1.msra.mxu0 0.0
      %3347 = vmatprep.subr.mxu0 0.0
      %3348 = vmatpush1.msra.mxu0 0.0
      %3349 = vmatprep.subr.mxu0 0.0
      %3350 = vmatpush1.msra.mxu0 0.0
      %3351 = vmatprep.subr.mxu0 0.0
      %3352 = vmatpush1.msra.mxu0 0.0
      %3353 = vmatprep.subr.mxu0 0.0
      %3354 = vmatpush1.msra.mxu0 0.0
      %3355 = vmatprep.subr.mxu0 0.0
      %3356 = vmatpush1.msra.mxu0 0.0
      %3357 = vmatprep.subr.mxu0 0.0
      %3358 = vmatpush1.msra.mxu0 0.0
      %3359 = vmatprep.subr.mxu0 0.0
      %3360 = vmatpush1.msra.mxu0 0.0
      %3361 = vmatprep.subr.mxu0 0.0
      %3362 = vmatpush1.msra.mxu0 0.0
      %3363 = vmatprep.subr.mxu0 0.0
      %3364 = vmatpush1.msra.mxu0 0.0
      %3365 = vmatprep.subr.mxu0 0.0
      %3366 = vmatpush1.msra.mxu0 0.0
      %3367 = vmatprep.subr.mxu0 0.0
      %3368 = vmatpush1.msra.mxu0 0.0
      %3369 = vmatprep.subr.mxu0 0.0
      %3370 = vmatpush1.msra.mxu0 0.0
      %3371 = vmatprep.subr.mxu0 0.0
      %3372 = vmatpush1.msra.mxu0 0.0
      %3373 = vmatprep.subr.mxu0 0.0
      %3374 = vmatpush1.msra.mxu0 0.0
      %3375 = vmatprep.subr.mxu0 0.0
      %3376 = vmatpush1.msra.mxu0 0.0
      %3377 = vmatprep.subr.mxu0 0.0
      %3378 = vmatpush1.msra.mxu0 0.0
      %3379 = vmatprep.subr.mxu0 0.0
      %3380 = vmatpush1.msra.mxu0 0.0
      %3381 = vmatprep.subr.mxu0 0.0
      %3382 = vmatpush1.msra.mxu0 0.0
      %3383 = vmatprep.subr.mxu0 0.0
      %3384 = vmatpush1.msra.mxu0 0.0
      %3385 = vmatprep.subr.mxu0 0.0
      %3386 = vmatpush1.msra.mxu0 0.0
      %3387 = vmatprep.subr.mxu0 0.0
      %3388 = vmatpush1.msra.mxu0 0.0
      %3389 = vmatprep.mubr.f32.mxu0 0.0
      %v3390 = vand.u32 %v3307, 4294901760
      %v3391 = vsub.f32 %v3307, %v3390
      %v3392 = vand.u32 %v3391, 4294901760
      %v3393 = vsub.f32 %v3391, %v3392
      %v3394 = vand.u32 %v3393, 4294901760
      %3395 = vmatmul.mubr.f32.gmra.mrb[0].mxu0 %v3394
      %v3396 = vpop.f32.mrb[0].mxu0
      %v3397 = vadd.f32 0.0, %v3396
      %v3398 = vpop.f32.mrb[0].mxu0
      %v3399 = vadd.f32 0.0, %v3398
      %3400 = vdwg.mxu0
      %v3401 = vand.u32 %v3287, 4294901760
      %v3402 = vsub.f32 %v3287, %v3401
      %v3403 = vand.u32 %v3402, 4294901760
      %v3404 = vsub.f32 %v3402, %v3403
      %v3405 = vand.u32 %v3404, 4294901760
      %3406 = vmatprep.subr.mxu0 %v3405
      %v3407 = vand.u32 %v3286, 4294901760
      %v3408 = vsub.f32 %v3286, %v3407
      %v3409 = vand.u32 %v3408, 4294901760
      %v3410 = vsub.f32 %v3408, %v3409
      %v3411 = vand.u32 %v3410, 4294901760
      %3412 = vmatpush1.msra.mxu0 %v3411
      %v3413 = vand.u32 %v3289, 4294901760
      %v3414 = vsub.f32 %v3289, %v3413
      %v3415 = vand.u32 %v3414, 4294901760
      %v3416 = vsub.f32 %v3414, %v3415
      %v3417 = vand.u32 %v3416, 4294901760
      %3418 = vmatprep.subr.mxu0 %v3417
      %v3419 = vand.u32 %v3288, 4294901760
      %v3420 = vsub.f32 %v3288, %v3419
      %v3421 = vand.u32 %v3420, 4294901760
      %v3422 = vsub.f32 %v3420, %v3421
      %v3423 = vand.u32 %v3422, 4294901760
      %3424 = vmatpush1.msra.mxu0 %v3423
      %v3425 = vand.u32 %v3291, 4294901760
      %v3426 = vsub.f32 %v3291, %v3425
      %v3427 = vand.u32 %v3426, 4294901760
      %v3428 = vsub.f32 %v3426, %v3427
      %v3429 = vand.u32 %v3428, 4294901760
      %3430 = vmatprep.subr.mxu0 %v3429
      %v3431 = vand.u32 %v3290, 4294901760
      %v3432 = vsub.f32 %v3290, %v3431
      %v3433 = vand.u32 %v3432, 4294901760
      %v3434 = vsub.f32 %v3432, %v3433
      %v3435 = vand.u32 %v3434, 4294901760
      %3436 = vmatpush1.msra.mxu0 %v3435
      %v3437 = vand.u32 %v3293, 4294901760
      %v3438 = vsub.f32 %v3293, %v3437
      %v3439 = vand.u32 %v3438, 4294901760
      %v3440 = vsub.f32 %v3438, %v3439
      %v3441 = vand.u32 %v3440, 4294901760
      %3442 = vmatprep.subr.mxu0 %v3441
      %v3443 = vand.u32 %v3292, 4294901760
      %v3444 = vsub.f32 %v3292, %v3443
      %v3445 = vand.u32 %v3444, 4294901760
      %v3446 = vsub.f32 %v3444, %v3445
      %v3447 = vand.u32 %v3446, 4294901760
      %3448 = vmatpush1.msra.mxu0 %v3447
      %v3449 = vand.u32 %v3295, 4294901760
      %v3450 = vsub.f32 %v3295, %v3449
      %v3451 = vand.u32 %v3450, 4294901760
      %v3452 = vsub.f32 %v3450, %v3451
      %v3453 = vand.u32 %v3452, 4294901760
      %3454 = vmatprep.subr.mxu0 %v3453
      %v3455 = vand.u32 %v3294, 4294901760
      %v3456 = vsub.f32 %v3294, %v3455
      %v3457 = vand.u32 %v3456, 4294901760
      %v3458 = vsub.f32 %v3456, %v3457
      %v3459 = vand.u32 %v3458, 4294901760
      %3460 = vmatpush1.msra.mxu0 %v3459
      %v3461 = vand.u32 %v3297, 4294901760
      %v3462 = vsub.f32 %v3297, %v3461
      %v3463 = vand.u32 %v3462, 4294901760
      %v3464 = vsub.f32 %v3462, %v3463
      %v3465 = vand.u32 %v3464, 4294901760
      %3466 = vmatprep.subr.mxu0 %v3465
      %v3467 = vand.u32 %v3296, 4294901760
      %v3468 = vsub.f32 %v3296, %v3467
      %v3469 = vand.u32 %v3468, 4294901760
      %v3470 = vsub.f32 %v3468, %v3469
      %v3471 = vand.u32 %v3470, 4294901760
      %3472 = vmatpush1.msra.mxu0 %v3471
      %v3473 = vand.u32 %v3299, 4294901760
      %v3474 = vsub.f32 %v3299, %v3473
      %v3475 = vand.u32 %v3474, 4294901760
      %v3476 = vsub.f32 %v3474, %v3475
      %v3477 = vand.u32 %v3476, 4294901760
      %3478 = vmatprep.subr.mxu0 %v3477
      %v3479 = vand.u32 %v3298, 4294901760
      %v3480 = vsub.f32 %v3298, %v3479
      %v3481 = vand.u32 %v3480, 4294901760
      %v3482 = vsub.f32 %v3480, %v3481
      %v3483 = vand.u32 %v3482, 4294901760
      %3484 = vmatpush1.msra.mxu0 %v3483
      %v3485 = vand.u32 %v3301, 4294901760
      %v3486 = vsub.f32 %v3301, %v3485
      %v3487 = vand.u32 %v3486, 4294901760
      %v3488 = vsub.f32 %v3486, %v3487
      %v3489 = vand.u32 %v3488, 4294901760
      %3490 = vmatprep.subr.mxu0 %v3489
      %v3491 = vand.u32 %v3300, 4294901760
      %v3492 = vsub.f32 %v3300, %v3491
      %v3493 = vand.u32 %v3492, 4294901760
      %v3494 = vsub.f32 %v3492, %v3493
      %v3495 = vand.u32 %v3494, 4294901760
      %3496 = vmatpush1.msra.mxu0 %v3495
      %3497 = vmatprep.subr.mxu0 0.0
      %3498 = vmatpush1.msra.mxu0 0.0
      %3499 = vmatprep.subr.mxu0 0.0
      %3500 = vmatpush1.msra.mxu0 0.0
      %3501 = vmatprep.subr.mxu0 0.0
      %3502 = vmatpush1.msra.mxu0 0.0
      %3503 = vmatprep.subr.mxu0 0.0
      %3504 = vmatpush1.msra.mxu0 0.0
      %3505 = vmatprep.subr.mxu0 0.0
      %3506 = vmatpush1.msra.mxu0 0.0
      %3507 = vmatprep.subr.mxu0 0.0
      %3508 = vmatpush1.msra.mxu0 0.0
      %3509 = vmatprep.subr.mxu0 0.0
      %3510 = vmatpush1.msra.mxu0 0.0
      %3511 = vmatprep.subr.mxu0 0.0
      %3512 = vmatpush1.msra.mxu0 0.0
      %3513 = vmatprep.subr.mxu0 0.0
      %3514 = vmatpush1.msra.mxu0 0.0
      %3515 = vmatprep.subr.mxu0 0.0
      %3516 = vmatpush1.msra.mxu0 0.0
      %3517 = vmatprep.subr.mxu0 0.0
      %3518 = vmatpush1.msra.mxu0 0.0
      %3519 = vmatprep.subr.mxu0 0.0
      %3520 = vmatpush1.msra.mxu0 0.0
      %3521 = vmatprep.subr.mxu0 0.0
      %3522 = vmatpush1.msra.mxu0 0.0
      %3523 = vmatprep.subr.mxu0 0.0
      %3524 = vmatpush1.msra.mxu0 0.0
      %3525 = vmatprep.subr.mxu0 0.0
      %3526 = vmatpush1.msra.mxu0 0.0
      %3527 = vmatprep.subr.mxu0 0.0
      %3528 = vmatpush1.msra.mxu0 0.0
      %3529 = vmatprep.subr.mxu0 0.0
      %3530 = vmatpush1.msra.mxu0 0.0
      %3531 = vmatprep.subr.mxu0 0.0
      %3532 = vmatpush1.msra.mxu0 0.0
      %3533 = vmatprep.subr.mxu0 0.0
      %3534 = vmatpush1.msra.mxu0 0.0
      %3535 = vmatprep.subr.mxu0 0.0
      %3536 = vmatpush1.msra.mxu0 0.0
      %3537 = vmatprep.subr.mxu0 0.0
      %3538 = vmatpush1.msra.mxu0 0.0
      %3539 = vmatprep.subr.mxu0 0.0
      %3540 = vmatpush1.msra.mxu0 0.0
      %3541 = vmatprep.subr.mxu0 0.0
      %3542 = vmatpush1.msra.mxu0 0.0
      %3543 = vmatprep.subr.mxu0 0.0
      %3544 = vmatpush1.msra.mxu0 0.0
      %3545 = vmatprep.mubr.f32.mxu0 0.0
      %v3546 = vand.u32 %v3307, 4294901760
      %3547 = vmatmul.mubr.f32.gmra.mrb[0].mxu0 %v3546
      %v3548 = vpop.f32.mrb[0].mxu0
      %v3549 = vadd.f32 %v3397, %v3548
      %v3550 = vpop.f32.mrb[0].mxu0
      %v3551 = vadd.f32 %v3399, %v3550
      %3552 = vdwg.mxu0
      %v3553 = vand.u32 %v3287, 4294901760
      %v3554 = vsub.f32 %v3287, %v3553
      %3555 = vmatprep.subr.mxu0 %v3554
      %v3556 = vand.u32 %v3286, 4294901760
      %v3557 = vsub.f32 %v3286, %v3556
      %3558 = vmatpush1.msra.mxu0 %v3557
      %v3559 = vand.u32 %v3289, 4294901760
      %v3560 = vsub.f32 %v3289, %v3559
      %3561 = vmatprep.subr.mxu0 %v3560
      %v3562 = vand.u32 %v3288, 4294901760
      %v3563 = vsub.f32 %v3288, %v3562
      %3564 = vmatpush1.msra.mxu0 %v3563
      %v3565 = vand.u32 %v3291, 4294901760
      %v3566 = vsub.f32 %v3291, %v3565
      %3567 = vmatprep.subr.mxu0 %v3566
      %v3568 = vand.u32 %v3290, 4294901760
      %v3569 = vsub.f32 %v3290, %v3568
      %3570 = vmatpush1.msra.mxu0 %v3569
      %v3571 = vand.u32 %v3293, 4294901760
      %v3572 = vsub.f32 %v3293, %v3571
      %3573 = vmatprep.subr.mxu0 %v3572
      %v3574 = vand.u32 %v3292, 4294901760
      %v3575 = vsub.f32 %v3292, %v3574
      %3576 = vmatpush1.msra.mxu0 %v3575
      %v3577 = vand.u32 %v3295, 4294901760
      %v3578 = vsub.f32 %v3295, %v3577
      %3579 = vmatprep.subr.mxu0 %v3578
      %v3580 = vand.u32 %v3294, 4294901760
      %v3581 = vsub.f32 %v3294, %v3580
      %3582 = vmatpush1.msra.mxu0 %v3581
      %v3583 = vand.u32 %v3297, 4294901760
      %v3584 = vsub.f32 %v3297, %v3583
      %3585 = vmatprep.subr.mxu0 %v3584
      %v3586 = vand.u32 %v3296, 4294901760
      %v3587 = vsub.f32 %v3296, %v3586
      %3588 = vmatpush1.msra.mxu0 %v3587
      %v3589 = vand.u32 %v3299, 4294901760
      %v3590 = vsub.f32 %v3299, %v3589
      %3591 = vmatprep.subr.mxu0 %v3590
      %v3592 = vand.u32 %v3298, 4294901760
      %v3593 = vsub.f32 %v3298, %v3592
      %3594 = vmatpush1.msra.mxu0 %v3593
      %v3595 = vand.u32 %v3301, 4294901760
      %v3596 = vsub.f32 %v3301, %v3595
      %3597 = vmatprep.subr.mxu0 %v3596
      %v3598 = vand.u32 %v3300, 4294901760
      %v3599 = vsub.f32 %v3300, %v3598
      %3600 = vmatpush1.msra.mxu0 %v3599
      %3601 = vmatprep.subr.mxu0 0.0
      %3602 = vmatpush1.msra.mxu0 0.0
      %3603 = vmatprep.subr.mxu0 0.0
      %3604 = vmatpush1.msra.mxu0 0.0
      %3605 = vmatprep.subr.mxu0 0.0
      %3606 = vmatpush1.msra.mxu0 0.0
      %3607 = vmatprep.subr.mxu0 0.0
      %3608 = vmatpush1.msra.mxu0 0.0
      %3609 = vmatprep.subr.mxu0 0.0
      %3610 = vmatpush1.msra.mxu0 0.0
      %3611 = vmatprep.subr.mxu0 0.0
      %3612 = vmatpush1.msra.mxu0 0.0
      %3613 = vmatprep.subr.mxu0 0.0
      %3614 = vmatpush1.msra.mxu0 0.0
      %3615 = vmatprep.subr.mxu0 0.0
      %3616 = vmatpush1.msra.mxu0 0.0
      %3617 = vmatprep.subr.mxu0 0.0
      %3618 = vmatpush1.msra.mxu0 0.0
      %3619 = vmatprep.subr.mxu0 0.0
      %3620 = vmatpush1.msra.mxu0 0.0
      %3621 = vmatprep.subr.mxu0 0.0
      %3622 = vmatpush1.msra.mxu0 0.0
      %3623 = vmatprep.subr.mxu0 0.0
      %3624 = vmatpush1.msra.mxu0 0.0
      %3625 = vmatprep.subr.mxu0 0.0
      %3626 = vmatpush1.msra.mxu0 0.0
      %3627 = vmatprep.subr.mxu0 0.0
      %3628 = vmatpush1.msra.mxu0 0.0
      %3629 = vmatprep.subr.mxu0 0.0
      %3630 = vmatpush1.msra.mxu0 0.0
      %3631 = vmatprep.subr.mxu0 0.0
      %3632 = vmatpush1.msra.mxu0 0.0
      %3633 = vmatprep.subr.mxu0 0.0
      %3634 = vmatpush1.msra.mxu0 0.0
      %3635 = vmatprep.subr.mxu0 0.0
      %3636 = vmatpush1.msra.mxu0 0.0
      %3637 = vmatprep.subr.mxu0 0.0
      %3638 = vmatpush1.msra.mxu0 0.0
      %3639 = vmatprep.subr.mxu0 0.0
      %3640 = vmatpush1.msra.mxu0 0.0
      %3641 = vmatprep.subr.mxu0 0.0
      %3642 = vmatpush1.msra.mxu0 0.0
      %3643 = vmatprep.subr.mxu0 0.0
      %3644 = vmatpush1.msra.mxu0 0.0
      %3645 = vmatprep.subr.mxu0 0.0
      %3646 = vmatpush1.msra.mxu0 0.0
      %3647 = vmatprep.subr.mxu0 0.0
      %3648 = vmatpush1.msra.mxu0 0.0
      %3649 = vmatprep.mubr.f32.mxu0 0.0
      %v3650 = vand.u32 %v3307, 4294901760
      %v3651 = vsub.f32 %v3307, %v3650
      %3652 = vmatmul.mubr.f32.gmra.mrb[0].mxu0 %v3651
      %v3653 = vpop.f32.mrb[0].mxu0
      %v3654 = vadd.f32 %v3549, %v3653
      %v3655 = vpop.f32.mrb[0].mxu0
      %v3656 = vadd.f32 %v3551, %v3655
      %3657 = vdwg.mxu0
      %v3658 = vand.u32 %v3287, 4294901760
      %3659 = vmatprep.subr.mxu0 %v3658
      %v3660 = vand.u32 %v3286, 4294901760
      %3661 = vmatpush1.msra.mxu0 %v3660
      %v3662 = vand.u32 %v3289, 4294901760
      %3663 = vmatprep.subr.mxu0 %v3662
      %v3664 = vand.u32 %v3288, 4294901760
      %3665 = vmatpush1.msra.mxu0 %v3664
      %v3666 = vand.u32 %v3291, 4294901760
      %3667 = vmatprep.subr.mxu0 %v3666
      %v3668 = vand.u32 %v3290, 4294901760
      %3669 = vmatpush1.msra.mxu0 %v3668
      %v3670 = vand.u32 %v3293, 4294901760
      %3671 = vmatprep.subr.mxu0 %v3670
      %v3672 = vand.u32 %v3292, 4294901760
      %3673 = vmatpush1.msra.mxu0 %v3672
      %v3674 = vand.u32 %v3295, 4294901760
      %3675 = vmatprep.subr.mxu0 %v3674
      %v3676 = vand.u32 %v3294, 4294901760
      %3677 = vmatpush1.msra.mxu0 %v3676
      %v3678 = vand.u32 %v3297, 4294901760
      %3679 = vmatprep.subr.mxu0 %v3678
      %v3680 = vand.u32 %v3296, 4294901760
      %3681 = vmatpush1.msra.mxu0 %v3680
      %v3682 = vand.u32 %v3299, 4294901760
      %3683 = vmatprep.subr.mxu0 %v3682
      %v3684 = vand.u32 %v3298, 4294901760
      %3685 = vmatpush1.msra.mxu0 %v3684
      %v3686 = vand.u32 %v3301, 4294901760
      %3687 = vmatprep.subr.mxu0 %v3686
      %v3688 = vand.u32 %v3300, 4294901760
      %3689 = vmatpush1.msra.mxu0 %v3688
      %3690 = vmatprep.subr.mxu0 0.0
      %3691 = vmatpush1.msra.mxu0 0.0
      %3692 = vmatprep.subr.mxu0 0.0
      %3693 = vmatpush1.msra.mxu0 0.0
      %3694 = vmatprep.subr.mxu0 0.0
      %3695 = vmatpush1.msra.mxu0 0.0
      %3696 = vmatprep.subr.mxu0 0.0
      %3697 = vmatpush1.msra.mxu0 0.0
      %3698 = vmatprep.subr.mxu0 0.0
      %3699 = vmatpush1.msra.mxu0 0.0
      %3700 = vmatprep.subr.mxu0 0.0
      %3701 = vmatpush1.msra.mxu0 0.0
      %3702 = vmatprep.subr.mxu0 0.0
      %3703 = vmatpush1.msra.mxu0 0.0
      %3704 = vmatprep.subr.mxu0 0.0
      %3705 = vmatpush1.msra.mxu0 0.0
      %3706 = vmatprep.subr.mxu0 0.0
      %3707 = vmatpush1.msra.mxu0 0.0
      %3708 = vmatprep.subr.mxu0 0.0
      %3709 = vmatpush1.msra.mxu0 0.0
      %3710 = vmatprep.subr.mxu0 0.0
      %3711 = vmatpush1.msra.mxu0 0.0
      %3712 = vmatprep.subr.mxu0 0.0
      %3713 = vmatpush1.msra.mxu0 0.0
      %3714 = vmatprep.subr.mxu0 0.0
      %3715 = vmatpush1.msra.mxu0 0.0
      %3716 = vmatprep.subr.mxu0 0.0
      %3717 = vmatpush1.msra.mxu0 0.0
      %3718 = vmatprep.subr.mxu0 0.0
      %3719 = vmatpush1.msra.mxu0 0.0
      %3720 = vmatprep.subr.mxu0 0.0
      %3721 = vmatpush1.msra.mxu0 0.0
      %3722 = vmatprep.subr.mxu0 0.0
      %3723 = vmatpush1.msra.mxu0 0.0
      %3724 = vmatprep.subr.mxu0 0.0
      %3725 = vmatpush1.msra.mxu0 0.0
      %3726 = vmatprep.subr.mxu0 0.0
      %3727 = vmatpush1.msra.mxu0 0.0
      %3728 = vmatprep.subr.mxu0 0.0
      %3729 = vmatpush1.msra.mxu0 0.0
      %3730 = vmatprep.subr.mxu0 0.0
      %3731 = vmatpush1.msra.mxu0 0.0
      %3732 = vmatprep.subr.mxu0 0.0
      %3733 = vmatpush1.msra.mxu0 0.0
      %3734 = vmatprep.subr.mxu0 0.0
      %3735 = vmatpush1.msra.mxu0 0.0
      %3736 = vmatprep.subr.mxu0 0.0
      %3737 = vmatpush1.msra.mxu0 0.0
      %3738 = vmatprep.mubr.f32.mxu0 0.0
      %v3739 = vand.u32 %v3307, 4294901760
      %v3740 = vsub.f32 %v3307, %v3739
      %v3741 = vand.u32 %v3740, 4294901760
      %3742 = vmatmul.mubr.f32.gmra.mrb[0].mxu0 %v3741
      %v3743 = vpop.f32.mrb[0].mxu0
      %v3744 = vadd.f32 %v3654, %v3743
      %v3745 = vpop.f32.mrb[0].mxu0
      %v3746 = vadd.f32 %v3656, %v3745
      %3747 = vdwg.mxu0
      %v3748 = vand.u32 %v3287, 4294901760
      %v3749 = vsub.f32 %v3287, %v3748
      %v3750 = vand.u32 %v3749, 4294901760
      %3751 = vmatprep.subr.mxu0 %v3750
      %v3752 = vand.u32 %v3286, 4294901760
      %v3753 = vsub.f32 %v3286, %v3752
      %v3754 = vand.u32 %v3753, 4294901760
      %3755 = vmatpush1.msra.mxu0 %v3754
      %v3756 = vand.u32 %v3289, 4294901760
      %v3757 = vsub.f32 %v3289, %v3756
      %v3758 = vand.u32 %v3757, 4294901760
      %3759 = vmatprep.subr.mxu0 %v3758
      %v3760 = vand.u32 %v3288, 4294901760
      %v3761 = vsub.f32 %v3288, %v3760
      %v3762 = vand.u32 %v3761, 4294901760
      %3763 = vmatpush1.msra.mxu0 %v3762
      %v3764 = vand.u32 %v3291, 4294901760
      %v3765 = vsub.f32 %v3291, %v3764
      %v3766 = vand.u32 %v3765, 4294901760
      %3767 = vmatprep.subr.mxu0 %v3766
      %v3768 = vand.u32 %v3290, 4294901760
      %v3769 = vsub.f32 %v3290, %v3768
      %v3770 = vand.u32 %v3769, 4294901760
      %3771 = vmatpush1.msra.mxu0 %v3770
      %v3772 = vand.u32 %v3293, 4294901760
      %v3773 = vsub.f32 %v3293, %v3772
      %v3774 = vand.u32 %v3773, 4294901760
      %3775 = vmatprep.subr.mxu0 %v3774
      %v3776 = vand.u32 %v3292, 4294901760
      %v3777 = vsub.f32 %v3292, %v3776
      %v3778 = vand.u32 %v3777, 4294901760
      %3779 = vmatpush1.msra.mxu0 %v3778
      %v3780 = vand.u32 %v3295, 4294901760
      %v3781 = vsub.f32 %v3295, %v3780
      %v3782 = vand.u32 %v3781, 4294901760
      %3783 = vmatprep.subr.mxu0 %v3782
      %v3784 = vand.u32 %v3294, 4294901760
      %v3785 = vsub.f32 %v3294, %v3784
      %v3786 = vand.u32 %v3785, 4294901760
      %3787 = vmatpush1.msra.mxu0 %v3786
      %v3788 = vand.u32 %v3297, 4294901760
      %v3789 = vsub.f32 %v3297, %v3788
      %v3790 = vand.u32 %v3789, 4294901760
      %3791 = vmatprep.subr.mxu0 %v3790
      %v3792 = vand.u32 %v3296, 4294901760
      %v3793 = vsub.f32 %v3296, %v3792
      %v3794 = vand.u32 %v3793, 4294901760
      %3795 = vmatpush1.msra.mxu0 %v3794
      %v3796 = vand.u32 %v3299, 4294901760
      %v3797 = vsub.f32 %v3299, %v3796
      %v3798 = vand.u32 %v3797, 4294901760
      %3799 = vmatprep.subr.mxu0 %v3798
      %v3800 = vand.u32 %v3298, 4294901760
      %v3801 = vsub.f32 %v3298, %v3800
      %v3802 = vand.u32 %v3801, 4294901760
      %3803 = vmatpush1.msra.mxu0 %v3802
      %v3804 = vand.u32 %v3301, 4294901760
      %v3805 = vsub.f32 %v3301, %v3804
      %v3806 = vand.u32 %v3805, 4294901760
      %3807 = vmatprep.subr.mxu0 %v3806
      %v3808 = vand.u32 %v3300, 4294901760
      %v3809 = vsub.f32 %v3300, %v3808
      %v3810 = vand.u32 %v3809, 4294901760
      %3811 = vmatpush1.msra.mxu0 %v3810
      %3812 = vmatprep.subr.mxu0 0.0
      %3813 = vmatpush1.msra.mxu0 0.0
      %3814 = vmatprep.subr.mxu0 0.0
      %3815 = vmatpush1.msra.mxu0 0.0
      %3816 = vmatprep.subr.mxu0 0.0
      %3817 = vmatpush1.msra.mxu0 0.0
      %3818 = vmatprep.subr.mxu0 0.0
      %3819 = vmatpush1.msra.mxu0 0.0
      %3820 = vmatprep.subr.mxu0 0.0
      %3821 = vmatpush1.msra.mxu0 0.0
      %3822 = vmatprep.subr.mxu0 0.0
      %3823 = vmatpush1.msra.mxu0 0.0
      %3824 = vmatprep.subr.mxu0 0.0
      %3825 = vmatpush1.msra.mxu0 0.0
      %3826 = vmatprep.subr.mxu0 0.0
      %3827 = vmatpush1.msra.mxu0 0.0
      %3828 = vmatprep.subr.mxu0 0.0
      %3829 = vmatpush1.msra.mxu0 0.0
      %3830 = vmatprep.subr.mxu0 0.0
      %3831 = vmatpush1.msra.mxu0 0.0
      %3832 = vmatprep.subr.mxu0 0.0
      %3833 = vmatpush1.msra.mxu0 0.0
      %3834 = vmatprep.subr.mxu0 0.0
      %3835 = vmatpush1.msra.mxu0 0.0
      %3836 = vmatprep.subr.mxu0 0.0
      %3837 = vmatpush1.msra.mxu0 0.0
      %3838 = vmatprep.subr.mxu0 0.0
      %3839 = vmatpush1.msra.mxu0 0.0
      %3840 = vmatprep.subr.mxu0 0.0
      %3841 = vmatpush1.msra.mxu0 0.0
      %3842 = vmatprep.subr.mxu0 0.0
      %3843 = vmatpush1.msra.mxu0 0.0
      %3844 = vmatprep.subr.mxu0 0.0
      %3845 = vmatpush1.msra.mxu0 0.0
      %3846 = vmatprep.subr.mxu0 0.0
      %3847 = vmatpush1.msra.mxu0 0.0
      %3848 = vmatprep.subr.mxu0 0.0
      %3849 = vmatpush1.msra.mxu0 0.0
      %3850 = vmatprep.subr.mxu0 0.0
      %3851 = vmatpush1.msra.mxu0 0.0
      %3852 = vmatprep.subr.mxu0 0.0
      %3853 = vmatpush1.msra.mxu0 0.0
      %3854 = vmatprep.subr.mxu0 0.0
      %3855 = vmatpush1.msra.mxu0 0.0
      %3856 = vmatprep.subr.mxu0 0.0
      %3857 = vmatpush1.msra.mxu0 0.0
      %3858 = vmatprep.subr.mxu0 0.0
      %3859 = vmatpush1.msra.mxu0 0.0
      %3860 = vmatprep.mubr.f32.mxu0 0.0
      %v3861 = vand.u32 %v3307, 4294901760
      %3862 = vmatmul.mubr.f32.gmra.mrb[0].mxu0 %v3861
      %v3863 = vpop.f32.mrb[0].mxu0
      %v3864 = vadd.f32 %v3744, %v3863
      %v3865 = vpop.f32.mrb[0].mxu0
      %v3866 = vadd.f32 %v3746, %v3865
      %3867 = vdwg.mxu0
      %v3868 = vand.u32 %v3287, 4294901760
      %3869 = vmatprep.subr.mxu0 %v3868
      %v3870 = vand.u32 %v3286, 4294901760
      %3871 = vmatpush1.msra.mxu0 %v3870
      %v3872 = vand.u32 %v3289, 4294901760
      %3873 = vmatprep.subr.mxu0 %v3872
      %v3874 = vand.u32 %v3288, 4294901760
      %3875 = vmatpush1.msra.mxu0 %v3874
      %v3876 = vand.u32 %v3291, 4294901760
      %3877 = vmatprep.subr.mxu0 %v3876
      %v3878 = vand.u32 %v3290, 4294901760
      %3879 = vmatpush1.msra.mxu0 %v3878
      %v3880 = vand.u32 %v3293, 4294901760
      %3881 = vmatprep.subr.mxu0 %v3880
      %v3882 = vand.u32 %v3292, 4294901760
      %3883 = vmatpush1.msra.mxu0 %v3882
      %v3884 = vand.u32 %v3295, 4294901760
      %3885 = vmatprep.subr.mxu0 %v3884
      %v3886 = vand.u32 %v3294, 4294901760
      %3887 = vmatpush1.msra.mxu0 %v3886
      %v3888 = vand.u32 %v3297, 4294901760
      %3889 = vmatprep.subr.mxu0 %v3888
      %v3890 = vand.u32 %v3296, 4294901760
      %3891 = vmatpush1.msra.mxu0 %v3890
      %v3892 = vand.u32 %v3299, 4294901760
      %3893 = vmatprep.subr.mxu0 %v3892
      %v3894 = vand.u32 %v3298, 4294901760
      %3895 = vmatpush1.msra.mxu0 %v3894
      %v3896 = vand.u32 %v3301, 4294901760
      %3897 = vmatprep.subr.mxu0 %v3896
      %v3898 = vand.u32 %v3300, 4294901760
      %3899 = vmatpush1.msra.mxu0 %v3898
      %3900 = vmatprep.subr.mxu0 0.0
      %3901 = vmatpush1.msra.mxu0 0.0
      %3902 = vmatprep.subr.mxu0 0.0
      %3903 = vmatpush1.msra.mxu0 0.0
      %3904 = vmatprep.subr.mxu0 0.0
      %3905 = vmatpush1.msra.mxu0 0.0
      %3906 = vmatprep.subr.mxu0 0.0
      %3907 = vmatpush1.msra.mxu0 0.0
      %3908 = vmatprep.subr.mxu0 0.0
      %3909 = vmatpush1.msra.mxu0 0.0
      %3910 = vmatprep.subr.mxu0 0.0
      %3911 = vmatpush1.msra.mxu0 0.0
      %3912 = vmatprep.subr.mxu0 0.0
      %3913 = vmatpush1.msra.mxu0 0.0
      %3914 = vmatprep.subr.mxu0 0.0
      %3915 = vmatpush1.msra.mxu0 0.0
      %3916 = vmatprep.subr.mxu0 0.0
      %3917 = vmatpush1.msra.mxu0 0.0
      %3918 = vmatprep.subr.mxu0 0.0
      %3919 = vmatpush1.msra.mxu0 0.0
      %3920 = vmatprep.subr.mxu0 0.0
      %3921 = vmatpush1.msra.mxu0 0.0
      %3922 = vmatprep.subr.mxu0 0.0
      %3923 = vmatpush1.msra.mxu0 0.0
      %3924 = vmatprep.subr.mxu0 0.0
      %3925 = vmatpush1.msra.mxu0 0.0
      %3926 = vmatprep.subr.mxu0 0.0
      %3927 = vmatpush1.msra.mxu0 0.0
      %3928 = vmatprep.subr.mxu0 0.0
      %3929 = vmatpush1.msra.mxu0 0.0
      %3930 = vmatprep.subr.mxu0 0.0
      %3931 = vmatpush1.msra.mxu0 0.0
      %3932 = vmatprep.subr.mxu0 0.0
      %3933 = vmatpush1.msra.mxu0 0.0
      %3934 = vmatprep.subr.mxu0 0.0
      %3935 = vmatpush1.msra.mxu0 0.0
      %3936 = vmatprep.subr.mxu0 0.0
      %3937 = vmatpush1.msra.mxu0 0.0
      %3938 = vmatprep.subr.mxu0 0.0
      %3939 = vmatpush1.msra.mxu0 0.0
      %3940 = vmatprep.subr.mxu0 0.0
      %3941 = vmatpush1.msra.mxu0 0.0
      %3942 = vmatprep.subr.mxu0 0.0
      %3943 = vmatpush1.msra.mxu0 0.0
      %3944 = vmatprep.subr.mxu0 0.0
      %3945 = vmatpush1.msra.mxu0 0.0
      %3946 = vmatprep.subr.mxu0 0.0
      %3947 = vmatpush1.msra.mxu0 0.0
      %3948 = vmatprep.mubr.f32.mxu0 0.0
      %v3949 = vand.u32 %v3307, 4294901760
      %3950 = vmatmul.mubr.f32.gmra.mrb[0].mxu0 %v3949
      %v3951 = vpop.f32.mrb[0].mxu0
      %v3952 = vadd.f32 %v3864, %v3951
      %v3953 = vpop.f32.mrb[0].mxu0
      %v3954 = vadd.f32 %v3866, %v3953
      %3955 = vdwg.mxu0
      %v3956 = vadd.f32 %v3303, %v3952
      %v3957 = vadd.f32 %v3304, %v3954
      %3958 = vst [vmem:[#allocation5] sm:$0xff] %v3956
      %3959 = vst [vmem:[#allocation5 + $0x8] sm:$0xff] %v3957
    $region85: #{tpu_custom_call.1} parent=1 // pred_fallthru
      _
    %s3960 = sld [smem:[#allocation10 + %s1660]]
    %p3961 = scmp.gt.s32.totalorder %s3960, 0
    // Predicated region
    $region86: #{tpu_custom_call.1} parent=1 // pred_check
      %p3962 = pneg %p3961
    $region87: #{tpu_custom_call.1} parent=1 // pred_check_branch
      %3964 = sbr.rel (%p3962) target = $region89
    $region88: #{tpu_custom_call.1} parent=1 // pred_region
      %v3965 = vlaneseq
      %v3966 = vshrl.u32 %v3965, 7
      %v3967 = vadd.s32 %v3966, 8
      %v3968 = vadd.s32 %v3966, 16
      %v3969 = vadd.s32 %v3966, 24
      %v3970 = vadd.s32 %v3966, 32
      %v3971 = vadd.s32 %v3966, 40
      %v3972 = vadd.s32 %v3966, 48
      %v3973 = vadd.s32 %v3966, 56
      %v3974 = vadd.s32 %v3966, 64
      %v3975 = vadd.s32 %v3967, 64
      %v3976 = vadd.s32 %v3968, 64
      %v3977 = vadd.s32 %v3969, 64
      %v3978 = vadd.s32 %v3970, 64
      %v3979 = vadd.s32 %v3971, 64
      %v3980 = vadd.s32 %v3972, 64
      %v3981 = vadd.s32 %v3973, 64
      %v3982 = vlaneseq
      %v3983 = vshrl.u32 %v3982, 7
      %v3984 = vsub.s32 0, %v3983
      %v3985 = vrot.slane %v3229, %v3984
      %v3986 = vlaneseq
      %v3987 = vshrl.u32 %v3986, 7
      %v3988 = vsub.s32 1, %v3987
      %v3989 = vrot.slane %v3229, %v3988
      %vm3990 = vcmp.eq.s32.totalorder %v3974, %v3985
      %vm3991 = vcmp.eq.s32.totalorder %v3974, %v3989
      %vm3992 = vcmp.eq.s32.totalorder %v3975, %v3985
      %vm3993 = vcmp.eq.s32.totalorder %v3975, %v3989
      %vm3994 = vcmp.eq.s32.totalorder %v3976, %v3985
      %vm3995 = vcmp.eq.s32.totalorder %v3976, %v3989
      %vm3996 = vcmp.eq.s32.totalorder %v3977, %v3985
      %vm3997 = vcmp.eq.s32.totalorder %v3977, %v3989
      %vm3998 = vcmp.eq.s32.totalorder %v3978, %v3985
      %vm3999 = vcmp.eq.s32.totalorder %v3978, %v3989
      %vm4000 = vcmp.eq.s32.totalorder %v3979, %v3985
      %vm4001 = vcmp.eq.s32.totalorder %v3979, %v3989
      %vm4002 = vcmp.eq.s32.totalorder %v3980, %v3985
      %vm4003 = vcmp.eq.s32.totalorder %v3980, %v3989
      %vm4004 = vcmp.eq.s32.totalorder %v3981, %v3985
      %vm4005 = vcmp.eq.s32.totalorder %v3981, %v3989
      %v4006 = vsel %vm3990, 1, 0
      %v4007 = vsel %vm3991, 1, 0
      %v4008 = vsel %vm3992, 1, 0
      %v4009 = vsel %vm3993, 1, 0
      %v4010 = vsel %vm3994, 1, 0
      %v4011 = vsel %vm3995, 1, 0
      %v4012 = vsel %vm3996, 1, 0
      %v4013 = vsel %vm3997, 1, 0
      %v4014 = vsel %vm3998, 1, 0
      %v4015 = vsel %vm3999, 1, 0
      %v4016 = vsel %vm4000, 1, 0
      %v4017 = vsel %vm4001, 1, 0
      %v4018 = vsel %vm4002, 1, 0
      %v4019 = vsel %vm4003, 1, 0
      %v4020 = vsel %vm4004, 1, 0
      %v4021 = vsel %vm4005, 1, 0
      %v4022 = vcvt.s32.f32 %v4006
      %v4023 = vcvt.s32.f32 %v4007
      %v4024 = vcvt.s32.f32 %v4008
      %v4025 = vcvt.s32.f32 %v4009
      %v4026 = vcvt.s32.f32 %v4010
      %v4027 = vcvt.s32.f32 %v4011
      %v4028 = vcvt.s32.f32 %v4012
      %v4029 = vcvt.s32.f32 %v4013
      %v4030 = vcvt.s32.f32 %v4014
      %v4031 = vcvt.s32.f32 %v4015
      %v4032 = vcvt.s32.f32 %v4016
      %v4033 = vcvt.s32.f32 %v4017
      %v4034 = vcvt.s32.f32 %v4018
      %v4035 = vcvt.s32.f32 %v4019
      %v4036 = vcvt.s32.f32 %v4020
      %v4037 = vcvt.s32.f32 %v4021
      %s4038 = scalar_lea.vmem [#allocation3], 8
      %v4039 = vld [vmem:[%s4038] sm:$0xff]
      %v4040 = vld [vmem:[#allocation5] sm:$0xff]
      %v4041 = vld [vmem:[#allocation5 + $0x8] sm:$0xff]
      %vm4042 = vcmask 523264
      %v4044 = vsel %vm4042, %v4039, 0
      %v4046 = vand.u32 %v4023, 4294901760
      %4047 = vmatprep.subr.mxu0 %v4046
      %v4048 = vand.u32 %v4022, 4294901760
      %4049 = vmatpush1.msra.mxu0 %v4048
      %v4050 = vand.u32 %v4025, 4294901760
      %4051 = vmatprep.subr.mxu0 %v4050
      %v4052 = vand.u32 %v4024, 4294901760
      %4053 = vmatpush1.msra.mxu0 %v4052
      %v4054 = vand.u32 %v4027, 4294901760
      %4055 = vmatprep.subr.mxu0 %v4054
      %v4056 = vand.u32 %v4026, 4294901760
      %4057 = vmatpush1.msra.mxu0 %v4056
      %v4058 = vand.u32 %v4029, 4294901760
      %4059 = vmatprep.subr.mxu0 %v4058
      %v4060 = vand.u32 %v4028, 4294901760
      %4061 = vmatpush1.msra.mxu0 %v4060
      %v4062 = vand.u32 %v4031, 4294901760
      %4063 = vmatprep.subr.mxu0 %v4062
      %v4064 = vand.u32 %v4030, 4294901760
      %4065 = vmatpush1.msra.mxu0 %v4064
      %v4066 = vand.u32 %v4033, 4294901760
      %4067 = vmatprep.subr.mxu0 %v4066
      %v4068 = vand.u32 %v4032, 4294901760
      %4069 = vmatpush1.msra.mxu0 %v4068
      %v4070 = vand.u32 %v4035, 4294901760
      %4071 = vmatprep.subr.mxu0 %v4070
      %v4072 = vand.u32 %v4034, 4294901760
      %4073 = vmatpush1.msra.mxu0 %v4072
      %v4074 = vand.u32 %v4037, 4294901760
      %4075 = vmatprep.subr.mxu0 %v4074
      %v4076 = vand.u32 %v4036, 4294901760
      %4077 = vmatpush1.msra.mxu0 %v4076
      %4078 = vmatprep.subr.mxu0 0.0
      %4079 = vmatpush1.msra.mxu0 0.0
      %4080 = vmatprep.subr.mxu0 0.0
      %4081 = vmatpush1.msra.mxu0 0.0
      %4082 = vmatprep.subr.mxu0 0.0
      %4083 = vmatpush1.msra.mxu0 0.0
      %4084 = vmatprep.subr.mxu0 0.0
      %4085 = vmatpush1.msra.mxu0 0.0
      %4086 = vmatprep.subr.mxu0 0.0
      %4087 = vmatpush1.msra.mxu0 0.0
      %4088 = vmatprep.subr.mxu0 0.0
      %4089 = vmatpush1.msra.mxu0 0.0
      %4090 = vmatprep.subr.mxu0 0.0
      %4091 = vmatpush1.msra.mxu0 0.0
      %4092 = vmatprep.subr.mxu0 0.0
      %4093 = vmatpush1.msra.mxu0 0.0
      %4094 = vmatprep.subr.mxu0 0.0
      %4095 = vmatpush1.msra.mxu0 0.0
      %4096 = vmatprep.subr.mxu0 0.0
      %4097 = vmatpush1.msra.mxu0 0.0
      %4098 = vmatprep.subr.mxu0 0.0
      %4099 = vmatpush1.msra.mxu0 0.0
      %4100 = vmatprep.subr.mxu0 0.0
      %4101 = vmatpush1.msra.mxu0 0.0
      %4102 = vmatprep.subr.mxu0 0.0
      %4103 = vmatpush1.msra.mxu0 0.0
      %4104 = vmatprep.subr.mxu0 0.0
      %4105 = vmatpush1.msra.mxu0 0.0
      %4106 = vmatprep.subr.mxu0 0.0
      %4107 = vmatpush1.msra.mxu0 0.0
      %4108 = vmatprep.subr.mxu0 0.0
      %4109 = vmatpush1.msra.mxu0 0.0
      %4110 = vmatprep.subr.mxu0 0.0
      %4111 = vmatpush1.msra.mxu0 0.0
      %4112 = vmatprep.subr.mxu0 0.0
      %4113 = vmatpush1.msra.mxu0 0.0
      %4114 = vmatprep.subr.mxu0 0.0
      %4115 = vmatpush1.msra.mxu0 0.0
      %4116 = vmatprep.subr.mxu0 0.0
      %4117 = vmatpush1.msra.mxu0 0.0
      %4118 = vmatprep.subr.mxu0 0.0
      %4119 = vmatpush1.msra.mxu0 0.0
      %4120 = vmatprep.subr.mxu0 0.0
      %4121 = vmatpush1.msra.mxu0 0.0
      %4122 = vmatprep.subr.mxu0 0.0
      %4123 = vmatpush1.msra.mxu0 0.0
      %4124 = vmatprep.subr.mxu0 0.0
      %4125 = vmatpush1.msra.mxu0 0.0
      %4126 = vmatprep.mubr.f32.mxu0 0.0
      %v4127 = vand.u32 %v4044, 4294901760
      %v4128 = vsub.f32 %v4044, %v4127
      %v4129 = vand.u32 %v4128, 4294901760
      %v4130 = vsub.f32 %v4128, %v4129
      %v4131 = vand.u32 %v4130, 4294901760
      %4132 = vmatmul.mubr.f32.gmra.mrb[0].mxu0 %v4131
      %v4133 = vpop.f32.mrb[0].mxu0
      %v4134 = vadd.f32 0.0, %v4133
      %v4135 = vpop.f32.mrb[0].mxu0
      %v4136 = vadd.f32 0.0, %v4135
      %4137 = vdwg.mxu0
      %v4138 = vand.u32 %v4023, 4294901760
      %v4139 = vsub.f32 %v4023, %v4138
      %v4140 = vand.u32 %v4139, 4294901760
      %v4141 = vsub.f32 %v4139, %v4140
      %v4142 = vand.u32 %v4141, 4294901760
      %4143 = vmatprep.subr.mxu0 %v4142
      %v4144 = vand.u32 %v4022, 4294901760
      %v4145 = vsub.f32 %v4022, %v4144
      %v4146 = vand.u32 %v4145, 4294901760
      %v4147 = vsub.f32 %v4145, %v4146
      %v4148 = vand.u32 %v4147, 4294901760
      %4149 = vmatpush1.msra.mxu0 %v4148
      %v4150 = vand.u32 %v4025, 4294901760
      %v4151 = vsub.f32 %v4025, %v4150
      %v4152 = vand.u32 %v4151, 4294901760
      %v4153 = vsub.f32 %v4151, %v4152
      %v4154 = vand.u32 %v4153, 4294901760
      %4155 = vmatprep.subr.mxu0 %v4154
      %v4156 = vand.u32 %v4024, 4294901760
      %v4157 = vsub.f32 %v4024, %v4156
      %v4158 = vand.u32 %v4157, 4294901760
      %v4159 = vsub.f32 %v4157, %v4158
      %v4160 = vand.u32 %v4159, 4294901760
      %4161 = vmatpush1.msra.mxu0 %v4160
      %v4162 = vand.u32 %v4027, 4294901760
      %v4163 = vsub.f32 %v4027, %v4162
      %v4164 = vand.u32 %v4163, 4294901760
      %v4165 = vsub.f32 %v4163, %v4164
      %v4166 = vand.u32 %v4165, 4294901760
      %4167 = vmatprep.subr.mxu0 %v4166
      %v4168 = vand.u32 %v4026, 4294901760
      %v4169 = vsub.f32 %v4026, %v4168
      %v4170 = vand.u32 %v4169, 4294901760
      %v4171 = vsub.f32 %v4169, %v4170
      %v4172 = vand.u32 %v4171, 4294901760
      %4173 = vmatpush1.msra.mxu0 %v4172
      %v4174 = vand.u32 %v4029, 4294901760
      %v4175 = vsub.f32 %v4029, %v4174
      %v4176 = vand.u32 %v4175, 4294901760
      %v4177 = vsub.f32 %v4175, %v4176
      %v4178 = vand.u32 %v4177, 4294901760
      %4179 = vmatprep.subr.mxu0 %v4178
      %v4180 = vand.u32 %v4028, 4294901760
      %v4181 = vsub.f32 %v4028, %v4180
      %v4182 = vand.u32 %v4181, 4294901760
      %v4183 = vsub.f32 %v4181, %v4182
      %v4184 = vand.u32 %v4183, 4294901760
      %4185 = vmatpush1.msra.mxu0 %v4184
      %v4186 = vand.u32 %v4031, 4294901760
      %v4187 = vsub.f32 %v4031, %v4186
      %v4188 = vand.u32 %v4187, 4294901760
      %v4189 = vsub.f32 %v4187, %v4188
      %v4190 = vand.u32 %v4189, 4294901760
      %4191 = vmatprep.subr.mxu0 %v4190
      %v4192 = vand.u32 %v4030, 4294901760
      %v4193 = vsub.f32 %v4030, %v4192
      %v4194 = vand.u32 %v4193, 4294901760
      %v4195 = vsub.f32 %v4193, %v4194
      %v4196 = vand.u32 %v4195, 4294901760
      %4197 = vmatpush1.msra.mxu0 %v4196
      %v4198 = vand.u32 %v4033, 4294901760
      %v4199 = vsub.f32 %v4033, %v4198
      %v4200 = vand.u32 %v4199, 4294901760
      %v4201 = vsub.f32 %v4199, %v4200
      %v4202 = vand.u32 %v4201, 4294901760
      %4203 = vmatprep.subr.mxu0 %v4202
      %v4204 = vand.u32 %v4032, 4294901760
      %v4205 = vsub.f32 %v4032, %v4204
      %v4206 = vand.u32 %v4205, 4294901760
      %v4207 = vsub.f32 %v4205, %v4206
      %v4208 = vand.u32 %v4207, 4294901760
      %4209 = vmatpush1.msra.mxu0 %v4208
      %v4210 = vand.u32 %v4035, 4294901760
      %v4211 = vsub.f32 %v4035, %v4210
      %v4212 = vand.u32 %v4211, 4294901760
      %v4213 = vsub.f32 %v4211, %v4212
      %v4214 = vand.u32 %v4213, 4294901760
      %4215 = vmatprep.subr.mxu0 %v4214
      %v4216 = vand.u32 %v4034, 4294901760
      %v4217 = vsub.f32 %v4034, %v4216
      %v4218 = vand.u32 %v4217, 4294901760
      %v4219 = vsub.f32 %v4217, %v4218
      %v4220 = vand.u32 %v4219, 4294901760
      %4221 = vmatpush1.msra.mxu0 %v4220
      %v4222 = vand.u32 %v4037, 4294901760
      %v4223 = vsub.f32 %v4037, %v4222
      %v4224 = vand.u32 %v4223, 4294901760
      %v4225 = vsub.f32 %v4223, %v4224
      %v4226 = vand.u32 %v4225, 4294901760
      %4227 = vmatprep.subr.mxu0 %v4226
      %v4228 = vand.u32 %v4036, 4294901760
      %v4229 = vsub.f32 %v4036, %v4228
      %v4230 = vand.u32 %v4229, 4294901760
      %v4231 = vsub.f32 %v4229, %v4230
      %v4232 = vand.u32 %v4231, 4294901760
      %4233 = vmatpush1.msra.mxu0 %v4232
      %4234 = vmatprep.subr.mxu0 0.0
      %4235 = vmatpush1.msra.mxu0 0.0
      %4236 = vmatprep.subr.mxu0 0.0
      %4237 = vmatpush1.msra.mxu0 0.0
      %4238 = vmatprep.subr.mxu0 0.0
      %4239 = vmatpush1.msra.mxu0 0.0
      %4240 = vmatprep.subr.mxu0 0.0
      %4241 = vmatpush1.msra.mxu0 0.0
      %4242 = vmatprep.subr.mxu0 0.0
      %4243 = vmatpush1.msra.mxu0 0.0
      %4244 = vmatprep.subr.mxu0 0.0
      %4245 = vmatpush1.msra.mxu0 0.0
      %4246 = vmatprep.subr.mxu0 0.0
      %4247 = vmatpush1.msra.mxu0 0.0
      %4248 = vmatprep.subr.mxu0 0.0
      %4249 = vmatpush1.msra.mxu0 0.0
      %4250 = vmatprep.subr.mxu0 0.0
      %4251 = vmatpush1.msra.mxu0 0.0
      %4252 = vmatprep.subr.mxu0 0.0
      %4253 = vmatpush1.msra.mxu0 0.0
      %4254 = vmatprep.subr.mxu0 0.0
      %4255 = vmatpush1.msra.mxu0 0.0
      %4256 = vmatprep.subr.mxu0 0.0
      %4257 = vmatpush1.msra.mxu0 0.0
      %4258 = vmatprep.subr.mxu0 0.0
      %4259 = vmatpush1.msra.mxu0 0.0
      %4260 = vmatprep.subr.mxu0 0.0
      %4261 = vmatpush1.msra.mxu0 0.0
      %4262 = vmatprep.subr.mxu0 0.0
      %4263 = vmatpush1.msra.mxu0 0.0
      %4264 = vmatprep.subr.mxu0 0.0
      %4265 = vmatpush1.msra.mxu0 0.0
      %4266 = vmatprep.subr.mxu0 0.0
      %4267 = vmatpush1.msra.mxu0 0.0
      %4268 = vmatprep.subr.mxu0 0.0
      %4269 = vmatpush1.msra.mxu0 0.0
      %4270 = vmatprep.subr.mxu0 0.0
      %4271 = vmatpush1.msra.mxu0 0.0
      %4272 = vmatprep.subr.mxu0 0.0
      %4273 = vmatpush1.msra.mxu0 0.0
      %4274 = vmatprep.subr.mxu0 0.0
      %4275 = vmatpush1.msra.mxu0 0.0
      %4276 = vmatprep.subr.mxu0 0.0
      %4277 = vmatpush1.msra.mxu0 0.0
      %4278 = vmatprep.subr.mxu0 0.0
      %4279 = vmatpush1.msra.mxu0 0.0
      %4280 = vmatprep.subr.mxu0 0.0
      %4281 = vmatpush1.msra.mxu0 0.0
      %4282 = vmatprep.mubr.f32.mxu0 0.0
      %v4283 = vand.u32 %v4044, 4294901760
      %4284 = vmatmul.mubr.f32.gmra.mrb[0].mxu0 %v4283
      %v4285 = vpop.f32.mrb[0].mxu0
      %v4286 = vadd.f32 %v4134, %v4285
      %v4287 = vpop.f32.mrb[0].mxu0
      %v4288 = vadd.f32 %v4136, %v4287
      %4289 = vdwg.mxu0
      %v4290 = vand.u32 %v4023, 4294901760
      %v4291 = vsub.f32 %v4023, %v4290
      %4292 = vmatprep.subr.mxu0 %v4291
      %v4293 = vand.u32 %v4022, 4294901760
      %v4294 = vsub.f32 %v4022, %v4293
      %4295 = vmatpush1.msra.mxu0 %v4294
      %v4296 = vand.u32 %v4025, 4294901760
      %v4297 = vsub.f32 %v4025, %v4296
      %4298 = vmatprep.subr.mxu0 %v4297
      %v4299 = vand.u32 %v4024, 4294901760
      %v4300 = vsub.f32 %v4024, %v4299
      %4301 = vmatpush1.msra.mxu0 %v4300
      %v4302 = vand.u32 %v4027, 4294901760
      %v4303 = vsub.f32 %v4027, %v4302
      %4304 = vmatprep.subr.mxu0 %v4303
      %v4305 = vand.u32 %v4026, 4294901760
      %v4306 = vsub.f32 %v4026, %v4305
      %4307 = vmatpush1.msra.mxu0 %v4306
      %v4308 = vand.u32 %v4029, 4294901760
      %v4309 = vsub.f32 %v4029, %v4308
      %4310 = vmatprep.subr.mxu0 %v4309
      %v4311 = vand.u32 %v4028, 4294901760
      %v4312 = vsub.f32 %v4028, %v4311
      %4313 = vmatpush1.msra.mxu0 %v4312
      %v4314 = vand.u32 %v4031, 4294901760
      %v4315 = vsub.f32 %v4031, %v4314
      %4316 = vmatprep.subr.mxu0 %v4315
      %v4317 = vand.u32 %v4030, 4294901760
      %v4318 = vsub.f32 %v4030, %v4317
      %4319 = vmatpush1.msra.mxu0 %v4318
      %v4320 = vand.u32 %v4033, 4294901760
      %v4321 = vsub.f32 %v4033, %v4320
      %4322 = vmatprep.subr.mxu0 %v4321
      %v4323 = vand.u32 %v4032, 4294901760
      %v4324 = vsub.f32 %v4032, %v4323
      %4325 = vmatpush1.msra.mxu0 %v4324
      %v4326 = vand.u32 %v4035, 4294901760
      %v4327 = vsub.f32 %v4035, %v4326
      %4328 = vmatprep.subr.mxu0 %v4327
      %v4329 = vand.u32 %v4034, 4294901760
      %v4330 = vsub.f32 %v4034, %v4329
      %4331 = vmatpush1.msra.mxu0 %v4330
      %v4332 = vand.u32 %v4037, 4294901760
      %v4333 = vsub.f32 %v4037, %v4332
      %4334 = vmatprep.subr.mxu0 %v4333
      %v4335 = vand.u32 %v4036, 4294901760
      %v4336 = vsub.f32 %v4036, %v4335
      %4337 = vmatpush1.msra.mxu0 %v4336
      %4338 = vmatprep.subr.mxu0 0.0
      %4339 = vmatpush1.msra.mxu0 0.0
      %4340 = vmatprep.subr.mxu0 0.0
      %4341 = vmatpush1.msra.mxu0 0.0
      %4342 = vmatprep.subr.mxu0 0.0
      %4343 = vmatpush1.msra.mxu0 0.0
      %4344 = vmatprep.subr.mxu0 0.0
      %4345 = vmatpush1.msra.mxu0 0.0
      %4346 = vmatprep.subr.mxu0 0.0
      %4347 = vmatpush1.msra.mxu0 0.0
      %4348 = vmatprep.subr.mxu0 0.0
      %4349 = vmatpush1.msra.mxu0 0.0
      %4350 = vmatprep.subr.mxu0 0.0
      %4351 = vmatpush1.msra.mxu0 0.0
      %4352 = vmatprep.subr.mxu0 0.0
      %4353 = vmatpush1.msra.mxu0 0.0
      %4354 = vmatprep.subr.mxu0 0.0
      %4355 = vmatpush1.msra.mxu0 0.0
      %4356 = vmatprep.subr.mxu0 0.0
      %4357 = vmatpush1.msra.mxu0 0.0
      %4358 = vmatprep.subr.mxu0 0.0
      %4359 = vmatpush1.msra.mxu0 0.0
      %4360 = vmatprep.subr.mxu0 0.0
      %4361 = vmatpush1.msra.mxu0 0.0
      %4362 = vmatprep.subr.mxu0 0.0
      %4363 = vmatpush1.msra.mxu0 0.0
      %4364 = vmatprep.subr.mxu0 0.0
      %4365 = vmatpush1.msra.mxu0 0.0
      %4366 = vmatprep.subr.mxu0 0.0
      %4367 = vmatpush1.msra.mxu0 0.0
      %4368 = vmatprep.subr.mxu0 0.0
      %4369 = vmatpush1.msra.mxu0 0.0
      %4370 = vmatprep.subr.mxu0 0.0
      %4371 = vmatpush1.msra.mxu0 0.0
      %4372 = vmatprep.subr.mxu0 0.0
      %4373 = vmatpush1.msra.mxu0 0.0
      %4374 = vmatprep.subr.mxu0 0.0
      %4375 = vmatpush1.msra.mxu0 0.0
      %4376 = vmatprep.subr.mxu0 0.0
      %4377 = vmatpush1.msra.mxu0 0.0
      %4378 = vmatprep.subr.mxu0 0.0
      %4379 = vmatpush1.msra.mxu0 0.0
      %4380 = vmatprep.subr.mxu0 0.0
      %4381 = vmatpush1.msra.mxu0 0.0
      %4382 = vmatprep.subr.mxu0 0.0
      %4383 = vmatpush1.msra.mxu0 0.0
      %4384 = vmatprep.subr.mxu0 0.0
      %4385 = vmatpush1.msra.mxu0 0.0
      %4386 = vmatprep.mubr.f32.mxu0 0.0
      %v4387 = vand.u32 %v4044, 4294901760
      %v4388 = vsub.f32 %v4044, %v4387
      %4389 = vmatmul.mubr.f32.gmra.mrb[0].mxu0 %v4388
      %v4390 = vpop.f32.mrb[0].mxu0
      %v4391 = vadd.f32 %v4286, %v4390
      %v4392 = vpop.f32.mrb[0].mxu0
      %v4393 = vadd.f32 %v4288, %v4392
      %4394 = vdwg.mxu0
      %v4395 = vand.u32 %v4023, 4294901760
      %4396 = vmatprep.subr.mxu0 %v4395
      %v4397 = vand.u32 %v4022, 4294901760
      %4398 = vmatpush1.msra.mxu0 %v4397
      %v4399 = vand.u32 %v4025, 4294901760
      %4400 = vmatprep.subr.mxu0 %v4399
      %v4401 = vand.u32 %v4024, 4294901760
      %4402 = vmatpush1.msra.mxu0 %v4401
      %v4403 = vand.u32 %v4027, 4294901760
      %4404 = vmatprep.subr.mxu0 %v4403
      %v4405 = vand.u32 %v4026, 4294901760
      %4406 = vmatpush1.msra.mxu0 %v4405
      %v4407 = vand.u32 %v4029, 4294901760
      %4408 = vmatprep.subr.mxu0 %v4407
      %v4409 = vand.u32 %v4028, 4294901760
      %4410 = vmatpush1.msra.mxu0 %v4409
      %v4411 = vand.u32 %v4031, 4294901760
      %4412 = vmatprep.subr.mxu0 %v4411
      %v4413 = vand.u32 %v4030, 4294901760
      %4414 = vmatpush1.msra.mxu0 %v4413
      %v4415 = vand.u32 %v4033, 4294901760
      %4416 = vmatprep.subr.mxu0 %v4415
      %v4417 = vand.u32 %v4032, 4294901760
      %4418 = vmatpush1.msra.mxu0 %v4417
      %v4419 = vand.u32 %v4035, 4294901760
      %4420 = vmatprep.subr.mxu0 %v4419
      %v4421 = vand.u32 %v4034, 4294901760
      %4422 = vmatpush1.msra.mxu0 %v4421
      %v4423 = vand.u32 %v4037, 4294901760
      %4424 = vmatprep.subr.mxu0 %v4423
      %v4425 = vand.u32 %v4036, 4294901760
      %4426 = vmatpush1.msra.mxu0 %v4425
      %4427 = vmatprep.subr.mxu0 0.0
      %4428 = vmatpush1.msra.mxu0 0.0
      %4429 = vmatprep.subr.mxu0 0.0
      %4430 = vmatpush1.msra.mxu0 0.0
      %4431 = vmatprep.subr.mxu0 0.0
      %4432 = vmatpush1.msra.mxu0 0.0
      %4433 = vmatprep.subr.mxu0 0.0
      %4434 = vmatpush1.msra.mxu0 0.0
      %4435 = vmatprep.subr.mxu0 0.0
      %4436 = vmatpush1.msra.mxu0 0.0
      %4437 = vmatprep.subr.mxu0 0.0
      %4438 = vmatpush1.msra.mxu0 0.0
      %4439 = vmatprep.subr.mxu0 0.0
      %4440 = vmatpush1.msra.mxu0 0.0
      %4441 = vmatprep.subr.mxu0 0.0
      %4442 = vmatpush1.msra.mxu0 0.0
      %4443 = vmatprep.subr.mxu0 0.0
      %4444 = vmatpush1.msra.mxu0 0.0
      %4445 = vmatprep.subr.mxu0 0.0
      %4446 = vmatpush1.msra.mxu0 0.0
      %4447 = vmatprep.subr.mxu0 0.0
      %4448 = vmatpush1.msra.mxu0 0.0
      %4449 = vmatprep.subr.mxu0 0.0
      %4450 = vmatpush1.msra.mxu0 0.0
      %4451 = vmatprep.subr.mxu0 0.0
      %4452 = vmatpush1.msra.mxu0 0.0
      %4453 = vmatprep.subr.mxu0 0.0
      %4454 = vmatpush1.msra.mxu0 0.0
      %4455 = vmatprep.subr.mxu0 0.0
      %4456 = vmatpush1.msra.mxu0 0.0
      %4457 = vmatprep.subr.mxu0 0.0
      %4458 = vmatpush1.msra.mxu0 0.0
      %4459 = vmatprep.subr.mxu0 0.0
      %4460 = vmatpush1.msra.mxu0 0.0
      %4461 = vmatprep.subr.mxu0 0.0
      %4462 = vmatpush1.msra.mxu0 0.0
      %4463 = vmatprep.subr.mxu0 0.0
      %4464 = vmatpush1.msra.mxu0 0.0
      %4465 = vmatprep.subr.mxu0 0.0
      %4466 = vmatpush1.msra.mxu0 0.0
      %4467 = vmatprep.subr.mxu0 0.0
      %4468 = vmatpush1.msra.mxu0 0.0
      %4469 = vmatprep.subr.mxu0 0.0
      %4470 = vmatpush1.msra.mxu0 0.0
      %4471 = vmatprep.subr.mxu0 0.0
      %4472 = vmatpush1.msra.mxu0 0.0
      %4473 = vmatprep.subr.mxu0 0.0
      %4474 = vmatpush1.msra.mxu0 0.0
      %4475 = vmatprep.mubr.f32.mxu0 0.0
      %v4476 = vand.u32 %v4044, 4294901760
      %v4477 = vsub.f32 %v4044, %v4476
      %v4478 = vand.u32 %v4477, 4294901760
      %4479 = vmatmul.mubr.f32.gmra.mrb[0].mxu0 %v4478
      %v4480 = vpop.f32.mrb[0].mxu0
      %v4481 = vadd.f32 %v4391, %v4480
      %v4482 = vpop.f32.mrb[0].mxu0
      %v4483 = vadd.f32 %v4393, %v4482
      %4484 = vdwg.mxu0
      %v4485 = vand.u32 %v4023, 4294901760
      %v4486 = vsub.f32 %v4023, %v4485
      %v4487 = vand.u32 %v4486, 4294901760
      %4488 = vmatprep.subr.mxu0 %v4487
      %v4489 = vand.u32 %v4022, 4294901760
      %v4490 = vsub.f32 %v4022, %v4489
      %v4491 = vand.u32 %v4490, 4294901760
      %4492 = vmatpush1.msra.mxu0 %v4491
      %v4493 = vand.u32 %v4025, 4294901760
      %v4494 = vsub.f32 %v4025, %v4493
      %v4495 = vand.u32 %v4494, 4294901760
      %4496 = vmatprep.subr.mxu0 %v4495
      %v4497 = vand.u32 %v4024, 4294901760
      %v4498 = vsub.f32 %v4024, %v4497
      %v4499 = vand.u32 %v4498, 4294901760
      %4500 = vmatpush1.msra.mxu0 %v4499
      %v4501 = vand.u32 %v4027, 4294901760
      %v4502 = vsub.f32 %v4027, %v4501
      %v4503 = vand.u32 %v4502, 4294901760
      %4504 = vmatprep.subr.mxu0 %v4503
      %v4505 = vand.u32 %v4026, 4294901760
      %v4506 = vsub.f32 %v4026, %v4505
      %v4507 = vand.u32 %v4506, 4294901760
      %4508 = vmatpush1.msra.mxu0 %v4507
      %v4509 = vand.u32 %v4029, 4294901760
      %v4510 = vsub.f32 %v4029, %v4509
      %v4511 = vand.u32 %v4510, 4294901760
      %4512 = vmatprep.subr.mxu0 %v4511
      %v4513 = vand.u32 %v4028, 4294901760
      %v4514 = vsub.f32 %v4028, %v4513
      %v4515 = vand.u32 %v4514, 4294901760
      %4516 = vmatpush1.msra.mxu0 %v4515
      %v4517 = vand.u32 %v4031, 4294901760
      %v4518 = vsub.f32 %v4031, %v4517
      %v4519 = vand.u32 %v4518, 4294901760
      %4520 = vmatprep.subr.mxu0 %v4519
      %v4521 = vand.u32 %v4030, 4294901760
      %v4522 = vsub.f32 %v4030, %v4521
      %v4523 = vand.u32 %v4522, 4294901760
      %4524 = vmatpush1.msra.mxu0 %v4523
      %v4525 = vand.u32 %v4033, 4294901760
      %v4526 = vsub.f32 %v4033, %v4525
      %v4527 = vand.u32 %v4526, 4294901760
      %4528 = vmatprep.subr.mxu0 %v4527
      %v4529 = vand.u32 %v4032, 4294901760
      %v4530 = vsub.f32 %v4032, %v4529
      %v4531 = vand.u32 %v4530, 4294901760
      %4532 = vmatpush1.msra.mxu0 %v4531
      %v4533 = vand.u32 %v4035, 4294901760
      %v4534 = vsub.f32 %v4035, %v4533
      %v4535 = vand.u32 %v4534, 4294901760
      %4536 = vmatprep.subr.mxu0 %v4535
      %v4537 = vand.u32 %v4034, 4294901760
      %v4538 = vsub.f32 %v4034, %v4537
      %v4539 = vand.u32 %v4538, 4294901760
      %4540 = vmatpush1.msra.mxu0 %v4539
      %v4541 = vand.u32 %v4037, 4294901760
      %v4542 = vsub.f32 %v4037, %v4541
      %v4543 = vand.u32 %v4542, 4294901760
      %4544 = vmatprep.subr.mxu0 %v4543
      %v4545 = vand.u32 %v4036, 4294901760
      %v4546 = vsub.f32 %v4036, %v4545
      %v4547 = vand.u32 %v4546, 4294901760
      %4548 = vmatpush1.msra.mxu0 %v4547
      %4549 = vmatprep.subr.mxu0 0.0
      %4550 = vmatpush1.msra.mxu0 0.0
      %4551 = vmatprep.subr.mxu0 0.0
      %4552 = vmatpush1.msra.mxu0 0.0
      %4553 = vmatprep.subr.mxu0 0.0
      %4554 = vmatpush1.msra.mxu0 0.0
      %4555 = vmatprep.subr.mxu0 0.0
      %4556 = vmatpush1.msra.mxu0 0.0
      %4557 = vmatprep.subr.mxu0 0.0
      %4558 = vmatpush1.msra.mxu0 0.0
      %4559 = vmatprep.subr.mxu0 0.0
      %4560 = vmatpush1.msra.mxu0 0.0
      %4561 = vmatprep.subr.mxu0 0.0
      %4562 = vmatpush1.msra.mxu0 0.0
      %4563 = vmatprep.subr.mxu0 0.0
      %4564 = vmatpush1.msra.mxu0 0.0
      %4565 = vmatprep.subr.mxu0 0.0
      %4566 = vmatpush1.msra.mxu0 0.0
      %4567 = vmatprep.subr.mxu0 0.0
      %4568 = vmatpush1.msra.mxu0 0.0
      %4569 = vmatprep.subr.mxu0 0.0
      %4570 = vmatpush1.msra.mxu0 0.0
      %4571 = vmatprep.subr.mxu0 0.0
      %4572 = vmatpush1.msra.mxu0 0.0
      %4573 = vmatprep.subr.mxu0 0.0
      %4574 = vmatpush1.msra.mxu0 0.0
      %4575 = vmatprep.subr.mxu0 0.0
      %4576 = vmatpush1.msra.mxu0 0.0
      %4577 = vmatprep.subr.mxu0 0.0
      %4578 = vmatpush1.msra.mxu0 0.0
      %4579 = vmatprep.subr.mxu0 0.0
      %4580 = vmatpush1.msra.mxu0 0.0
      %4581 = vmatprep.subr.mxu0 0.0
      %4582 = vmatpush1.msra.mxu0 0.0
      %4583 = vmatprep.subr.mxu0 0.0
      %4584 = vmatpush1.msra.mxu0 0.0
      %4585 = vmatprep.subr.mxu0 0.0
      %4586 = vmatpush1.msra.mxu0 0.0
      %4587 = vmatprep.subr.mxu0 0.0
      %4588 = vmatpush1.msra.mxu0 0.0
      %4589 = vmatprep.subr.mxu0 0.0
      %4590 = vmatpush1.msra.mxu0 0.0
      %4591 = vmatprep.subr.mxu0 0.0
      %4592 = vmatpush1.msra.mxu0 0.0
      %4593 = vmatprep.subr.mxu0 0.0
      %4594 = vmatpush1.msra.mxu0 0.0
      %4595 = vmatprep.subr.mxu0 0.0
      %4596 = vmatpush1.msra.mxu0 0.0
      %4597 = vmatprep.mubr.f32.mxu0 0.0
      %v4598 = vand.u32 %v4044, 4294901760
      %4599 = vmatmul.mubr.f32.gmra.mrb[0].mxu0 %v4598
      %v4600 = vpop.f32.mrb[0].mxu0
      %v4601 = vadd.f32 %v4481, %v4600
      %v4602 = vpop.f32.mrb[0].mxu0
      %v4603 = vadd.f32 %v4483, %v4602
      %4604 = vdwg.mxu0
      %v4605 = vand.u32 %v4023, 4294901760
      %4606 = vmatprep.subr.mxu0 %v4605
      %v4607 = vand.u32 %v4022, 4294901760
      %4608 = vmatpush1.msra.mxu0 %v4607
      %v4609 = vand.u32 %v4025, 4294901760
      %4610 = vmatprep.subr.mxu0 %v4609
      %v4611 = vand.u32 %v4024, 4294901760
      %4612 = vmatpush1.msra.mxu0 %v4611
      %v4613 = vand.u32 %v4027, 4294901760
      %4614 = vmatprep.subr.mxu0 %v4613
      %v4615 = vand.u32 %v4026, 4294901760
      %4616 = vmatpush1.msra.mxu0 %v4615
      %v4617 = vand.u32 %v4029, 4294901760
      %4618 = vmatprep.subr.mxu0 %v4617
      %v4619 = vand.u32 %v4028, 4294901760
      %4620 = vmatpush1.msra.mxu0 %v4619
      %v4621 = vand.u32 %v4031, 4294901760
      %4622 = vmatprep.subr.mxu0 %v4621
      %v4623 = vand.u32 %v4030, 4294901760
      %4624 = vmatpush1.msra.mxu0 %v4623
      %v4625 = vand.u32 %v4033, 4294901760
      %4626 = vmatprep.subr.mxu0 %v4625
      %v4627 = vand.u32 %v4032, 4294901760
      %4628 = vmatpush1.msra.mxu0 %v4627
      %v4629 = vand.u32 %v4035, 4294901760
      %4630 = vmatprep.subr.mxu0 %v4629
      %v4631 = vand.u32 %v4034, 4294901760
      %4632 = vmatpush1.msra.mxu0 %v4631
      %v4633 = vand.u32 %v4037, 4294901760
      %4634 = vmatprep.subr.mxu0 %v4633
      %v4635 = vand.u32 %v4036, 4294901760
      %4636 = vmatpush1.msra.mxu0 %v4635
      %4637 = vmatprep.subr.mxu0 0.0
      %4638 = vmatpush1.msra.mxu0 0.0
      %4639 = vmatprep.subr.mxu0 0.0
      %4640 = vmatpush1.msra.mxu0 0.0
      %4641 = vmatprep.subr.mxu0 0.0
      %4642 = vmatpush1.msra.mxu0 0.0
      %4643 = vmatprep.subr.mxu0 0.0
      %4644 = vmatpush1.msra.mxu0 0.0
      %4645 = vmatprep.subr.mxu0 0.0
      %4646 = vmatpush1.msra.mxu0 0.0
      %4647 = vmatprep.subr.mxu0 0.0
      %4648 = vmatpush1.msra.mxu0 0.0
      %4649 = vmatprep.subr.mxu0 0.0
      %4650 = vmatpush1.msra.mxu0 0.0
      %4651 = vmatprep.subr.mxu0 0.0
      %4652 = vmatpush1.msra.mxu0 0.0
      %4653 = vmatprep.subr.mxu0 0.0
      %4654 = vmatpush1.msra.mxu0 0.0
      %4655 = vmatprep.subr.mxu0 0.0
      %4656 = vmatpush1.msra.mxu0 0.0
      %4657 = vmatprep.subr.mxu0 0.0
      %4658 = vmatpush1.msra.mxu0 0.0
      %4659 = vmatprep.subr.mxu0 0.0
      %4660 = vmatpush1.msra.mxu0 0.0
      %4661 = vmatprep.subr.mxu0 0.0
      %4662 = vmatpush1.msra.mxu0 0.0
      %4663 = vmatprep.subr.mxu0 0.0
      %4664 = vmatpush1.msra.mxu0 0.0
      %4665 = vmatprep.subr.mxu0 0.0
      %4666 = vmatpush1.msra.mxu0 0.0
      %4667 = vmatprep.subr.mxu0 0.0
      %4668 = vmatpush1.msra.mxu0 0.0
      %4669 = vmatprep.subr.mxu0 0.0
      %4670 = vmatpush1.msra.mxu0 0.0
      %4671 = vmatprep.subr.mxu0 0.0
      %4672 = vmatpush1.msra.mxu0 0.0
      %4673 = vmatprep.subr.mxu0 0.0
      %4674 = vmatpush1.msra.mxu0 0.0
      %4675 = vmatprep.subr.mxu0 0.0
      %4676 = vmatpush1.msra.mxu0 0.0
      %4677 = vmatprep.subr.mxu0 0.0
      %4678 = vmatpush1.msra.mxu0 0.0
      %4679 = vmatprep.subr.mxu0 0.0
      %4680 = vmatpush1.msra.mxu0 0.0
      %4681 = vmatprep.subr.mxu0 0.0
      %4682 = vmatpush1.msra.mxu0 0.0
      %4683 = vmatprep.subr.mxu0 0.0
      %4684 = vmatpush1.msra.mxu0 0.0
      %4685 = vmatprep.mubr.f32.mxu0 0.0
      %v4686 = vand.u32 %v4044, 4294901760
      %4687 = vmatmul.mubr.f32.gmra.mrb[0].mxu0 %v4686
      %v4688 = vpop.f32.mrb[0].mxu0
      %v4689 = vadd.f32 %v4601, %v4688
      %v4690 = vpop.f32.mrb[0].mxu0
      %v4691 = vadd.f32 %v4603, %v4690
      %4692 = vdwg.mxu0
      %v4693 = vadd.f32 %v4040, %v4689
      %v4694 = vadd.f32 %v4041, %v4691
      %4695 = vst [vmem:[#allocation5] sm:$0xff] %v4693
      %4696 = vst [vmem:[#allocation5 + $0x8] sm:$0xff] %v4694
    $region89: #{tpu_custom_call.1} parent=1 // pred_fallthru
      _
    %v4697 = vld [vmem:[#allocation5] sm:$0xff]
    %v4698 = vld [vmem:[#allocation5 + $0x8] sm:$0xff]
    %4699 = vst [vmem:[#allocation14] sm:$0xff] %v4697
    %4700 = vst [vmem:[#allocation14 + $0x8] sm:$0xff] %v4698
    // Predicated region
    $region90: #{tpu_custom_call.1} parent=1 // pred_check
      _
    $region91: #{tpu_custom_call.1} parent=1 // pred_check_branch
      %4702 = sbr.rel (0) target = $region93
    $region92: #{tpu_custom_call.1} parent=1 // pred_region
      %s4704 = ssub.s32 128, 128
      %4705 = vsyncadd [#allocation8], %s4704
      %s4707 = sshll.u32 [#allocation13], 4
      %s4708 = int_to_ptr.vmem [resolvable:$true] %s4707
      %4710 = dma.vmem_to_hbm [thread:$0]  %s4708, 128, %s6, [#allocation8]
    $region93: #{tpu_custom_call.1} parent=1 // pred_fallthru
      _
    // Predicated region
    $region94: #{tpu_custom_call.1} parent=1 // pred_check
      _
    $region95: #{tpu_custom_call.1} parent=1 // pred_check_branch
      %4712 = sbr.rel (0) target = $region97
    $region96: #{tpu_custom_call.1} parent=1 // pred_region
      %s4714 = ssub.s32 256, 256
      %4715 = vsyncadd [#allocation15], %s4714
      %s4717 = sshll.u32 [#allocation14], 4
      %s4718 = int_to_ptr.vmem [resolvable:$true] %s4717
      %4720 = dma.vmem_to_hbm [thread:$0]  %s4718, 256, %s7, [#allocation15]
    $region97: #{tpu_custom_call.1} parent=1 // pred_fallthru
      _
    // Predicated region
    $region98: #{tpu_custom_call.1} parent=1 // pred_check
      _
    $region99: #{tpu_custom_call.1} parent=1 // pred_check_branch
      %4722 = sbr.rel (0) target = $region101
    $region100: #{tpu_custom_call.1} parent=1 // pred_region
      %4723 = dma.done [#allocation8], 128
    $region101: #{tpu_custom_call.1} parent=1 // pred_fallthru
      _
    // Predicated region
    $region102: #{tpu_custom_call.1} parent=1 // pred_check
      _
    $region103: #{tpu_custom_call.1} parent=1 // pred_check_branch
      %4725 = sbr.rel (0) target = $region105
    $region104: #{tpu_custom_call.1} parent=1 // pred_region
      %4726 = dma.done [#allocation15], 256
    $region105: #{tpu_custom_call.1} parent=1 // pred_fallthru
      _
    %4727 = vsyncpa [#allocation7], 1
    %4728 = vsyncpa [#allocation8], 1
    %4729 = vsyncpa [#allocation15], 1
    %4730 = vsyncpa [#allocation9], 1
    %4731 = vsyncpa [#allocation11], 1

</llo_original>
